<compile_context>
chip_gen: v6e
topology: v6e:2x2x1
jax: 0.10.0
libtpu: 0.0.40
codegen_flags: <defaults>
</compile_context>

<pallas_src>
import math

import jax
import jax.numpy as jnp
from jax import lax
from jax.experimental import pallas as pl
from jax.experimental.pallas import tpu as pltpu

PHI = (1.0 + math.sqrt(5.0)) / 2.0
NUM_PS_LAYERS = 3
NUM_ATTN_LAYERS = 3
_NEG_BIG = -1e30                 # finite stand-in for -inf in the pad mask
_PS_ROWS = 5                     # per layer: cos, sin, ln_g, ln_b, tanh(interf)
_ATTN_ROWS = 10                  # per layer: qg,qb,kg,kb,vg,vb,w_eff,pres_eff,png,pnb


def _ln_normalize(x, eps):
    """Row-wise LayerNorm normalization (no affine), biased variance."""
    mu = jnp.mean(x, axis=-1, keepdims=True)
    var = jnp.mean((x - mu) ** 2, axis=-1, keepdims=True)
    return (x - mu) * lax.rsqrt(var + eps)


def quantum_llm_kernel(emb_ref, mask_ref, ps_ref, attn_ref, w_ref, bias_ref,
                       logits_ref, z_ref):
    TB, L, D = emb_ref.shape
    TV = logits_ref.shape[2]

    # ------------------------------------------------------------------
    # Heavy trunk: run once per batch block (first vocab tile only).
    # ------------------------------------------------------------------
    @pl.when(pl.program_id(1) == 0)
    def _trunk():
        x = emb_ref[...] * 0.1            # (TB, L, D) real embedding, scaled
        mask = mask_ref[...]              # (TB, 1, L): 1.0 where PAD

        # ---------------- EnhancedDynamicPhaseSpace ----------------
        final_real = jnp.zeros((TB, L, D), jnp.float32)
        final_imag = jnp.zeros((TB, L, D), jnp.float32)
        for l in range(NUM_PS_LAYERS):
            base = _PS_ROWS * l
            cos_a = ps_ref[base + 0:base + 1]     # (1, D) rows of the slab
            sin_a = ps_ref[base + 1:base + 2]
            g = ps_ref[base + 2:base + 3]
            b = ps_ref[base + 3:base + 4]
            interf = ps_ref[base + 4:base + 5]
            real = (_ln_normalize(x * cos_a, 1e-8) * g + b) * interf
            imag = (_ln_normalize(x * sin_a, 1e-8) * g + b) * interf
            ang = 2.0 * math.pi * l / NUM_PS_LAYERS
            cr, ci = math.cos(ang), math.sin(ang)
            final_real = final_real + real * cr - imag * ci
            final_imag = final_imag + real * ci + imag * cr

        amplitude = jnp.sqrt(final_real ** 2 + final_imag ** 2 + 1e-8)
        is_collapsing = (amplitude < 0.1).astype(jnp.float32)
        excitation = ps_ref[_PS_ROWS * NUM_PS_LAYERS:
                            _PS_ROWS * NUM_PS_LAYERS + 1]   # (1, D) exp(E)*factor
        final_real = final_real + is_collapsing * excitation
        final_imag = final_imag + is_collapsing * excitation
        inv_norm = lax.rsqrt(final_real ** 2 + final_imag ** 2 + 1e-8)
        real = jnp.clip(final_real * inv_norm, -1.0, 1.0)
        imag = jnp.clip(final_imag * inv_norm, -1.0, 1.0)

        # ---------- 3 x QuantumStatePreservingAttention ----------
        inv_ld = 1.0 / (L * D)
        for l in range(NUM_ATTN_LAYERS):
            base = _ATTN_ROWS * l
            qg = attn_ref[base + 0:base + 1]; qb = attn_ref[base + 1:base + 2]
            kg = attn_ref[base + 2:base + 3]; kb = attn_ref[base + 3:base + 4]
            vg = attn_ref[base + 4:base + 5]; vb = attn_ref[base + 5:base + 6]
            w_eff = attn_ref[base + 6:base + 7]
            pres_eff = attn_ref[base + 7:base + 8]
            png = attn_ref[base + 8:base + 9]; pnb = attn_ref[base + 9:base + 10]

            # q/k/v norms normalize the same real/imag with the same eps (1e-5)
            # -> one normalization pass each, per-projection affine applied after.
            xr = _ln_normalize(real, 1e-5)
            xi = _ln_normalize(imag, 1e-5)
            q_r = xr * qg + qb; q_i = xi * qg + qb
            k_r = xr * kg + kb; k_i = xi * kg + kb
            v_r = xr * vg + vb; v_i = xi * vg + vb

            # cos/sin of atan2(imag+eps, real+eps) without transcendentals.
            qre = q_r + 1e-8; qie = q_i + 1e-8
            rq = lax.rsqrt(qre * qre + qie * qie)
            cos_q = qre * rq; sin_q = qie * rq
            kre = k_r + 1e-8; kie = k_i + 1e-8
            rk = lax.rsqrt(kre * kre + kie * kie)
            cos_k = kre * rk; sin_k = kie * rk

            # attn_scores[b,i,j] = sum_d cos(qp-kp) * w_eff[d]
            # (w_eff folds mean over W_attn's output dim and the D^-0.5 scale)
            s = (jnp.einsum('bqd,bkd->bqk', cos_q * w_eff, cos_k,
                            preferred_element_type=jnp.float32)
                 + jnp.einsum('bqd,bkd->bqk', sin_q * w_eff, sin_k,
                              preferred_element_type=jnp.float32))
            s = jnp.where(mask > 0.5, _NEG_BIG, s)

            m = jnp.max(s, axis=-1, keepdims=True)
            e = jnp.exp(s - m)
            inv_denom = pl.reciprocal(jnp.sum(e, axis=-1, keepdims=True),
                                      approx=True)
            attn = jnp.clip(e * inv_denom, 1e-6, 1.0)

            out_real = jnp.einsum('bqk,bkd->bqd', attn, v_r,
                                  preferred_element_type=jnp.float32)
            out_imag = jnp.einsum('bqk,bkd->bqd', attn, v_i,
                                  preferred_element_type=jnp.float32)

            # coherence[b,i] = mean over (keys, dim) of cos(phase_diffs)
            sum_ck = jnp.sum(cos_k, axis=1, keepdims=True)       # (TB, 1, D)
            sum_sk = jnp.sum(sin_k, axis=1, keepdims=True)
            coherence = (jnp.sum(cos_q * sum_ck, axis=-1, keepdims=True)
                         + jnp.sum(sin_q * sum_sk, axis=-1, keepdims=True)) * inv_ld

            # preservation = sigmoid(pres) * sigmoid(coh) * coherence
            # (the two sigmoids are pre-folded into pres_eff in the wrapper)
            preservation = pres_eff * coherence                   # (TB, L, D)
            phase = jnp.arctan2(out_imag + 1e-8, out_real + 1e-8)
            preserved_real = out_real * jnp.cos(phase * preservation)
            # preserved_imag is dead code downstream (reference bug) -> skipped.

            real = _ln_normalize(real + preserved_real * 0.01, 1e-8)
            real = jnp.clip(real * png + pnb, -1.0, 1.0)
            # Reference bug: `imag = clamp(real, -1, 1)` -> imag aliases real.
            imag = real

        # -------- pre-output LayerNorm over cat([real, imag]) --------
        # imag == real, so the 2D-wide stats equal the per-half stats.  The
        # affine + output Linear are folded into W_comb/b_comb in the wrapper,
        # so only the un-affined normalized slab is stored.
        mu = jnp.mean(real, axis=-1, keepdims=True)
        var = jnp.mean((real - mu) ** 2, axis=-1, keepdims=True)
        z = (real - mu) * lax.rsqrt(var + 1e-5)
        z_ref[...] = z.reshape(TB * L, D).astype(z_ref.dtype)

    # ------------------------------------------------------------------
    # Per-vocab-tile output head: one (TB*L, D) @ (D, TV) MXU matmul.
    # ------------------------------------------------------------------
    acc = jnp.dot(z_ref[...], w_ref[...], preferred_element_type=jnp.float32)
    logits = (acc.reshape(TB, L, TV) + bias_ref[...]) * 0.1
    logits_ref[...] = jnp.clip(logits, -10.0, 10.0)


def _pick_batch_tile(batch, seq, target_rows=256):
    """Largest divisor of `batch` with tile*seq <= target_rows, keeping >= 2
    batch blocks when possible (so the 'parallel' axis can shard on v7x)."""
    best = 1
    for d in range(1, batch + 1):
        if batch % d:
            continue
        if d * seq > target_rows:
            continue
        if d == batch and batch > 1:
            continue
        best = d
    return best


def quantum_llm_forward(x_ids, params, *, dim, vocab_size, pad_token_id=0,
                        vocab_tile=None, batch_tile=None,
                        head_dtype=jnp.float32):
    B, L = x_ids.shape
    D, V = dim, vocab_size
    f32 = jnp.float32
    assert L % 8 == 0, "sequence length must be a multiple of 8 (f32 sublanes)"
    # TODO(synk): pad/mask the sequence axis for non-multiple-of-8 lengths.

    # ---- plain-JAX glue: embedding lookup + pad mask --------------------
    real_embed = params["embed_real"][x_ids].astype(f32)            # (B, L, D)
    pad_mask = (x_ids == pad_token_id).astype(f32).reshape(B, 1, L)

    # ---- grid-invariant parameter transforms, packed into two slabs -----
    ps_angles = jnp.tanh(params["ps_phase"]) * (math.pi * PHI)       # (3, D)
    ps_cos, ps_sin = jnp.cos(ps_angles), jnp.sin(ps_angles)
    ps_interf = jnp.tanh(params["ps_interf"])
    excitation = (jnp.exp(params["energy"]) * params["excit"]).reshape(D)
    ps_rows = []
    for l in range(NUM_PS_LAYERS):
        ps_rows += [ps_cos[l], ps_sin[l], params["ps_g"][l], params["ps_b"][l],
                    ps_interf[l]]
    ps_rows.append(excitation)
    ps_slab = jnp.stack(ps_rows, axis=0).astype(f32)                 # (16, D)

    # mean over W_attn output dim folded with the D^-0.5 attention scale
    w_eff = jnp.mean(params["wattn"], axis=-1) * (float(D) ** -0.5)  # (3, D)
    pres_eff = jax.nn.sigmoid(params["pres"]) * jax.nn.sigmoid(params["coh"])
    attn_rows = []
    for l in range(NUM_ATTN_LAYERS):
        attn_rows += [params["qg"][l], params["qb"][l],
                      params["kg"][l], params["kb"][l],
                      params["vg"][l], params["vb"][l],
                      w_eff[l], pres_eff[l],
                      params["png"][l], params["pnb"][l]]
    attn_slab = jnp.stack(attn_rows, axis=0).astype(f32)             # (30, D)

    # ---- output head folded into ONE (D, V) weight -----------------------
    # Valid because imag aliases real after the attention stack (reference bug).
    on_g, on_b = params["on_g"][0], params["on_b"][0]                # (2D,)
    out_w = params["out_w"]                                          # (2D, V)
    w_comb = on_g[:D, None] * out_w[:D] + on_g[D:, None] * out_w[D:]  # (D, V)
    b_comb = on_b[:D] @ out_w[:D] + on_b[D:] @ out_w[D:] + params["out_b"][0]

    # ---- vocab tiling (lane-dense; VMEM independent of V) ----------------
    if vocab_tile is None:
        vocab_tile = min(((V + 127) // 128) * 128, 512)
    assert vocab_tile % 128 == 0
    v_pad = ((V + vocab_tile - 1) // vocab_tile) * vocab_tile
    nv = v_pad // vocab_tile
    w_comb = jnp.pad(w_comb, ((0, 0), (0, v_pad - V))).astype(head_dtype)
    b_comb = jnp.pad(b_comb, (0, v_pad - V)).reshape(1, v_pad).astype(f32)

    # ---- batch tiling -----------------------------------------------------
    if batch_tile is None:
        batch_tile = _pick_batch_tile(B, L)
    assert B % batch_tile == 0
    TB = batch_tile
    nb = B // TB

    # ---- VMEM limit: generous on 128 MiB parts, capped for v7x (64 MiB) ---
    try:
        vmem_cap = pltpu.get_tpu_info().vmem_capacity_bytes
    except Exception:
        vmem_cap = 64 * 1024 * 1024
    vmem_limit = max(32 * 1024 * 1024,
                     min(96 * 1024 * 1024, vmem_cap - 16 * 1024 * 1024))

    in_specs = [
        pl.BlockSpec((TB, L, D), lambda b, v: (b, 0, 0)),            # embeddings
        pl.BlockSpec((TB, 1, L), lambda b, v: (b, 0, 0)),            # pad mask
        pl.BlockSpec(ps_slab.shape, lambda b, v: (0, 0)),            # ps slab
        pl.BlockSpec(attn_slab.shape, lambda b, v: (0, 0)),          # attn slab
        pl.BlockSpec((D, vocab_tile), lambda b, v: (0, v)),          # W_comb tile
        pl.BlockSpec((1, vocab_tile), lambda b, v: (0, v)),          # b_comb tile
    ]
    out_spec = pl.BlockSpec((TB, L, vocab_tile), lambda b, v: (b, 0, v))

    logits_pad = pl.pallas_call(
        quantum_llm_kernel,
        out_shape=jax.ShapeDtypeStruct((B, L, v_pad), jnp.float32),
        grid_spec=pltpu.PrefetchScalarGridSpec(
            num_scalar_prefetch=0,
            grid=(nb, nv),
            in_specs=in_specs,
            out_specs=out_spec,
            scratch_shapes=[pltpu.VMEM((TB * L, D), head_dtype)],
        ),
        compiler_params=pltpu.CompilerParams(
            dimension_semantics=("parallel", "arbitrary"),
            vmem_limit_bytes=vmem_limit,
        ),
    )(real_embed, pad_mask, ps_slab, attn_slab, w_comb, b_comb)

    if v_pad == V:
        return logits_pad            # avoid an extra full-tensor copy
    return logits_pad[:, :, :V]


def init_params(key, dim, vocab_size):
    D, V = dim, vocab_size
    k_emb, k_interf, k_wattn, k_out = jax.random.split(key, 4)
    f32 = jnp.float32
    p = {}
    p["embed_real"] = jax.random.normal(k_emb, (V, D), f32) * 0.02
    # EnhancedDynamicPhaseSpace
    p["ps_phase"] = jnp.zeros((3, D), f32)
    p["ps_interf"] = jax.random.normal(k_interf, (3, D), f32) * 0.02
    p["ps_g"] = jnp.ones((3, D), f32)
    p["ps_b"] = jnp.zeros((3, D), f32)
    p["energy"] = jnp.linspace(0.0, 1.0, D).reshape(1, D).astype(f32)
    p["excit"] = jnp.full((1, 1), 0.1, f32)
    # QuantumStatePreservingAttention (stacked over 3 layers)
    p["qg"] = jnp.ones((3, D), f32); p["qb"] = jnp.zeros((3, D), f32)
    p["kg"] = jnp.ones((3, D), f32); p["kb"] = jnp.zeros((3, D), f32)
    p["vg"] = jnp.ones((3, D), f32); p["vb"] = jnp.zeros((3, D), f32)
    p["wattn"] = jax.random.normal(k_wattn, (3, D, D), f32) * 0.02
    p["pres"] = jnp.full((3, D), 0.1, f32)
    p["coh"] = jnp.full((3, 1), 0.1, f32)
    p["png"] = jnp.ones((3, D), f32); p["pnb"] = jnp.zeros((3, D), f32)
    # output head
    p["on_g"] = jnp.ones((1, 2 * D), f32)
    p["on_b"] = jnp.zeros((1, 2 * D), f32)
    p["out_w"] = (jax.random.normal(k_out, (V, 2 * D), f32) * 0.02).T  # (2D, V)
    p["out_b"] = jnp.zeros((1, V), f32)
    return p


if __name__ == "__main__":
    B, L, D, V = 2, 8, 32, 64
    pad_token_id = 0

    key = jax.random.PRNGKey(0)
    pkey, xkey = jax.random.split(key)
    params = init_params(pkey, D, V)

    x_ids = jax.random.randint(xkey, (B, L), 1, V)
    x_ids = x_ids.at[1, -2:].set(pad_token_id)   # some PAD tokens in sequence 1

    logits = quantum_llm_forward(x_ids, params, dim=D, vocab_size=V,
                                 pad_token_id=pad_token_id)
    jax.block_until_ready(logits)
    assert logits.shape == (B, L, V)
    assert bool(jnp.all(jnp.isfinite(logits)))
    print("KERNEL_OK")
</pallas_src>

<mosaic_0001>
module attributes {stable_mosaic.version = 11 : i64} {
  func.func @quantum_llm_kernel(%arg0: i32, %arg1: i32, %arg2: memref<1x8x32xf32, #tpu.memory_space<vmem>>, %arg3: memref<1x1x8xf32, #tpu.memory_space<vmem>>, %arg4: memref<16x32xf32, #tpu.memory_space<vmem>>, %arg5: memref<30x32xf32, #tpu.memory_space<vmem>>, %arg6: memref<32x128xf32, #tpu.memory_space<vmem>>, %arg7: memref<1x128xf32, #tpu.memory_space<vmem>>, %arg8: memref<1x8x128xf32, #tpu.memory_space<vmem>>, %arg9: memref<8x32xf32, #tpu.memory_space<vmem>>) attributes {dimension_semantics = [#tpu.dimension_semantics<parallel>, #tpu.dimension_semantics<arbitrary>], iteration_bounds = array<i64: 2, 1>, scalar_prefetch = 0 : i64, scratch_operands = 1 : i64, tpu.core_type = #tpu.core_type<tc>, window_params = [{transform_indices = @transform_0, window_bounds = array<i64: 1, 8, 32>}, {transform_indices = @transform_1, window_bounds = array<i64: 1, 1, 8>}, {pipeline_mode = #tpu.pipeline_mode<synchronous>, transform_indices = @transform_2, window_bounds = array<i64: 16, 32>}, {pipeline_mode = #tpu.pipeline_mode<synchronous>, transform_indices = @transform_3, window_bounds = array<i64: 30, 32>}, {transform_indices = @transform_4, window_bounds = array<i64: 32, 128>}, {transform_indices = @transform_5, window_bounds = array<i64: 1, 128>}, {transform_indices = @transform_6, window_bounds = array<i64: 1, 8, 128>}]} {
    %c0_i32 = arith.constant 0 : i32
    %0 = arith.cmpi eq, %arg1, %c0_i32 : i32
    %1 = arith.extui %0 : i1 to i32
    %c0_i32_0 = arith.constant 0 : i32
    %2 = arith.cmpi ne, %1, %c0_i32_0 : i32
    scf.if %2 {
      %c0_12 = arith.constant 0 : index
      %c0_13 = arith.constant 0 : index
      %c0_14 = arith.constant 0 : index
      %18 = vector.load %arg2[%c0_12, %c0_13, %c0_14] : memref<1x8x32xf32, #tpu.memory_space<vmem>>, vector<1x8x32xf32>
      %cst_15 = arith.constant 1.000000e-01 : f32
      %19 = vector.broadcast %cst_15 : f32 to vector<1x8x32xf32>
      %20 = arith.mulf %18, %19 : vector<1x8x32xf32>
      %c0_16 = arith.constant 0 : index
      %c0_17 = arith.constant 0 : index
      %c0_18 = arith.constant 0 : index
      %21 = vector.load %arg3[%c0_16, %c0_17, %c0_18] : memref<1x1x8xf32, #tpu.memory_space<vmem>>, vector<1x1x8xf32>
      %cst_19 = arith.constant 0.000000e+00 : f32
      %22 = vector.broadcast %cst_19 : f32 to vector<1x8x32xf32>
      %cst_20 = arith.constant 0.000000e+00 : f32
      %23 = vector.broadcast %cst_20 : f32 to vector<1x8x32xf32>
      %c0_21 = arith.constant 0 : index
      %c0_22 = arith.constant 0 : index
      %24 = vector.load %arg4[%c0_21, %c0_22] : memref<16x32xf32, #tpu.memory_space<vmem>>, vector<1x32xf32>
      %c1 = arith.constant 1 : index
      %c0_23 = arith.constant 0 : index
      %25 = vector.load %arg4[%c1, %c0_23] : memref<16x32xf32, #tpu.memory_space<vmem>>, vector<1x32xf32>
      %c2 = arith.constant 2 : index
      %c0_24 = arith.constant 0 : index
      %26 = vector.load %arg4[%c2, %c0_24] : memref<16x32xf32, #tpu.memory_space<vmem>>, vector<1x32xf32>
      %c3 = arith.constant 3 : index
      %c0_25 = arith.constant 0 : index
      %27 = vector.load %arg4[%c3, %c0_25] : memref<16x32xf32, #tpu.memory_space<vmem>>, vector<1x32xf32>
      %c4 = arith.constant 4 : index
      %c0_26 = arith.constant 0 : index
      %28 = vector.load %arg4[%c4, %c0_26] : memref<16x32xf32, #tpu.memory_space<vmem>>, vector<1x32xf32>
      %29 = vector.shape_cast %24 : vector<1x32xf32> to vector<1x1x32xf32>
      %30 = vector.broadcast %29 : vector<1x1x32xf32> to vector<1x8x32xf32>
      %31 = arith.mulf %20, %30 : vector<1x8x32xf32>
      %cst_27 = arith.constant dense<0.000000e+00> : vector<1x8xf32>
      %32 = vector.multi_reduction <add>, %31, %cst_27 [2] : vector<1x8x32xf32> to vector<1x8xf32>
      %33 = vector.shape_cast %32 : vector<1x8xf32> to vector<1x8x1xf32>
      %cst_28 = arith.constant 3.200000e+01 : f32
      %34 = vector.broadcast %cst_28 : f32 to vector<1x8x1xf32>
      %35 = arith.divf %33, %34 : vector<1x8x1xf32>
      %36 = vector.broadcast %35 : vector<1x8x1xf32> to vector<1x8x32xf32>
      %37 = arith.subf %31, %36 : vector<1x8x32xf32>
      %38 = arith.mulf %37, %37 : vector<1x8x32xf32>
      %cst_29 = arith.constant dense<0.000000e+00> : vector<1x8xf32>
      %39 = vector.multi_reduction <add>, %38, %cst_29 [2] : vector<1x8x32xf32> to vector<1x8xf32>
      %40 = vector.shape_cast %39 : vector<1x8xf32> to vector<1x8x1xf32>
      %cst_30 = arith.constant 3.200000e+01 : f32
      %41 = vector.broadcast %cst_30 : f32 to vector<1x8x1xf32>
      %42 = arith.divf %40, %41 : vector<1x8x1xf32>
      %43 = vector.broadcast %35 : vector<1x8x1xf32> to vector<1x8x32xf32>
      %44 = arith.subf %31, %43 : vector<1x8x32xf32>
      %cst_31 = arith.constant 9.99999993E-9 : f32
      %45 = vector.broadcast %cst_31 : f32 to vector<1x8x1xf32>
      %46 = arith.addf %42, %45 : vector<1x8x1xf32>
      %47 = math.rsqrt %46 : vector<1x8x1xf32>
      %48 = vector.broadcast %47 : vector<1x8x1xf32> to vector<1x8x32xf32>
      %49 = arith.mulf %44, %48 : vector<1x8x32xf32>
      %50 = vector.shape_cast %26 : vector<1x32xf32> to vector<1x1x32xf32>
      %51 = vector.broadcast %50 : vector<1x1x32xf32> to vector<1x8x32xf32>
      %52 = arith.mulf %49, %51 : vector<1x8x32xf32>
      %53 = vector.shape_cast %27 : vector<1x32xf32> to vector<1x1x32xf32>
      %54 = vector.broadcast %53 : vector<1x1x32xf32> to vector<1x8x32xf32>
      %55 = arith.addf %52, %54 : vector<1x8x32xf32>
      %56 = vector.shape_cast %28 : vector<1x32xf32> to vector<1x1x32xf32>
      %57 = vector.broadcast %56 : vector<1x1x32xf32> to vector<1x8x32xf32>
      %58 = arith.mulf %55, %57 : vector<1x8x32xf32>
      %59 = vector.shape_cast %25 : vector<1x32xf32> to vector<1x1x32xf32>
      %60 = vector.broadcast %59 : vector<1x1x32xf32> to vector<1x8x32xf32>
      %61 = arith.mulf %20, %60 : vector<1x8x32xf32>
      %cst_32 = arith.constant dense<0.000000e+00> : vector<1x8xf32>
      %62 = vector.multi_reduction <add>, %61, %cst_32 [2] : vector<1x8x32xf32> to vector<1x8xf32>
      %63 = vector.shape_cast %62 : vector<1x8xf32> to vector<1x8x1xf32>
      %cst_33 = arith.constant 3.200000e+01 : f32
      %64 = vector.broadcast %cst_33 : f32 to vector<1x8x1xf32>
      %65 = arith.divf %63, %64 : vector<1x8x1xf32>
      %66 = vector.broadcast %65 : vector<1x8x1xf32> to vector<1x8x32xf32>
      %67 = arith.subf %61, %66 : vector<1x8x32xf32>
      %68 = arith.mulf %67, %67 : vector<1x8x32xf32>
      %cst_34 = arith.constant dense<0.000000e+00> : vector<1x8xf32>
      %69 = vector.multi_reduction <add>, %68, %cst_34 [2] : vector<1x8x32xf32> to vector<1x8xf32>
      %70 = vector.shape_cast %69 : vector<1x8xf32> to vector<1x8x1xf32>
      %cst_35 = arith.constant 3.200000e+01 : f32
      %71 = vector.broadcast %cst_35 : f32 to vector<1x8x1xf32>
      %72 = arith.divf %70, %71 : vector<1x8x1xf32>
      %73 = vector.broadcast %65 : vector<1x8x1xf32> to vector<1x8x32xf32>
      %74 = arith.subf %61, %73 : vector<1x8x32xf32>
      %cst_36 = arith.constant 9.99999993E-9 : f32
      %75 = vector.broadcast %cst_36 : f32 to vector<1x8x1xf32>
      %76 = arith.addf %72, %75 : vector<1x8x1xf32>
      %77 = math.rsqrt %76 : vector<1x8x1xf32>
      %78 = vector.broadcast %77 : vector<1x8x1xf32> to vector<1x8x32xf32>
      %79 = arith.mulf %74, %78 : vector<1x8x32xf32>
      %80 = vector.shape_cast %26 : vector<1x32xf32> to vector<1x1x32xf32>
      %81 = vector.broadcast %80 : vector<1x1x32xf32> to vector<1x8x32xf32>
      %82 = arith.mulf %79, %81 : vector<1x8x32xf32>
      %83 = vector.shape_cast %27 : vector<1x32xf32> to vector<1x1x32xf32>
      %84 = vector.broadcast %83 : vector<1x1x32xf32> to vector<1x8x32xf32>
      %85 = arith.addf %82, %84 : vector<1x8x32xf32>
      %86 = vector.shape_cast %28 : vector<1x32xf32> to vector<1x1x32xf32>
      %87 = vector.broadcast %86 : vector<1x1x32xf32> to vector<1x8x32xf32>
      %88 = arith.mulf %85, %87 : vector<1x8x32xf32>
      %cst_37 = arith.constant 1.000000e+00 : f32
      %89 = vector.broadcast %cst_37 : f32 to vector<1x8x32xf32>
      %90 = arith.mulf %58, %89 : vector<1x8x32xf32>
      %91 = arith.addf %22, %90 : vector<1x8x32xf32>
      %cst_38 = arith.constant 0.000000e+00 : f32
      %92 = vector.broadcast %cst_38 : f32 to vector<1x8x32xf32>
      %93 = arith.mulf %88, %92 : vector<1x8x32xf32>
      %94 = arith.subf %91, %93 : vector<1x8x32xf32>
      %cst_39 = arith.constant 0.000000e+00 : f32
      %95 = vector.broadcast %cst_39 : f32 to vector<1x8x32xf32>
      %96 = arith.mulf %58, %95 : vector<1x8x32xf32>
      %97 = arith.addf %23, %96 : vector<1x8x32xf32>
      %cst_40 = arith.constant 1.000000e+00 : f32
      %98 = vector.broadcast %cst_40 : f32 to vector<1x8x32xf32>
      %99 = arith.mulf %88, %98 : vector<1x8x32xf32>
      %100 = arith.addf %97, %99 : vector<1x8x32xf32>
      %c5 = arith.constant 5 : index
      %c0_41 = arith.constant 0 : index
      %101 = vector.load %arg4[%c5, %c0_41] : memref<16x32xf32, #tpu.memory_space<vmem>>, vector<1x32xf32>
      %c6 = arith.constant 6 : index
      %c0_42 = arith.constant 0 : index
      %102 = vector.load %arg4[%c6, %c0_42] : memref<16x32xf32, #tpu.memory_space<vmem>>, vector<1x32xf32>
      %c7 = arith.constant 7 : index
      %c0_43 = arith.constant 0 : index
      %103 = vector.load %arg4[%c7, %c0_43] : memref<16x32xf32, #tpu.memory_space<vmem>>, vector<1x32xf32>
      %c8 = arith.constant 8 : index
      %c0_44 = arith.constant 0 : index
      %104 = vector.load %arg4[%c8, %c0_44] : memref<16x32xf32, #tpu.memory_space<vmem>>, vector<1x32xf32>
      %c9 = arith.constant 9 : index
      %c0_45 = arith.constant 0 : index
      %105 = vector.load %arg4[%c9, %c0_45] : memref<16x32xf32, #tpu.memory_space<vmem>>, vector<1x32xf32>
      %106 = vector.shape_cast %101 : vector<1x32xf32> to vector<1x1x32xf32>
      %107 = vector.broadcast %106 : vector<1x1x32xf32> to vector<1x8x32xf32>
      %108 = arith.mulf %20, %107 : vector<1x8x32xf32>
      %cst_46 = arith.constant dense<0.000000e+00> : vector<1x8xf32>
      %109 = vector.multi_reduction <add>, %108, %cst_46 [2] : vector<1x8x32xf32> to vector<1x8xf32>
      %110 = vector.shape_cast %109 : vector<1x8xf32> to vector<1x8x1xf32>
      %cst_47 = arith.constant 3.200000e+01 : f32
      %111 = vector.broadcast %cst_47 : f32 to vector<1x8x1xf32>
      %112 = arith.divf %110, %111 : vector<1x8x1xf32>
      %113 = vector.broadcast %112 : vector<1x8x1xf32> to vector<1x8x32xf32>
      %114 = arith.subf %108, %113 : vector<1x8x32xf32>
      %115 = arith.mulf %114, %114 : vector<1x8x32xf32>
      %cst_48 = arith.constant dense<0.000000e+00> : vector<1x8xf32>
      %116 = vector.multi_reduction <add>, %115, %cst_48 [2] : vector<1x8x32xf32> to vector<1x8xf32>
      %117 = vector.shape_cast %116 : vector<1x8xf32> to vector<1x8x1xf32>
      %cst_49 = arith.constant 3.200000e+01 : f32
      %118 = vector.broadcast %cst_49 : f32 to vector<1x8x1xf32>
      %119 = arith.divf %117, %118 : vector<1x8x1xf32>
      %120 = vector.broadcast %112 : vector<1x8x1xf32> to vector<1x8x32xf32>
      %121 = arith.subf %108, %120 : vector<1x8x32xf32>
      %cst_50 = arith.constant 9.99999993E-9 : f32
      %122 = vector.broadcast %cst_50 : f32 to vector<1x8x1xf32>
      %123 = arith.addf %119, %122 : vector<1x8x1xf32>
      %124 = math.rsqrt %123 : vector<1x8x1xf32>
      %125 = vector.broadcast %124 : vector<1x8x1xf32> to vector<1x8x32xf32>
      %126 = arith.mulf %121, %125 : vector<1x8x32xf32>
      %127 = vector.shape_cast %103 : vector<1x32xf32> to vector<1x1x32xf32>
      %128 = vector.broadcast %127 : vector<1x1x32xf32> to vector<1x8x32xf32>
      %129 = arith.mulf %126, %128 : vector<1x8x32xf32>
      %130 = vector.shape_cast %104 : vector<1x32xf32> to vector<1x1x32xf32>
      %131 = vector.broadcast %130 : vector<1x1x32xf32> to vector<1x8x32xf32>
      %132 = arith.addf %129, %131 : vector<1x8x32xf32>
      %133 = vector.shape_cast %105 : vector<1x32xf32> to vector<1x1x32xf32>
      %134 = vector.broadcast %133 : vector<1x1x32xf32> to vector<1x8x32xf32>
      %135 = arith.mulf %132, %134 : vector<1x8x32xf32>
      %136 = vector.shape_cast %102 : vector<1x32xf32> to vector<1x1x32xf32>
      %137 = vector.broadcast %136 : vector<1x1x32xf32> to vector<1x8x32xf32>
      %138 = arith.mulf %20, %137 : vector<1x8x32xf32>
      %cst_51 = arith.constant dense<0.000000e+00> : vector<1x8xf32>
      %139 = vector.multi_reduction <add>, %138, %cst_51 [2] : vector<1x8x32xf32> to vector<1x8xf32>
      %140 = vector.shape_cast %139 : vector<1x8xf32> to vector<1x8x1xf32>
      %cst_52 = arith.constant 3.200000e+01 : f32
      %141 = vector.broadcast %cst_52 : f32 to vector<1x8x1xf32>
      %142 = arith.divf %140, %141 : vector<1x8x1xf32>
      %143 = vector.broadcast %142 : vector<1x8x1xf32> to vector<1x8x32xf32>
      %144 = arith.subf %138, %143 : vector<1x8x32xf32>
      %145 = arith.mulf %144, %144 : vector<1x8x32xf32>
      %cst_53 = arith.constant dense<0.000000e+00> : vector<1x8xf32>
      %146 = vector.multi_reduction <add>, %145, %cst_53 [2] : vector<1x8x32xf32> to vector<1x8xf32>
      %147 = vector.shape_cast %146 : vector<1x8xf32> to vector<1x8x1xf32>
      %cst_54 = arith.constant 3.200000e+01 : f32
      %148 = vector.broadcast %cst_54 : f32 to vector<1x8x1xf32>
      %149 = arith.divf %147, %148 : vector<1x8x1xf32>
      %150 = vector.broadcast %142 : vector<1x8x1xf32> to vector<1x8x32xf32>
      %151 = arith.subf %138, %150 : vector<1x8x32xf32>
      %cst_55 = arith.constant 9.99999993E-9 : f32
      %152 = vector.broadcast %cst_55 : f32 to vector<1x8x1xf32>
      %153 = arith.addf %149, %152 : vector<1x8x1xf32>
      %154 = math.rsqrt %153 : vector<1x8x1xf32>
      %155 = vector.broadcast %154 : vector<1x8x1xf32> to vector<1x8x32xf32>
      %156 = arith.mulf %151, %155 : vector<1x8x32xf32>
      %157 = vector.shape_cast %103 : vector<1x32xf32> to vector<1x1x32xf32>
      %158 = vector.broadcast %157 : vector<1x1x32xf32> to vector<1x8x32xf32>
      %159 = arith.mulf %156, %158 : vector<1x8x32xf32>
      %160 = vector.shape_cast %104 : vector<1x32xf32> to vector<1x1x32xf32>
      %161 = vector.broadcast %160 : vector<1x1x32xf32> to vector<1x8x32xf32>
      %162 = arith.addf %159, %161 : vector<1x8x32xf32>
      %163 = vector.shape_cast %105 : vector<1x32xf32> to vector<1x1x32xf32>
      %164 = vector.broadcast %163 : vector<1x1x32xf32> to vector<1x8x32xf32>
      %165 = arith.mulf %162, %164 : vector<1x8x32xf32>
      %cst_56 = arith.constant -5.000000e-01 : f32
      %166 = vector.broadcast %cst_56 : f32 to vector<1x8x32xf32>
      %167 = arith.mulf %135, %166 : vector<1x8x32xf32>
      %168 = arith.addf %94, %167 : vector<1x8x32xf32>
      %cst_57 = arith.constant 0.866025388 : f32
      %169 = vector.broadcast %cst_57 : f32 to vector<1x8x32xf32>
      %170 = arith.mulf %165, %169 : vector<1x8x32xf32>
      %171 = arith.subf %168, %170 : vector<1x8x32xf32>
      %cst_58 = arith.constant 0.866025388 : f32
      %172 = vector.broadcast %cst_58 : f32 to vector<1x8x32xf32>
      %173 = arith.mulf %135, %172 : vector<1x8x32xf32>
      %174 = arith.addf %100, %173 : vector<1x8x32xf32>
      %cst_59 = arith.constant -5.000000e-01 : f32
      %175 = vector.broadcast %cst_59 : f32 to vector<1x8x32xf32>
      %176 = arith.mulf %165, %175 : vector<1x8x32xf32>
      %177 = arith.addf %174, %176 : vector<1x8x32xf32>
      %c10 = arith.constant 10 : index
      %c0_60 = arith.constant 0 : index
      %178 = vector.load %arg4[%c10, %c0_60] : memref<16x32xf32, #tpu.memory_space<vmem>>, vector<1x32xf32>
      %c11 = arith.constant 11 : index
      %c0_61 = arith.constant 0 : index
      %179 = vector.load %arg4[%c11, %c0_61] : memref<16x32xf32, #tpu.memory_space<vmem>>, vector<1x32xf32>
      %c12 = arith.constant 12 : index
      %c0_62 = arith.constant 0 : index
      %180 = vector.load %arg4[%c12, %c0_62] : memref<16x32xf32, #tpu.memory_space<vmem>>, vector<1x32xf32>
      %c13 = arith.constant 13 : index
      %c0_63 = arith.constant 0 : index
      %181 = vector.load %arg4[%c13, %c0_63] : memref<16x32xf32, #tpu.memory_space<vmem>>, vector<1x32xf32>
      %c14 = arith.constant 14 : index
      %c0_64 = arith.constant 0 : index
      %182 = vector.load %arg4[%c14, %c0_64] : memref<16x32xf32, #tpu.memory_space<vmem>>, vector<1x32xf32>
      %183 = vector.shape_cast %178 : vector<1x32xf32> to vector<1x1x32xf32>
      %184 = vector.broadcast %183 : vector<1x1x32xf32> to vector<1x8x32xf32>
      %185 = arith.mulf %20, %184 : vector<1x8x32xf32>
      %cst_65 = arith.constant dense<0.000000e+00> : vector<1x8xf32>
      %186 = vector.multi_reduction <add>, %185, %cst_65 [2] : vector<1x8x32xf32> to vector<1x8xf32>
      %187 = vector.shape_cast %186 : vector<1x8xf32> to vector<1x8x1xf32>
      %cst_66 = arith.constant 3.200000e+01 : f32
      %188 = vector.broadcast %cst_66 : f32 to vector<1x8x1xf32>
      %189 = arith.divf %187, %188 : vector<1x8x1xf32>
      %190 = vector.broadcast %189 : vector<1x8x1xf32> to vector<1x8x32xf32>
      %191 = arith.subf %185, %190 : vector<1x8x32xf32>
      %192 = arith.mulf %191, %191 : vector<1x8x32xf32>
      %cst_67 = arith.constant dense<0.000000e+00> : vector<1x8xf32>
      %193 = vector.multi_reduction <add>, %192, %cst_67 [2] : vector<1x8x32xf32> to vector<1x8xf32>
      %194 = vector.shape_cast %193 : vector<1x8xf32> to vector<1x8x1xf32>
      %cst_68 = arith.constant 3.200000e+01 : f32
      %195 = vector.broadcast %cst_68 : f32 to vector<1x8x1xf32>
      %196 = arith.divf %194, %195 : vector<1x8x1xf32>
      %197 = vector.broadcast %189 : vector<1x8x1xf32> to vector<1x8x32xf32>
      %198 = arith.subf %185, %197 : vector<1x8x32xf32>
      %cst_69 = arith.constant 9.99999993E-9 : f32
      %199 = vector.broadcast %cst_69 : f32 to vector<1x8x1xf32>
      %200 = arith.addf %196, %199 : vector<1x8x1xf32>
      %201 = math.rsqrt %200 : vector<1x8x1xf32>
      %202 = vector.broadcast %201 : vector<1x8x1xf32> to vector<1x8x32xf32>
      %203 = arith.mulf %198, %202 : vector<1x8x32xf32>
      %204 = vector.shape_cast %180 : vector<1x32xf32> to vector<1x1x32xf32>
      %205 = vector.broadcast %204 : vector<1x1x32xf32> to vector<1x8x32xf32>
      %206 = arith.mulf %203, %205 : vector<1x8x32xf32>
      %207 = vector.shape_cast %181 : vector<1x32xf32> to vector<1x1x32xf32>
      %208 = vector.broadcast %207 : vector<1x1x32xf32> to vector<1x8x32xf32>
      %209 = arith.addf %206, %208 : vector<1x8x32xf32>
      %210 = vector.shape_cast %182 : vector<1x32xf32> to vector<1x1x32xf32>
      %211 = vector.broadcast %210 : vector<1x1x32xf32> to vector<1x8x32xf32>
      %212 = arith.mulf %209, %211 : vector<1x8x32xf32>
      %213 = vector.shape_cast %179 : vector<1x32xf32> to vector<1x1x32xf32>
      %214 = vector.broadcast %213 : vector<1x1x32xf32> to vector<1x8x32xf32>
      %215 = arith.mulf %20, %214 : vector<1x8x32xf32>
      %cst_70 = arith.constant dense<0.000000e+00> : vector<1x8xf32>
      %216 = vector.multi_reduction <add>, %215, %cst_70 [2] : vector<1x8x32xf32> to vector<1x8xf32>
      %217 = vector.shape_cast %216 : vector<1x8xf32> to vector<1x8x1xf32>
      %cst_71 = arith.constant 3.200000e+01 : f32
      %218 = vector.broadcast %cst_71 : f32 to vector<1x8x1xf32>
      %219 = arith.divf %217, %218 : vector<1x8x1xf32>
      %220 = vector.broadcast %219 : vector<1x8x1xf32> to vector<1x8x32xf32>
      %221 = arith.subf %215, %220 : vector<1x8x32xf32>
      %222 = arith.mulf %221, %221 : vector<1x8x32xf32>
      %cst_72 = arith.constant dense<0.000000e+00> : vector<1x8xf32>
      %223 = vector.multi_reduction <add>, %222, %cst_72 [2] : vector<1x8x32xf32> to vector<1x8xf32>
      %224 = vector.shape_cast %223 : vector<1x8xf32> to vector<1x8x1xf32>
      %cst_73 = arith.constant 3.200000e+01 : f32
      %225 = vector.broadcast %cst_73 : f32 to vector<1x8x1xf32>
      %226 = arith.divf %224, %225 : vector<1x8x1xf32>
      %227 = vector.broadcast %219 : vector<1x8x1xf32> to vector<1x8x32xf32>
      %228 = arith.subf %215, %227 : vector<1x8x32xf32>
      %cst_74 = arith.constant 9.99999993E-9 : f32
      %229 = vector.broadcast %cst_74 : f32 to vector<1x8x1xf32>
      %230 = arith.addf %226, %229 : vector<1x8x1xf32>
      %231 = math.rsqrt %230 : vector<1x8x1xf32>
      %232 = vector.broadcast %231 : vector<1x8x1xf32> to vector<1x8x32xf32>
      %233 = arith.mulf %228, %232 : vector<1x8x32xf32>
      %234 = vector.shape_cast %180 : vector<1x32xf32> to vector<1x1x32xf32>
      %235 = vector.broadcast %234 : vector<1x1x32xf32> to vector<1x8x32xf32>
      %236 = arith.mulf %233, %235 : vector<1x8x32xf32>
      %237 = vector.shape_cast %181 : vector<1x32xf32> to vector<1x1x32xf32>
      %238 = vector.broadcast %237 : vector<1x1x32xf32> to vector<1x8x32xf32>
      %239 = arith.addf %236, %238 : vector<1x8x32xf32>
      %240 = vector.shape_cast %182 : vector<1x32xf32> to vector<1x1x32xf32>
      %241 = vector.broadcast %240 : vector<1x1x32xf32> to vector<1x8x32xf32>
      %242 = arith.mulf %239, %241 : vector<1x8x32xf32>
      %cst_75 = arith.constant -5.000000e-01 : f32
      %243 = vector.broadcast %cst_75 : f32 to vector<1x8x32xf32>
      %244 = arith.mulf %212, %243 : vector<1x8x32xf32>
      %245 = arith.addf %171, %244 : vector<1x8x32xf32>
      %cst_76 = arith.constant -0.866025388 : f32
      %246 = vector.broadcast %cst_76 : f32 to vector<1x8x32xf32>
      %247 = arith.mulf %242, %246 : vector<1x8x32xf32>
      %248 = arith.subf %245, %247 : vector<1x8x32xf32>
      %cst_77 = arith.constant -0.866025388 : f32
      %249 = vector.broadcast %cst_77 : f32 to vector<1x8x32xf32>
      %250 = arith.mulf %212, %249 : vector<1x8x32xf32>
      %251 = arith.addf %177, %250 : vector<1x8x32xf32>
      %cst_78 = arith.constant -5.000000e-01 : f32
      %252 = vector.broadcast %cst_78 : f32 to vector<1x8x32xf32>
      %253 = arith.mulf %242, %252 : vector<1x8x32xf32>
      %254 = arith.addf %251, %253 : vector<1x8x32xf32>
      %255 = arith.mulf %248, %248 : vector<1x8x32xf32>
      %256 = arith.mulf %254, %254 : vector<1x8x32xf32>
      %257 = arith.addf %255, %256 : vector<1x8x32xf32>
      %cst_79 = arith.constant 9.99999993E-9 : f32
      %258 = vector.broadcast %cst_79 : f32 to vector<1x8x32xf32>
      %259 = arith.addf %257, %258 : vector<1x8x32xf32>
      %260 = math.sqrt %259 : vector<1x8x32xf32>
      %cst_80 = arith.constant 1.000000e-01 : f32
      %261 = vector.broadcast %cst_80 : f32 to vector<1x8x32xf32>
      %262 = arith.cmpf olt, %260, %261 : vector<1x8x32xf32>
      %263 = arith.extui %262 : vector<1x8x32xi1> to vector<1x8x32xi32>
      %264 = arith.sitofp %263 : vector<1x8x32xi32> to vector<1x8x32xf32>
      %c15 = arith.constant 15 : index
      %c0_81 = arith.constant 0 : index
      %265 = vector.load %arg4[%c15, %c0_81] : memref<16x32xf32, #tpu.memory_space<vmem>>, vector<1x32xf32>
      %266 = vector.shape_cast %265 : vector<1x32xf32> to vector<1x1x32xf32>
      %267 = vector.broadcast %266 : vector<1x1x32xf32> to vector<1x8x32xf32>
      %268 = arith.mulf %264, %267 : vector<1x8x32xf32>
      %269 = arith.addf %248, %268 : vector<1x8x32xf32>
      %270 = vector.shape_cast %265 : vector<1x32xf32> to vector<1x1x32xf32>
      %271 = vector.broadcast %270 : vector<1x1x32xf32> to vector<1x8x32xf32>
      %272 = arith.mulf %264, %271 : vector<1x8x32xf32>
      %273 = arith.addf %254, %272 : vector<1x8x32xf32>
      %274 = arith.mulf %269, %269 : vector<1x8x32xf32>
      %275 = arith.mulf %273, %273 : vector<1x8x32xf32>
      %276 = arith.addf %274, %275 : vector<1x8x32xf32>
      %cst_82 = arith.constant 9.99999993E-9 : f32
      %277 = vector.broadcast %cst_82 : f32 to vector<1x8x32xf32>
      %278 = arith.addf %276, %277 : vector<1x8x32xf32>
      %279 = math.rsqrt %278 : vector<1x8x32xf32>
      %280 = arith.mulf %269, %279 : vector<1x8x32xf32>
      %cst_83 = arith.constant -1.000000e+00 : f32
      %cst_84 = arith.constant 1.000000e+00 : f32
      %281 = vector.broadcast %cst_83 : f32 to vector<1x8x32xf32>
      %282 = arith.maximumf %281, %280 : vector<1x8x32xf32>
      %283 = vector.broadcast %cst_84 : f32 to vector<1x8x32xf32>
      %284 = arith.minimumf %283, %282 : vector<1x8x32xf32>
      %285 = arith.mulf %273, %279 : vector<1x8x32xf32>
      %cst_85 = arith.constant -1.000000e+00 : f32
      %cst_86 = arith.constant 1.000000e+00 : f32
      %286 = vector.broadcast %cst_85 : f32 to vector<1x8x32xf32>
      %287 = arith.maximumf %286, %285 : vector<1x8x32xf32>
      %288 = vector.broadcast %cst_86 : f32 to vector<1x8x32xf32>
      %289 = arith.minimumf %288, %287 : vector<1x8x32xf32>
      %c0_87 = arith.constant 0 : index
      %c0_88 = arith.constant 0 : index
      %290 = vector.load %arg5[%c0_87, %c0_88] : memref<30x32xf32, #tpu.memory_space<vmem>>, vector<1x32xf32>
      %c1_89 = arith.constant 1 : index
      %c0_90 = arith.constant 0 : index
      %291 = vector.load %arg5[%c1_89, %c0_90] : memref<30x32xf32, #tpu.memory_space<vmem>>, vector<1x32xf32>
      %c2_91 = arith.constant 2 : index
      %c0_92 = arith.constant 0 : index
      %292 = vector.load %arg5[%c2_91, %c0_92] : memref<30x32xf32, #tpu.memory_space<vmem>>, vector<1x32xf32>
      %c3_93 = arith.constant 3 : index
      %c0_94 = arith.constant 0 : index
      %293 = vector.load %arg5[%c3_93, %c0_94] : memref<30x32xf32, #tpu.memory_space<vmem>>, vector<1x32xf32>
      %c4_95 = arith.constant 4 : index
      %c0_96 = arith.constant 0 : index
      %294 = vector.load %arg5[%c4_95, %c0_96] : memref<30x32xf32, #tpu.memory_space<vmem>>, vector<1x32xf32>
      %c5_97 = arith.constant 5 : index
      %c0_98 = arith.constant 0 : index
      %295 = vector.load %arg5[%c5_97, %c0_98] : memref<30x32xf32, #tpu.memory_space<vmem>>, vector<1x32xf32>
      %c6_99 = arith.constant 6 : index
      %c0_100 = arith.constant 0 : index
      %296 = vector.load %arg5[%c6_99, %c0_100] : memref<30x32xf32, #tpu.memory_space<vmem>>, vector<1x32xf32>
      %c7_101 = arith.constant 7 : index
      %c0_102 = arith.constant 0 : index
      %297 = vector.load %arg5[%c7_101, %c0_102] : memref<30x32xf32, #tpu.memory_space<vmem>>, vector<1x32xf32>
      %c8_103 = arith.constant 8 : index
      %c0_104 = arith.constant 0 : index
      %298 = vector.load %arg5[%c8_103, %c0_104] : memref<30x32xf32, #tpu.memory_space<vmem>>, vector<1x32xf32>
      %c9_105 = arith.constant 9 : index
      %c0_106 = arith.constant 0 : index
      %299 = vector.load %arg5[%c9_105, %c0_106] : memref<30x32xf32, #tpu.memory_space<vmem>>, vector<1x32xf32>
      %cst_107 = arith.constant dense<0.000000e+00> : vector<1x8xf32>
      %300 = vector.multi_reduction <add>, %284, %cst_107 [2] : vector<1x8x32xf32> to vector<1x8xf32>
      %301 = vector.shape_cast %300 : vector<1x8xf32> to vector<1x8x1xf32>
      %cst_108 = arith.constant 3.200000e+01 : f32
      %302 = vector.broadcast %cst_108 : f32 to vector<1x8x1xf32>
      %303 = arith.divf %301, %302 : vector<1x8x1xf32>
      %304 = vector.broadcast %303 : vector<1x8x1xf32> to vector<1x8x32xf32>
      %305 = arith.subf %284, %304 : vector<1x8x32xf32>
      %306 = arith.mulf %305, %305 : vector<1x8x32xf32>
      %cst_109 = arith.constant dense<0.000000e+00> : vector<1x8xf32>
      %307 = vector.multi_reduction <add>, %306, %cst_109 [2] : vector<1x8x32xf32> to vector<1x8xf32>
      %308 = vector.shape_cast %307 : vector<1x8xf32> to vector<1x8x1xf32>
      %cst_110 = arith.constant 3.200000e+01 : f32
      %309 = vector.broadcast %cst_110 : f32 to vector<1x8x1xf32>
      %310 = arith.divf %308, %309 : vector<1x8x1xf32>
      %311 = vector.broadcast %303 : vector<1x8x1xf32> to vector<1x8x32xf32>
      %312 = arith.subf %284, %311 : vector<1x8x32xf32>
      %cst_111 = arith.constant 9.99999974E-6 : f32
      %313 = vector.broadcast %cst_111 : f32 to vector<1x8x1xf32>
      %314 = arith.addf %310, %313 : vector<1x8x1xf32>
      %315 = math.rsqrt %314 : vector<1x8x1xf32>
      %316 = vector.broadcast %315 : vector<1x8x1xf32> to vector<1x8x32xf32>
      %317 = arith.mulf %312, %316 : vector<1x8x32xf32>
      %cst_112 = arith.constant dense<0.000000e+00> : vector<1x8xf32>
      %318 = vector.multi_reduction <add>, %289, %cst_112 [2] : vector<1x8x32xf32> to vector<1x8xf32>
      %319 = vector.shape_cast %318 : vector<1x8xf32> to vector<1x8x1xf32>
      %cst_113 = arith.constant 3.200000e+01 : f32
      %320 = vector.broadcast %cst_113 : f32 to vector<1x8x1xf32>
      %321 = arith.divf %319, %320 : vector<1x8x1xf32>
      %322 = vector.broadcast %321 : vector<1x8x1xf32> to vector<1x8x32xf32>
      %323 = arith.subf %289, %322 : vector<1x8x32xf32>
      %324 = arith.mulf %323, %323 : vector<1x8x32xf32>
      %cst_114 = arith.constant dense<0.000000e+00> : vector<1x8xf32>
      %325 = vector.multi_reduction <add>, %324, %cst_114 [2] : vector<1x8x32xf32> to vector<1x8xf32>
      %326 = vector.shape_cast %325 : vector<1x8xf32> to vector<1x8x1xf32>
      %cst_115 = arith.constant 3.200000e+01 : f32
      %327 = vector.broadcast %cst_115 : f32 to vector<1x8x1xf32>
      %328 = arith.divf %326, %327 : vector<1x8x1xf32>
      %329 = vector.broadcast %321 : vector<1x8x1xf32> to vector<1x8x32xf32>
      %330 = arith.subf %289, %329 : vector<1x8x32xf32>
      %cst_116 = arith.constant 9.99999974E-6 : f32
      %331 = vector.broadcast %cst_116 : f32 to vector<1x8x1xf32>
      %332 = arith.addf %328, %331 : vector<1x8x1xf32>
      %333 = math.rsqrt %332 : vector<1x8x1xf32>
      %334 = vector.broadcast %333 : vector<1x8x1xf32> to vector<1x8x32xf32>
      %335 = arith.mulf %330, %334 : vector<1x8x32xf32>
      %336 = vector.shape_cast %290 : vector<1x32xf32> to vector<1x1x32xf32>
      %337 = vector.broadcast %336 : vector<1x1x32xf32> to vector<1x8x32xf32>
      %338 = arith.mulf %317, %337 : vector<1x8x32xf32>
      %339 = vector.shape_cast %291 : vector<1x32xf32> to vector<1x1x32xf32>
      %340 = vector.broadcast %339 : vector<1x1x32xf32> to vector<1x8x32xf32>
      %341 = arith.addf %338, %340 : vector<1x8x32xf32>
      %342 = vector.shape_cast %290 : vector<1x32xf32> to vector<1x1x32xf32>
      %343 = vector.broadcast %342 : vector<1x1x32xf32> to vector<1x8x32xf32>
      %344 = arith.mulf %335, %343 : vector<1x8x32xf32>
      %345 = vector.shape_cast %291 : vector<1x32xf32> to vector<1x1x32xf32>
      %346 = vector.broadcast %345 : vector<1x1x32xf32> to vector<1x8x32xf32>
      %347 = arith.addf %344, %346 : vector<1x8x32xf32>
      %348 = vector.shape_cast %292 : vector<1x32xf32> to vector<1x1x32xf32>
      %349 = vector.broadcast %348 : vector<1x1x32xf32> to vector<1x8x32xf32>
      %350 = arith.mulf %317, %349 : vector<1x8x32xf32>
      %351 = vector.shape_cast %293 : vector<1x32xf32> to vector<1x1x32xf32>
      %352 = vector.broadcast %351 : vector<1x1x32xf32> to vector<1x8x32xf32>
      %353 = arith.addf %350, %352 : vector<1x8x32xf32>
      %354 = vector.shape_cast %292 : vector<1x32xf32> to vector<1x1x32xf32>
      %355 = vector.broadcast %354 : vector<1x1x32xf32> to vector<1x8x32xf32>
      %356 = arith.mulf %335, %355 : vector<1x8x32xf32>
      %357 = vector.shape_cast %293 : vector<1x32xf32> to vector<1x1x32xf32>
      %358 = vector.broadcast %357 : vector<1x1x32xf32> to vector<1x8x32xf32>
      %359 = arith.addf %356, %358 : vector<1x8x32xf32>
      %360 = vector.shape_cast %294 : vector<1x32xf32> to vector<1x1x32xf32>
      %361 = vector.broadcast %360 : vector<1x1x32xf32> to vector<1x8x32xf32>
      %362 = arith.mulf %317, %361 : vector<1x8x32xf32>
      %363 = vector.shape_cast %295 : vector<1x32xf32> to vector<1x1x32xf32>
      %364 = vector.broadcast %363 : vector<1x1x32xf32> to vector<1x8x32xf32>
      %365 = arith.addf %362, %364 : vector<1x8x32xf32>
      %366 = vector.shape_cast %294 : vector<1x32xf32> to vector<1x1x32xf32>
      %367 = vector.broadcast %366 : vector<1x1x32xf32> to vector<1x8x32xf32>
      %368 = arith.mulf %335, %367 : vector<1x8x32xf32>
      %369 = vector.shape_cast %295 : vector<1x32xf32> to vector<1x1x32xf32>
      %370 = vector.broadcast %369 : vector<1x1x32xf32> to vector<1x8x32xf32>
      %371 = arith.addf %368, %370 : vector<1x8x32xf32>
      %cst_117 = arith.constant 9.99999993E-9 : f32
      %372 = vector.broadcast %cst_117 : f32 to vector<1x8x32xf32>
      %373 = arith.addf %341, %372 : vector<1x8x32xf32>
      %cst_118 = arith.constant 9.99999993E-9 : f32
      %374 = vector.broadcast %cst_118 : f32 to vector<1x8x32xf32>
      %375 = arith.addf %347, %374 : vector<1x8x32xf32>
      %376 = arith.mulf %373, %373 : vector<1x8x32xf32>
      %377 = arith.mulf %375, %375 : vector<1x8x32xf32>
      %378 = arith.addf %376, %377 : vector<1x8x32xf32>
      %379 = math.rsqrt %378 : vector<1x8x32xf32>
      %380 = arith.mulf %373, %379 : vector<1x8x32xf32>
      %381 = arith.mulf %375, %379 : vector<1x8x32xf32>
      %cst_119 = arith.constant 9.99999993E-9 : f32
      %382 = vector.broadcast %cst_119 : f32 to vector<1x8x32xf32>
      %383 = arith.addf %353, %382 : vector<1x8x32xf32>
      %cst_120 = arith.constant 9.99999993E-9 : f32
      %384 = vector.broadcast %cst_120 : f32 to vector<1x8x32xf32>
      %385 = arith.addf %359, %384 : vector<1x8x32xf32>
      %386 = arith.mulf %383, %383 : vector<1x8x32xf32>
      %387 = arith.mulf %385, %385 : vector<1x8x32xf32>
      %388 = arith.addf %386, %387 : vector<1x8x32xf32>
      %389 = math.rsqrt %388 : vector<1x8x32xf32>
      %390 = arith.mulf %383, %389 : vector<1x8x32xf32>
      %391 = arith.mulf %385, %389 : vector<1x8x32xf32>
      %392 = vector.shape_cast %296 : vector<1x32xf32> to vector<1x1x32xf32>
      %393 = vector.broadcast %392 : vector<1x1x32xf32> to vector<1x8x32xf32>
      %394 = arith.mulf %380, %393 : vector<1x8x32xf32>
      "tpu.trace_start"() <{level = 10 : i32, message = "bqd,bkd->bqk"}> : () -> ()
      %cst_121 = arith.constant dense<0.000000e+00> : vector<1x8x8xf32>
      %395 = tpu.matmul %394, %390, %cst_121 {dimension_numbers = #tpu.dot_dimension_numbers<[2], [2], [1], [1], [0, 0, 0, 1, 1, 1], [0], [0]>} : vector<1x8x32xf32>, vector<1x8x32xf32>, vector<1x8x8xf32> -> vector<1x8x8xf32>
      "tpu.trace_stop"() : () -> ()
      %396 = vector.shape_cast %296 : vector<1x32xf32> to vector<1x1x32xf32>
      %397 = vector.broadcast %396 : vector<1x1x32xf32> to vector<1x8x32xf32>
      %398 = arith.mulf %381, %397 : vector<1x8x32xf32>
      "tpu.trace_start"() <{level = 10 : i32, message = "bqd,bkd->bqk"}> : () -> ()
      %cst_122 = arith.constant dense<0.000000e+00> : vector<1x8x8xf32>
      %399 = tpu.matmul %398, %391, %cst_122 {dimension_numbers = #tpu.dot_dimension_numbers<[2], [2], [1], [1], [0, 0, 0, 1, 1, 1], [0], [0]>} : vector<1x8x32xf32>, vector<1x8x32xf32>, vector<1x8x8xf32> -> vector<1x8x8xf32>
      "tpu.trace_stop"() : () -> ()
      %400 = arith.addf %395, %399 : vector<1x8x8xf32>
      %cst_123 = arith.constant 5.000000e-01 : f32
      %401 = vector.broadcast %cst_123 : f32 to vector<1x1x8xf32>
      %402 = arith.cmpf ogt, %21, %401 : vector<1x1x8xf32>
      %cst_124 = arith.constant -1.000000e+30 : f32
      %403 = vector.shape_cast %402 : vector<1x1x8xi1> to vector<1x1x8xi1>
      %404 = vector.broadcast %403 : vector<1x1x8xi1> to vector<1x8x8xi1>
      %405 = vector.broadcast %cst_124 : f32 to vector<1x8x8xf32>
      %406 = arith.select %404, %405, %400 : vector<1x8x8xi1>, vector<1x8x8xf32>
      %cst_125 = arith.constant dense<0xFF800000> : vector<1x8xf32>
      %407 = vector.multi_reduction <maximumf>, %406, %cst_125 [2] : vector<1x8x8xf32> to vector<1x8xf32>
      %408 = vector.shape_cast %407 : vector<1x8xf32> to vector<1x8x1xf32>
      %409 = vector.broadcast %408 : vector<1x8x1xf32> to vector<1x8x8xf32>
      %410 = arith.subf %406, %409 : vector<1x8x8xf32>
      %411 = math.exp %410 : vector<1x8x8xf32>
      %cst_126 = arith.constant dense<0.000000e+00> : vector<1x8xf32>
      %412 = vector.multi_reduction <add>, %411, %cst_126 [2] : vector<1x8x8xf32> to vector<1x8xf32>
      %413 = vector.shape_cast %412 : vector<1x8xf32> to vector<1x8x1xf32>
      %414 = tpu.reciprocal %413 {approx = true} : vector<1x8x1xf32> -> vector<1x8x1xf32>
      %415 = vector.broadcast %414 : vector<1x8x1xf32> to vector<1x8x8xf32>
      %416 = arith.mulf %411, %415 : vector<1x8x8xf32>
      %cst_127 = arith.constant 9.99999997E-7 : f32
      %cst_128 = arith.constant 1.000000e+00 : f32
      %417 = vector.broadcast %cst_127 : f32 to vector<1x8x8xf32>
      %418 = arith.maximumf %417, %416 : vector<1x8x8xf32>
      %419 = vector.broadcast %cst_128 : f32 to vector<1x8x8xf32>
      %420 = arith.minimumf %419, %418 : vector<1x8x8xf32>
      "tpu.trace_start"() <{level = 10 : i32, message = "bqk,bkd->bqd"}> : () -> ()
      %cst_129 = arith.constant dense<0.000000e+00> : vector<1x8x32xf32>
      %421 = tpu.matmul %420, %365, %cst_129 {dimension_numbers = #tpu.dot_dimension_numbers<[2], [1], [1], [2], [0, 0, 0, 1, 1, 2], [0], [0]>} : vector<1x8x8xf32>, vector<1x8x32xf32>, vector<1x8x32xf32> -> vector<1x8x32xf32>
      %cst_130 = arith.constant dense<0.000000e+00> : vector<1x8x32xf32>
      %422 = tpu.matmul %420, %371, %cst_130 {dimension_numbers = #tpu.dot_dimension_numbers<[2], [1], [1], [2], [0, 0, 0, 1, 1, 2], [0], [0]>} : vector<1x8x8xf32>, vector<1x8x32xf32>, vector<1x8x32xf32> -> vector<1x8x32xf32>
      "tpu.trace_stop"() : () -> ()
      %cst_131 = arith.constant dense<0.000000e+00> : vector<1x32xf32>
      %423 = vector.multi_reduction <add>, %390, %cst_131 [1] : vector<1x8x32xf32> to vector<1x32xf32>
      %424 = vector.shape_cast %423 : vector<1x32xf32> to vector<1x1x32xf32>
      %cst_132 = arith.constant dense<0.000000e+00> : vector<1x32xf32>
      %425 = vector.multi_reduction <add>, %391, %cst_132 [1] : vector<1x8x32xf32> to vector<1x32xf32>
      %426 = vector.shape_cast %425 : vector<1x32xf32> to vector<1x1x32xf32>
      %427 = vector.broadcast %424 : vector<1x1x32xf32> to vector<1x8x32xf32>
      %428 = arith.mulf %380, %427 : vector<1x8x32xf32>
      %cst_133 = arith.constant dense<0.000000e+00> : vector<1x8xf32>
      %429 = vector.multi_reduction <add>, %428, %cst_133 [2] : vector<1x8x32xf32> to vector<1x8xf32>
      %430 = vector.shape_cast %429 : vector<1x8xf32> to vector<1x8x1xf32>
      %431 = vector.broadcast %426 : vector<1x1x32xf32> to vector<1x8x32xf32>
      %432 = arith.mulf %381, %431 : vector<1x8x32xf32>
      %cst_134 = arith.constant dense<0.000000e+00> : vector<1x8xf32>
      %433 = vector.multi_reduction <add>, %432, %cst_134 [2] : vector<1x8x32xf32> to vector<1x8xf32>
      %434 = vector.shape_cast %433 : vector<1x8xf32> to vector<1x8x1xf32>
      %435 = arith.addf %430, %434 : vector<1x8x1xf32>
      %cst_135 = arith.constant 3.906250e-03 : f32
      %436 = vector.broadcast %cst_135 : f32 to vector<1x8x1xf32>
      %437 = arith.mulf %435, %436 : vector<1x8x1xf32>
      %438 = vector.shape_cast %297 : vector<1x32xf32> to vector<1x1x32xf32>
      %439 = vector.broadcast %438 : vector<1x1x32xf32> to vector<1x8x32xf32>
      %440 = vector.broadcast %437 : vector<1x8x1xf32> to vector<1x8x32xf32>
      %441 = arith.mulf %439, %440 : vector<1x8x32xf32>
      %cst_136 = arith.constant 9.99999993E-9 : f32
      %442 = vector.broadcast %cst_136 : f32 to vector<1x8x32xf32>
      %443 = arith.addf %422, %442 : vector<1x8x32xf32>
      %cst_137 = arith.constant 9.99999993E-9 : f32
      %444 = vector.broadcast %cst_137 : f32 to vector<1x8x32xf32>
      %445 = arith.addf %421, %444 : vector<1x8x32xf32>
      %446 = math.atan2 %443, %445 : vector<1x8x32xf32>
      %447 = arith.mulf %446, %441 : vector<1x8x32xf32>
      %448 = math.cos %447 : vector<1x8x32xf32>
      %449 = arith.mulf %421, %448 : vector<1x8x32xf32>
      %cst_138 = arith.constant 0.00999999977 : f32
      %450 = vector.broadcast %cst_138 : f32 to vector<1x8x32xf32>
      %451 = arith.mulf %449, %450 : vector<1x8x32xf32>
      %452 = arith.addf %284, %451 : vector<1x8x32xf32>
      %cst_139 = arith.constant dense<0.000000e+00> : vector<1x8xf32>
      %453 = vector.multi_reduction <add>, %452, %cst_139 [2] : vector<1x8x32xf32> to vector<1x8xf32>
      %454 = vector.shape_cast %453 : vector<1x8xf32> to vector<1x8x1xf32>
      %cst_140 = arith.constant 3.200000e+01 : f32
      %455 = vector.broadcast %cst_140 : f32 to vector<1x8x1xf32>
      %456 = arith.divf %454, %455 : vector<1x8x1xf32>
      %457 = vector.broadcast %456 : vector<1x8x1xf32> to vector<1x8x32xf32>
      %458 = arith.subf %452, %457 : vector<1x8x32xf32>
      %459 = arith.mulf %458, %458 : vector<1x8x32xf32>
      %cst_141 = arith.constant dense<0.000000e+00> : vector<1x8xf32>
      %460 = vector.multi_reduction <add>, %459, %cst_141 [2] : vector<1x8x32xf32> to vector<1x8xf32>
      %461 = vector.shape_cast %460 : vector<1x8xf32> to vector<1x8x1xf32>
      %cst_142 = arith.constant 3.200000e+01 : f32
      %462 = vector.broadcast %cst_142 : f32 to vector<1x8x1xf32>
      %463 = arith.divf %461, %462 : vector<1x8x1xf32>
      %464 = vector.broadcast %456 : vector<1x8x1xf32> to vector<1x8x32xf32>
      %465 = arith.subf %452, %464 : vector<1x8x32xf32>
      %cst_143 = arith.constant 9.99999993E-9 : f32
      %466 = vector.broadcast %cst_143 : f32 to vector<1x8x1xf32>
      %467 = arith.addf %463, %466 : vector<1x8x1xf32>
      %468 = math.rsqrt %467 : vector<1x8x1xf32>
      %469 = vector.broadcast %468 : vector<1x8x1xf32> to vector<1x8x32xf32>
      %470 = arith.mulf %465, %469 : vector<1x8x32xf32>
      %471 = vector.shape_cast %298 : vector<1x32xf32> to vector<1x1x32xf32>
      %472 = vector.broadcast %471 : vector<1x1x32xf32> to vector<1x8x32xf32>
      %473 = arith.mulf %470, %472 : vector<1x8x32xf32>
      %474 = vector.shape_cast %299 : vector<1x32xf32> to vector<1x1x32xf32>
      %475 = vector.broadcast %474 : vector<1x1x32xf32> to vector<1x8x32xf32>
      %476 = arith.addf %473, %475 : vector<1x8x32xf32>
      %cst_144 = arith.constant -1.000000e+00 : f32
      %cst_145 = arith.constant 1.000000e+00 : f32
      %477 = vector.broadcast %cst_144 : f32 to vector<1x8x32xf32>
      %478 = arith.maximumf %477, %476 : vector<1x8x32xf32>
      %479 = vector.broadcast %cst_145 : f32 to vector<1x8x32xf32>
      %480 = arith.minimumf %479, %478 : vector<1x8x32xf32>
      %c10_146 = arith.constant 10 : index
      %c0_147 = arith.constant 0 : index
      %481 = vector.load %arg5[%c10_146, %c0_147] : memref<30x32xf32, #tpu.memory_space<vmem>>, vector<1x32xf32>
      %c11_148 = arith.constant 11 : index
      %c0_149 = arith.constant 0 : index
      %482 = vector.load %arg5[%c11_148, %c0_149] : memref<30x32xf32, #tpu.memory_space<vmem>>, vector<1x32xf32>
      %c12_150 = arith.constant 12 : index
      %c0_151 = arith.constant 0 : index
      %483 = vector.load %arg5[%c12_150, %c0_151] : memref<30x32xf32, #tpu.memory_space<vmem>>, vector<1x32xf32>
      %c13_152 = arith.constant 13 : index
      %c0_153 = arith.constant 0 : index
      %484 = vector.load %arg5[%c13_152, %c0_153] : memref<30x32xf32, #tpu.memory_space<vmem>>, vector<1x32xf32>
      %c14_154 = arith.constant 14 : index
      %c0_155 = arith.constant 0 : index
      %485 = vector.load %arg5[%c14_154, %c0_155] : memref<30x32xf32, #tpu.memory_space<vmem>>, vector<1x32xf32>
      %c15_156 = arith.constant 15 : index
      %c0_157 = arith.constant 0 : index
      %486 = vector.load %arg5[%c15_156, %c0_157] : memref<30x32xf32, #tpu.memory_space<vmem>>, vector<1x32xf32>
      %c16 = arith.constant 16 : index
      %c0_158 = arith.constant 0 : index
      %487 = vector.load %arg5[%c16, %c0_158] : memref<30x32xf32, #tpu.memory_space<vmem>>, vector<1x32xf32>
      %c17 = arith.constant 17 : index
      %c0_159 = arith.constant 0 : index
      %488 = vector.load %arg5[%c17, %c0_159] : memref<30x32xf32, #tpu.memory_space<vmem>>, vector<1x32xf32>
      %c18 = arith.constant 18 : index
      %c0_160 = arith.constant 0 : index
      %489 = vector.load %arg5[%c18, %c0_160] : memref<30x32xf32, #tpu.memory_space<vmem>>, vector<1x32xf32>
      %c19 = arith.constant 19 : index
      %c0_161 = arith.constant 0 : index
      %490 = vector.load %arg5[%c19, %c0_161] : memref<30x32xf32, #tpu.memory_space<vmem>>, vector<1x32xf32>
      %cst_162 = arith.constant dense<0.000000e+00> : vector<1x8xf32>
      %491 = vector.multi_reduction <add>, %480, %cst_162 [2] : vector<1x8x32xf32> to vector<1x8xf32>
      %492 = vector.shape_cast %491 : vector<1x8xf32> to vector<1x8x1xf32>
      %cst_163 = arith.constant 3.200000e+01 : f32
      %493 = vector.broadcast %cst_163 : f32 to vector<1x8x1xf32>
      %494 = arith.divf %492, %493 : vector<1x8x1xf32>
      %495 = vector.broadcast %494 : vector<1x8x1xf32> to vector<1x8x32xf32>
      %496 = arith.subf %480, %495 : vector<1x8x32xf32>
      %497 = arith.mulf %496, %496 : vector<1x8x32xf32>
      %cst_164 = arith.constant dense<0.000000e+00> : vector<1x8xf32>
      %498 = vector.multi_reduction <add>, %497, %cst_164 [2] : vector<1x8x32xf32> to vector<1x8xf32>
      %499 = vector.shape_cast %498 : vector<1x8xf32> to vector<1x8x1xf32>
      %cst_165 = arith.constant 3.200000e+01 : f32
      %500 = vector.broadcast %cst_165 : f32 to vector<1x8x1xf32>
      %501 = arith.divf %499, %500 : vector<1x8x1xf32>
      %502 = vector.broadcast %494 : vector<1x8x1xf32> to vector<1x8x32xf32>
      %503 = arith.subf %480, %502 : vector<1x8x32xf32>
      %cst_166 = arith.constant 9.99999974E-6 : f32
      %504 = vector.broadcast %cst_166 : f32 to vector<1x8x1xf32>
      %505 = arith.addf %501, %504 : vector<1x8x1xf32>
      %506 = math.rsqrt %505 : vector<1x8x1xf32>
      %507 = vector.broadcast %506 : vector<1x8x1xf32> to vector<1x8x32xf32>
      %508 = arith.mulf %503, %507 : vector<1x8x32xf32>
      %cst_167 = arith.constant dense<0.000000e+00> : vector<1x8xf32>
      %509 = vector.multi_reduction <add>, %480, %cst_167 [2] : vector<1x8x32xf32> to vector<1x8xf32>
      %510 = vector.shape_cast %509 : vector<1x8xf32> to vector<1x8x1xf32>
      %cst_168 = arith.constant 3.200000e+01 : f32
      %511 = vector.broadcast %cst_168 : f32 to vector<1x8x1xf32>
      %512 = arith.divf %510, %511 : vector<1x8x1xf32>
      %513 = vector.broadcast %512 : vector<1x8x1xf32> to vector<1x8x32xf32>
      %514 = arith.subf %480, %513 : vector<1x8x32xf32>
      %515 = arith.mulf %514, %514 : vector<1x8x32xf32>
      %cst_169 = arith.constant dense<0.000000e+00> : vector<1x8xf32>
      %516 = vector.multi_reduction <add>, %515, %cst_169 [2] : vector<1x8x32xf32> to vector<1x8xf32>
      %517 = vector.shape_cast %516 : vector<1x8xf32> to vector<1x8x1xf32>
      %cst_170 = arith.constant 3.200000e+01 : f32
      %518 = vector.broadcast %cst_170 : f32 to vector<1x8x1xf32>
      %519 = arith.divf %517, %518 : vector<1x8x1xf32>
      %520 = vector.broadcast %512 : vector<1x8x1xf32> to vector<1x8x32xf32>
      %521 = arith.subf %480, %520 : vector<1x8x32xf32>
      %cst_171 = arith.constant 9.99999974E-6 : f32
      %522 = vector.broadcast %cst_171 : f32 to vector<1x8x1xf32>
      %523 = arith.addf %519, %522 : vector<1x8x1xf32>
      %524 = math.rsqrt %523 : vector<1x8x1xf32>
      %525 = vector.broadcast %524 : vector<1x8x1xf32> to vector<1x8x32xf32>
      %526 = arith.mulf %521, %525 : vector<1x8x32xf32>
      %527 = vector.shape_cast %481 : vector<1x32xf32> to vector<1x1x32xf32>
      %528 = vector.broadcast %527 : vector<1x1x32xf32> to vector<1x8x32xf32>
      %529 = arith.mulf %508, %528 : vector<1x8x32xf32>
      %530 = vector.shape_cast %482 : vector<1x32xf32> to vector<1x1x32xf32>
      %531 = vector.broadcast %530 : vector<1x1x32xf32> to vector<1x8x32xf32>
      %532 = arith.addf %529, %531 : vector<1x8x32xf32>
      %533 = vector.shape_cast %481 : vector<1x32xf32> to vector<1x1x32xf32>
      %534 = vector.broadcast %533 : vector<1x1x32xf32> to vector<1x8x32xf32>
      %535 = arith.mulf %526, %534 : vector<1x8x32xf32>
      %536 = vector.shape_cast %482 : vector<1x32xf32> to vector<1x1x32xf32>
      %537 = vector.broadcast %536 : vector<1x1x32xf32> to vector<1x8x32xf32>
      %538 = arith.addf %535, %537 : vector<1x8x32xf32>
      %539 = vector.shape_cast %483 : vector<1x32xf32> to vector<1x1x32xf32>
      %540 = vector.broadcast %539 : vector<1x1x32xf32> to vector<1x8x32xf32>
      %541 = arith.mulf %508, %540 : vector<1x8x32xf32>
      %542 = vector.shape_cast %484 : vector<1x32xf32> to vector<1x1x32xf32>
      %543 = vector.broadcast %542 : vector<1x1x32xf32> to vector<1x8x32xf32>
      %544 = arith.addf %541, %543 : vector<1x8x32xf32>
      %545 = vector.shape_cast %483 : vector<1x32xf32> to vector<1x1x32xf32>
      %546 = vector.broadcast %545 : vector<1x1x32xf32> to vector<1x8x32xf32>
      %547 = arith.mulf %526, %546 : vector<1x8x32xf32>
      %548 = vector.shape_cast %484 : vector<1x32xf32> to vector<1x1x32xf32>
      %549 = vector.broadcast %548 : vector<1x1x32xf32> to vector<1x8x32xf32>
      %550 = arith.addf %547, %549 : vector<1x8x32xf32>
      %551 = vector.shape_cast %485 : vector<1x32xf32> to vector<1x1x32xf32>
      %552 = vector.broadcast %551 : vector<1x1x32xf32> to vector<1x8x32xf32>
      %553 = arith.mulf %508, %552 : vector<1x8x32xf32>
      %554 = vector.shape_cast %486 : vector<1x32xf32> to vector<1x1x32xf32>
      %555 = vector.broadcast %554 : vector<1x1x32xf32> to vector<1x8x32xf32>
      %556 = arith.addf %553, %555 : vector<1x8x32xf32>
      %557 = vector.shape_cast %485 : vector<1x32xf32> to vector<1x1x32xf32>
      %558 = vector.broadcast %557 : vector<1x1x32xf32> to vector<1x8x32xf32>
      %559 = arith.mulf %526, %558 : vector<1x8x32xf32>
      %560 = vector.shape_cast %486 : vector<1x32xf32> to vector<1x1x32xf32>
      %561 = vector.broadcast %560 : vector<1x1x32xf32> to vector<1x8x32xf32>
      %562 = arith.addf %559, %561 : vector<1x8x32xf32>
      %cst_172 = arith.constant 9.99999993E-9 : f32
      %563 = vector.broadcast %cst_172 : f32 to vector<1x8x32xf32>
      %564 = arith.addf %532, %563 : vector<1x8x32xf32>
      %cst_173 = arith.constant 9.99999993E-9 : f32
      %565 = vector.broadcast %cst_173 : f32 to vector<1x8x32xf32>
      %566 = arith.addf %538, %565 : vector<1x8x32xf32>
      %567 = arith.mulf %564, %564 : vector<1x8x32xf32>
      %568 = arith.mulf %566, %566 : vector<1x8x32xf32>
      %569 = arith.addf %567, %568 : vector<1x8x32xf32>
      %570 = math.rsqrt %569 : vector<1x8x32xf32>
      %571 = arith.mulf %564, %570 : vector<1x8x32xf32>
      %572 = arith.mulf %566, %570 : vector<1x8x32xf32>
      %cst_174 = arith.constant 9.99999993E-9 : f32
      %573 = vector.broadcast %cst_174 : f32 to vector<1x8x32xf32>
      %574 = arith.addf %544, %573 : vector<1x8x32xf32>
      %cst_175 = arith.constant 9.99999993E-9 : f32
      %575 = vector.broadcast %cst_175 : f32 to vector<1x8x32xf32>
      %576 = arith.addf %550, %575 : vector<1x8x32xf32>
      %577 = arith.mulf %574, %574 : vector<1x8x32xf32>
      %578 = arith.mulf %576, %576 : vector<1x8x32xf32>
      %579 = arith.addf %577, %578 : vector<1x8x32xf32>
      %580 = math.rsqrt %579 : vector<1x8x32xf32>
      %581 = arith.mulf %574, %580 : vector<1x8x32xf32>
      %582 = arith.mulf %576, %580 : vector<1x8x32xf32>
      %583 = vector.shape_cast %487 : vector<1x32xf32> to vector<1x1x32xf32>
      %584 = vector.broadcast %583 : vector<1x1x32xf32> to vector<1x8x32xf32>
      %585 = arith.mulf %571, %584 : vector<1x8x32xf32>
      "tpu.trace_start"() <{level = 10 : i32, message = "bqd,bkd->bqk"}> : () -> ()
      %cst_176 = arith.constant dense<0.000000e+00> : vector<1x8x8xf32>
      %586 = tpu.matmul %585, %581, %cst_176 {dimension_numbers = #tpu.dot_dimension_numbers<[2], [2], [1], [1], [0, 0, 0, 1, 1, 1], [0], [0]>} : vector<1x8x32xf32>, vector<1x8x32xf32>, vector<1x8x8xf32> -> vector<1x8x8xf32>
      "tpu.trace_stop"() : () -> ()
      %587 = vector.shape_cast %487 : vector<1x32xf32> to vector<1x1x32xf32>
      %588 = vector.broadcast %587 : vector<1x1x32xf32> to vector<1x8x32xf32>
      %589 = arith.mulf %572, %588 : vector<1x8x32xf32>
      "tpu.trace_start"() <{level = 10 : i32, message = "bqd,bkd->bqk"}> : () -> ()
      %cst_177 = arith.constant dense<0.000000e+00> : vector<1x8x8xf32>
      %590 = tpu.matmul %589, %582, %cst_177 {dimension_numbers = #tpu.dot_dimension_numbers<[2], [2], [1], [1], [0, 0, 0, 1, 1, 1], [0], [0]>} : vector<1x8x32xf32>, vector<1x8x32xf32>, vector<1x8x8xf32> -> vector<1x8x8xf32>
      "tpu.trace_stop"() : () -> ()
      %591 = arith.addf %586, %590 : vector<1x8x8xf32>
      %cst_178 = arith.constant 5.000000e-01 : f32
      %592 = vector.broadcast %cst_178 : f32 to vector<1x1x8xf32>
      %593 = arith.cmpf ogt, %21, %592 : vector<1x1x8xf32>
      %cst_179 = arith.constant -1.000000e+30 : f32
      %594 = vector.shape_cast %593 : vector<1x1x8xi1> to vector<1x1x8xi1>
      %595 = vector.broadcast %594 : vector<1x1x8xi1> to vector<1x8x8xi1>
      %596 = vector.broadcast %cst_179 : f32 to vector<1x8x8xf32>
      %597 = arith.select %595, %596, %591 : vector<1x8x8xi1>, vector<1x8x8xf32>
      %cst_180 = arith.constant dense<0xFF800000> : vector<1x8xf32>
      %598 = vector.multi_reduction <maximumf>, %597, %cst_180 [2] : vector<1x8x8xf32> to vector<1x8xf32>
      %599 = vector.shape_cast %598 : vector<1x8xf32> to vector<1x8x1xf32>
      %600 = vector.broadcast %599 : vector<1x8x1xf32> to vector<1x8x8xf32>
      %601 = arith.subf %597, %600 : vector<1x8x8xf32>
      %602 = math.exp %601 : vector<1x8x8xf32>
      %cst_181 = arith.constant dense<0.000000e+00> : vector<1x8xf32>
      %603 = vector.multi_reduction <add>, %602, %cst_181 [2] : vector<1x8x8xf32> to vector<1x8xf32>
      %604 = vector.shape_cast %603 : vector<1x8xf32> to vector<1x8x1xf32>
      %605 = tpu.reciprocal %604 {approx = true} : vector<1x8x1xf32> -> vector<1x8x1xf32>
      %606 = vector.broadcast %605 : vector<1x8x1xf32> to vector<1x8x8xf32>
      %607 = arith.mulf %602, %606 : vector<1x8x8xf32>
      %cst_182 = arith.constant 9.99999997E-7 : f32
      %cst_183 = arith.constant 1.000000e+00 : f32
      %608 = vector.broadcast %cst_182 : f32 to vector<1x8x8xf32>
      %609 = arith.maximumf %608, %607 : vector<1x8x8xf32>
      %610 = vector.broadcast %cst_183 : f32 to vector<1x8x8xf32>
      %611 = arith.minimumf %610, %609 : vector<1x8x8xf32>
      "tpu.trace_start"() <{level = 10 : i32, message = "bqk,bkd->bqd"}> : () -> ()
      %cst_184 = arith.constant dense<0.000000e+00> : vector<1x8x32xf32>
      %612 = tpu.matmul %611, %556, %cst_184 {dimension_numbers = #tpu.dot_dimension_numbers<[2], [1], [1], [2], [0, 0, 0, 1, 1, 2], [0], [0]>} : vector<1x8x8xf32>, vector<1x8x32xf32>, vector<1x8x32xf32> -> vector<1x8x32xf32>
      %cst_185 = arith.constant dense<0.000000e+00> : vector<1x8x32xf32>
      %613 = tpu.matmul %611, %562, %cst_185 {dimension_numbers = #tpu.dot_dimension_numbers<[2], [1], [1], [2], [0, 0, 0, 1, 1, 2], [0], [0]>} : vector<1x8x8xf32>, vector<1x8x32xf32>, vector<1x8x32xf32> -> vector<1x8x32xf32>
      "tpu.trace_stop"() : () -> ()
      %cst_186 = arith.constant dense<0.000000e+00> : vector<1x32xf32>
      %614 = vector.multi_reduction <add>, %581, %cst_186 [1] : vector<1x8x32xf32> to vector<1x32xf32>
      %615 = vector.shape_cast %614 : vector<1x32xf32> to vector<1x1x32xf32>
      %cst_187 = arith.constant dense<0.000000e+00> : vector<1x32xf32>
      %616 = vector.multi_reduction <add>, %582, %cst_187 [1] : vector<1x8x32xf32> to vector<1x32xf32>
      %617 = vector.shape_cast %616 : vector<1x32xf32> to vector<1x1x32xf32>
      %618 = vector.broadcast %615 : vector<1x1x32xf32> to vector<1x8x32xf32>
      %619 = arith.mulf %571, %618 : vector<1x8x32xf32>
      %cst_188 = arith.constant dense<0.000000e+00> : vector<1x8xf32>
      %620 = vector.multi_reduction <add>, %619, %cst_188 [2] : vector<1x8x32xf32> to vector<1x8xf32>
      %621 = vector.shape_cast %620 : vector<1x8xf32> to vector<1x8x1xf32>
      %622 = vector.broadcast %617 : vector<1x1x32xf32> to vector<1x8x32xf32>
      %623 = arith.mulf %572, %622 : vector<1x8x32xf32>
      %cst_189 = arith.constant dense<0.000000e+00> : vector<1x8xf32>
      %624 = vector.multi_reduction <add>, %623, %cst_189 [2] : vector<1x8x32xf32> to vector<1x8xf32>
      %625 = vector.shape_cast %624 : vector<1x8xf32> to vector<1x8x1xf32>
      %626 = arith.addf %621, %625 : vector<1x8x1xf32>
      %cst_190 = arith.constant 3.906250e-03 : f32
      %627 = vector.broadcast %cst_190 : f32 to vector<1x8x1xf32>
      %628 = arith.mulf %626, %627 : vector<1x8x1xf32>
      %629 = vector.shape_cast %488 : vector<1x32xf32> to vector<1x1x32xf32>
      %630 = vector.broadcast %629 : vector<1x1x32xf32> to vector<1x8x32xf32>
      %631 = vector.broadcast %628 : vector<1x8x1xf32> to vector<1x8x32xf32>
      %632 = arith.mulf %630, %631 : vector<1x8x32xf32>
      %cst_191 = arith.constant 9.99999993E-9 : f32
      %633 = vector.broadcast %cst_191 : f32 to vector<1x8x32xf32>
      %634 = arith.addf %613, %633 : vector<1x8x32xf32>
      %cst_192 = arith.constant 9.99999993E-9 : f32
      %635 = vector.broadcast %cst_192 : f32 to vector<1x8x32xf32>
      %636 = arith.addf %612, %635 : vector<1x8x32xf32>
      %637 = math.atan2 %634, %636 : vector<1x8x32xf32>
      %638 = arith.mulf %637, %632 : vector<1x8x32xf32>
      %639 = math.cos %638 : vector<1x8x32xf32>
      %640 = arith.mulf %612, %639 : vector<1x8x32xf32>
      %cst_193 = arith.constant 0.00999999977 : f32
      %641 = vector.broadcast %cst_193 : f32 to vector<1x8x32xf32>
      %642 = arith.mulf %640, %641 : vector<1x8x32xf32>
      %643 = arith.addf %480, %642 : vector<1x8x32xf32>
      %cst_194 = arith.constant dense<0.000000e+00> : vector<1x8xf32>
      %644 = vector.multi_reduction <add>, %643, %cst_194 [2] : vector<1x8x32xf32> to vector<1x8xf32>
      %645 = vector.shape_cast %644 : vector<1x8xf32> to vector<1x8x1xf32>
      %cst_195 = arith.constant 3.200000e+01 : f32
      %646 = vector.broadcast %cst_195 : f32 to vector<1x8x1xf32>
      %647 = arith.divf %645, %646 : vector<1x8x1xf32>
      %648 = vector.broadcast %647 : vector<1x8x1xf32> to vector<1x8x32xf32>
      %649 = arith.subf %643, %648 : vector<1x8x32xf32>
      %650 = arith.mulf %649, %649 : vector<1x8x32xf32>
      %cst_196 = arith.constant dense<0.000000e+00> : vector<1x8xf32>
      %651 = vector.multi_reduction <add>, %650, %cst_196 [2] : vector<1x8x32xf32> to vector<1x8xf32>
      %652 = vector.shape_cast %651 : vector<1x8xf32> to vector<1x8x1xf32>
      %cst_197 = arith.constant 3.200000e+01 : f32
      %653 = vector.broadcast %cst_197 : f32 to vector<1x8x1xf32>
      %654 = arith.divf %652, %653 : vector<1x8x1xf32>
      %655 = vector.broadcast %647 : vector<1x8x1xf32> to vector<1x8x32xf32>
      %656 = arith.subf %643, %655 : vector<1x8x32xf32>
      %cst_198 = arith.constant 9.99999993E-9 : f32
      %657 = vector.broadcast %cst_198 : f32 to vector<1x8x1xf32>
      %658 = arith.addf %654, %657 : vector<1x8x1xf32>
      %659 = math.rsqrt %658 : vector<1x8x1xf32>
      %660 = vector.broadcast %659 : vector<1x8x1xf32> to vector<1x8x32xf32>
      %661 = arith.mulf %656, %660 : vector<1x8x32xf32>
      %662 = vector.shape_cast %489 : vector<1x32xf32> to vector<1x1x32xf32>
      %663 = vector.broadcast %662 : vector<1x1x32xf32> to vector<1x8x32xf32>
      %664 = arith.mulf %661, %663 : vector<1x8x32xf32>
      %665 = vector.shape_cast %490 : vector<1x32xf32> to vector<1x1x32xf32>
      %666 = vector.broadcast %665 : vector<1x1x32xf32> to vector<1x8x32xf32>
      %667 = arith.addf %664, %666 : vector<1x8x32xf32>
      %cst_199 = arith.constant -1.000000e+00 : f32
      %cst_200 = arith.constant 1.000000e+00 : f32
      %668 = vector.broadcast %cst_199 : f32 to vector<1x8x32xf32>
      %669 = arith.maximumf %668, %667 : vector<1x8x32xf32>
      %670 = vector.broadcast %cst_200 : f32 to vector<1x8x32xf32>
      %671 = arith.minimumf %670, %669 : vector<1x8x32xf32>
      %c20 = arith.constant 20 : index
      %c0_201 = arith.constant 0 : index
      %672 = vector.load %arg5[%c20, %c0_201] : memref<30x32xf32, #tpu.memory_space<vmem>>, vector<1x32xf32>
      %c21 = arith.constant 21 : index
      %c0_202 = arith.constant 0 : index
      %673 = vector.load %arg5[%c21, %c0_202] : memref<30x32xf32, #tpu.memory_space<vmem>>, vector<1x32xf32>
      %c22 = arith.constant 22 : index
      %c0_203 = arith.constant 0 : index
      %674 = vector.load %arg5[%c22, %c0_203] : memref<30x32xf32, #tpu.memory_space<vmem>>, vector<1x32xf32>
      %c23 = arith.constant 23 : index
      %c0_204 = arith.constant 0 : index
      %675 = vector.load %arg5[%c23, %c0_204] : memref<30x32xf32, #tpu.memory_space<vmem>>, vector<1x32xf32>
      %c24 = arith.constant 24 : index
      %c0_205 = arith.constant 0 : index
      %676 = vector.load %arg5[%c24, %c0_205] : memref<30x32xf32, #tpu.memory_space<vmem>>, vector<1x32xf32>
      %c25 = arith.constant 25 : index
      %c0_206 = arith.constant 0 : index
      %677 = vector.load %arg5[%c25, %c0_206] : memref<30x32xf32, #tpu.memory_space<vmem>>, vector<1x32xf32>
      %c26 = arith.constant 26 : index
      %c0_207 = arith.constant 0 : index
      %678 = vector.load %arg5[%c26, %c0_207] : memref<30x32xf32, #tpu.memory_space<vmem>>, vector<1x32xf32>
      %c27 = arith.constant 27 : index
      %c0_208 = arith.constant 0 : index
      %679 = vector.load %arg5[%c27, %c0_208] : memref<30x32xf32, #tpu.memory_space<vmem>>, vector<1x32xf32>
      %c28 = arith.constant 28 : index
      %c0_209 = arith.constant 0 : index
      %680 = vector.load %arg5[%c28, %c0_209] : memref<30x32xf32, #tpu.memory_space<vmem>>, vector<1x32xf32>
      %c29 = arith.constant 29 : index
      %c0_210 = arith.constant 0 : index
      %681 = vector.load %arg5[%c29, %c0_210] : memref<30x32xf32, #tpu.memory_space<vmem>>, vector<1x32xf32>
      %cst_211 = arith.constant dense<0.000000e+00> : vector<1x8xf32>
      %682 = vector.multi_reduction <add>, %671, %cst_211 [2] : vector<1x8x32xf32> to vector<1x8xf32>
      %683 = vector.shape_cast %682 : vector<1x8xf32> to vector<1x8x1xf32>
      %cst_212 = arith.constant 3.200000e+01 : f32
      %684 = vector.broadcast %cst_212 : f32 to vector<1x8x1xf32>
      %685 = arith.divf %683, %684 : vector<1x8x1xf32>
      %686 = vector.broadcast %685 : vector<1x8x1xf32> to vector<1x8x32xf32>
      %687 = arith.subf %671, %686 : vector<1x8x32xf32>
      %688 = arith.mulf %687, %687 : vector<1x8x32xf32>
      %cst_213 = arith.constant dense<0.000000e+00> : vector<1x8xf32>
      %689 = vector.multi_reduction <add>, %688, %cst_213 [2] : vector<1x8x32xf32> to vector<1x8xf32>
      %690 = vector.shape_cast %689 : vector<1x8xf32> to vector<1x8x1xf32>
      %cst_214 = arith.constant 3.200000e+01 : f32
      %691 = vector.broadcast %cst_214 : f32 to vector<1x8x1xf32>
      %692 = arith.divf %690, %691 : vector<1x8x1xf32>
      %693 = vector.broadcast %685 : vector<1x8x1xf32> to vector<1x8x32xf32>
      %694 = arith.subf %671, %693 : vector<1x8x32xf32>
      %cst_215 = arith.constant 9.99999974E-6 : f32
      %695 = vector.broadcast %cst_215 : f32 to vector<1x8x1xf32>
      %696 = arith.addf %692, %695 : vector<1x8x1xf32>
      %697 = math.rsqrt %696 : vector<1x8x1xf32>
      %698 = vector.broadcast %697 : vector<1x8x1xf32> to vector<1x8x32xf32>
      %699 = arith.mulf %694, %698 : vector<1x8x32xf32>
      %cst_216 = arith.constant dense<0.000000e+00> : vector<1x8xf32>
      %700 = vector.multi_reduction <add>, %671, %cst_216 [2] : vector<1x8x32xf32> to vector<1x8xf32>
      %701 = vector.shape_cast %700 : vector<1x8xf32> to vector<1x8x1xf32>
      %cst_217 = arith.constant 3.200000e+01 : f32
      %702 = vector.broadcast %cst_217 : f32 to vector<1x8x1xf32>
      %703 = arith.divf %701, %702 : vector<1x8x1xf32>
      %704 = vector.broadcast %703 : vector<1x8x1xf32> to vector<1x8x32xf32>
      %705 = arith.subf %671, %704 : vector<1x8x32xf32>
      %706 = arith.mulf %705, %705 : vector<1x8x32xf32>
      %cst_218 = arith.constant dense<0.000000e+00> : vector<1x8xf32>
      %707 = vector.multi_reduction <add>, %706, %cst_218 [2] : vector<1x8x32xf32> to vector<1x8xf32>
      %708 = vector.shape_cast %707 : vector<1x8xf32> to vector<1x8x1xf32>
      %cst_219 = arith.constant 3.200000e+01 : f32
      %709 = vector.broadcast %cst_219 : f32 to vector<1x8x1xf32>
      %710 = arith.divf %708, %709 : vector<1x8x1xf32>
      %711 = vector.broadcast %703 : vector<1x8x1xf32> to vector<1x8x32xf32>
      %712 = arith.subf %671, %711 : vector<1x8x32xf32>
      %cst_220 = arith.constant 9.99999974E-6 : f32
      %713 = vector.broadcast %cst_220 : f32 to vector<1x8x1xf32>
      %714 = arith.addf %710, %713 : vector<1x8x1xf32>
      %715 = math.rsqrt %714 : vector<1x8x1xf32>
      %716 = vector.broadcast %715 : vector<1x8x1xf32> to vector<1x8x32xf32>
      %717 = arith.mulf %712, %716 : vector<1x8x32xf32>
      %718 = vector.shape_cast %672 : vector<1x32xf32> to vector<1x1x32xf32>
      %719 = vector.broadcast %718 : vector<1x1x32xf32> to vector<1x8x32xf32>
      %720 = arith.mulf %699, %719 : vector<1x8x32xf32>
      %721 = vector.shape_cast %673 : vector<1x32xf32> to vector<1x1x32xf32>
      %722 = vector.broadcast %721 : vector<1x1x32xf32> to vector<1x8x32xf32>
      %723 = arith.addf %720, %722 : vector<1x8x32xf32>
      %724 = vector.shape_cast %672 : vector<1x32xf32> to vector<1x1x32xf32>
      %725 = vector.broadcast %724 : vector<1x1x32xf32> to vector<1x8x32xf32>
      %726 = arith.mulf %717, %725 : vector<1x8x32xf32>
      %727 = vector.shape_cast %673 : vector<1x32xf32> to vector<1x1x32xf32>
      %728 = vector.broadcast %727 : vector<1x1x32xf32> to vector<1x8x32xf32>
      %729 = arith.addf %726, %728 : vector<1x8x32xf32>
      %730 = vector.shape_cast %674 : vector<1x32xf32> to vector<1x1x32xf32>
      %731 = vector.broadcast %730 : vector<1x1x32xf32> to vector<1x8x32xf32>
      %732 = arith.mulf %699, %731 : vector<1x8x32xf32>
      %733 = vector.shape_cast %675 : vector<1x32xf32> to vector<1x1x32xf32>
      %734 = vector.broadcast %733 : vector<1x1x32xf32> to vector<1x8x32xf32>
      %735 = arith.addf %732, %734 : vector<1x8x32xf32>
      %736 = vector.shape_cast %674 : vector<1x32xf32> to vector<1x1x32xf32>
      %737 = vector.broadcast %736 : vector<1x1x32xf32> to vector<1x8x32xf32>
      %738 = arith.mulf %717, %737 : vector<1x8x32xf32>
      %739 = vector.shape_cast %675 : vector<1x32xf32> to vector<1x1x32xf32>
      %740 = vector.broadcast %739 : vector<1x1x32xf32> to vector<1x8x32xf32>
      %741 = arith.addf %738, %740 : vector<1x8x32xf32>
      %742 = vector.shape_cast %676 : vector<1x32xf32> to vector<1x1x32xf32>
      %743 = vector.broadcast %742 : vector<1x1x32xf32> to vector<1x8x32xf32>
      %744 = arith.mulf %699, %743 : vector<1x8x32xf32>
      %745 = vector.shape_cast %677 : vector<1x32xf32> to vector<1x1x32xf32>
      %746 = vector.broadcast %745 : vector<1x1x32xf32> to vector<1x8x32xf32>
      %747 = arith.addf %744, %746 : vector<1x8x32xf32>
      %748 = vector.shape_cast %676 : vector<1x32xf32> to vector<1x1x32xf32>
      %749 = vector.broadcast %748 : vector<1x1x32xf32> to vector<1x8x32xf32>
      %750 = arith.mulf %717, %749 : vector<1x8x32xf32>
      %751 = vector.shape_cast %677 : vector<1x32xf32> to vector<1x1x32xf32>
      %752 = vector.broadcast %751 : vector<1x1x32xf32> to vector<1x8x32xf32>
      %753 = arith.addf %750, %752 : vector<1x8x32xf32>
      %cst_221 = arith.constant 9.99999993E-9 : f32
      %754 = vector.broadcast %cst_221 : f32 to vector<1x8x32xf32>
      %755 = arith.addf %723, %754 : vector<1x8x32xf32>
      %cst_222 = arith.constant 9.99999993E-9 : f32
      %756 = vector.broadcast %cst_222 : f32 to vector<1x8x32xf32>
      %757 = arith.addf %729, %756 : vector<1x8x32xf32>
      %758 = arith.mulf %755, %755 : vector<1x8x32xf32>
      %759 = arith.mulf %757, %757 : vector<1x8x32xf32>
      %760 = arith.addf %758, %759 : vector<1x8x32xf32>
      %761 = math.rsqrt %760 : vector<1x8x32xf32>
      %762 = arith.mulf %755, %761 : vector<1x8x32xf32>
      %763 = arith.mulf %757, %761 : vector<1x8x32xf32>
      %cst_223 = arith.constant 9.99999993E-9 : f32
      %764 = vector.broadcast %cst_223 : f32 to vector<1x8x32xf32>
      %765 = arith.addf %735, %764 : vector<1x8x32xf32>
      %cst_224 = arith.constant 9.99999993E-9 : f32
      %766 = vector.broadcast %cst_224 : f32 to vector<1x8x32xf32>
      %767 = arith.addf %741, %766 : vector<1x8x32xf32>
      %768 = arith.mulf %765, %765 : vector<1x8x32xf32>
      %769 = arith.mulf %767, %767 : vector<1x8x32xf32>
      %770 = arith.addf %768, %769 : vector<1x8x32xf32>
      %771 = math.rsqrt %770 : vector<1x8x32xf32>
      %772 = arith.mulf %765, %771 : vector<1x8x32xf32>
      %773 = arith.mulf %767, %771 : vector<1x8x32xf32>
      %774 = vector.shape_cast %678 : vector<1x32xf32> to vector<1x1x32xf32>
      %775 = vector.broadcast %774 : vector<1x1x32xf32> to vector<1x8x32xf32>
      %776 = arith.mulf %762, %775 : vector<1x8x32xf32>
      "tpu.trace_start"() <{level = 10 : i32, message = "bqd,bkd->bqk"}> : () -> ()
      %cst_225 = arith.constant dense<0.000000e+00> : vector<1x8x8xf32>
      %777 = tpu.matmul %776, %772, %cst_225 {dimension_numbers = #tpu.dot_dimension_numbers<[2], [2], [1], [1], [0, 0, 0, 1, 1, 1], [0], [0]>} : vector<1x8x32xf32>, vector<1x8x32xf32>, vector<1x8x8xf32> -> vector<1x8x8xf32>
      "tpu.trace_stop"() : () -> ()
      %778 = vector.shape_cast %678 : vector<1x32xf32> to vector<1x1x32xf32>
      %779 = vector.broadcast %778 : vector<1x1x32xf32> to vector<1x8x32xf32>
      %780 = arith.mulf %763, %779 : vector<1x8x32xf32>
      "tpu.trace_start"() <{level = 10 : i32, message = "bqd,bkd->bqk"}> : () -> ()
      %cst_226 = arith.constant dense<0.000000e+00> : vector<1x8x8xf32>
      %781 = tpu.matmul %780, %773, %cst_226 {dimension_numbers = #tpu.dot_dimension_numbers<[2], [2], [1], [1], [0, 0, 0, 1, 1, 1], [0], [0]>} : vector<1x8x32xf32>, vector<1x8x32xf32>, vector<1x8x8xf32> -> vector<1x8x8xf32>
      "tpu.trace_stop"() : () -> ()
      %782 = arith.addf %777, %781 : vector<1x8x8xf32>
      %cst_227 = arith.constant 5.000000e-01 : f32
      %783 = vector.broadcast %cst_227 : f32 to vector<1x1x8xf32>
      %784 = arith.cmpf ogt, %21, %783 : vector<1x1x8xf32>
      %cst_228 = arith.constant -1.000000e+30 : f32
      %785 = vector.shape_cast %784 : vector<1x1x8xi1> to vector<1x1x8xi1>
      %786 = vector.broadcast %785 : vector<1x1x8xi1> to vector<1x8x8xi1>
      %787 = vector.broadcast %cst_228 : f32 to vector<1x8x8xf32>
      %788 = arith.select %786, %787, %782 : vector<1x8x8xi1>, vector<1x8x8xf32>
      %cst_229 = arith.constant dense<0xFF800000> : vector<1x8xf32>
      %789 = vector.multi_reduction <maximumf>, %788, %cst_229 [2] : vector<1x8x8xf32> to vector<1x8xf32>
      %790 = vector.shape_cast %789 : vector<1x8xf32> to vector<1x8x1xf32>
      %791 = vector.broadcast %790 : vector<1x8x1xf32> to vector<1x8x8xf32>
      %792 = arith.subf %788, %791 : vector<1x8x8xf32>
      %793 = math.exp %792 : vector<1x8x8xf32>
      %cst_230 = arith.constant dense<0.000000e+00> : vector<1x8xf32>
      %794 = vector.multi_reduction <add>, %793, %cst_230 [2] : vector<1x8x8xf32> to vector<1x8xf32>
      %795 = vector.shape_cast %794 : vector<1x8xf32> to vector<1x8x1xf32>
      %796 = tpu.reciprocal %795 {approx = true} : vector<1x8x1xf32> -> vector<1x8x1xf32>
      %797 = vector.broadcast %796 : vector<1x8x1xf32> to vector<1x8x8xf32>
      %798 = arith.mulf %793, %797 : vector<1x8x8xf32>
      %cst_231 = arith.constant 9.99999997E-7 : f32
      %cst_232 = arith.constant 1.000000e+00 : f32
      %799 = vector.broadcast %cst_231 : f32 to vector<1x8x8xf32>
      %800 = arith.maximumf %799, %798 : vector<1x8x8xf32>
      %801 = vector.broadcast %cst_232 : f32 to vector<1x8x8xf32>
      %802 = arith.minimumf %801, %800 : vector<1x8x8xf32>
      "tpu.trace_start"() <{level = 10 : i32, message = "bqk,bkd->bqd"}> : () -> ()
      %cst_233 = arith.constant dense<0.000000e+00> : vector<1x8x32xf32>
      %803 = tpu.matmul %802, %747, %cst_233 {dimension_numbers = #tpu.dot_dimension_numbers<[2], [1], [1], [2], [0, 0, 0, 1, 1, 2], [0], [0]>} : vector<1x8x8xf32>, vector<1x8x32xf32>, vector<1x8x32xf32> -> vector<1x8x32xf32>
      %cst_234 = arith.constant dense<0.000000e+00> : vector<1x8x32xf32>
      %804 = tpu.matmul %802, %753, %cst_234 {dimension_numbers = #tpu.dot_dimension_numbers<[2], [1], [1], [2], [0, 0, 0, 1, 1, 2], [0], [0]>} : vector<1x8x8xf32>, vector<1x8x32xf32>, vector<1x8x32xf32> -> vector<1x8x32xf32>
      "tpu.trace_stop"() : () -> ()
      %cst_235 = arith.constant dense<0.000000e+00> : vector<1x32xf32>
      %805 = vector.multi_reduction <add>, %772, %cst_235 [1] : vector<1x8x32xf32> to vector<1x32xf32>
      %806 = vector.shape_cast %805 : vector<1x32xf32> to vector<1x1x32xf32>
      %cst_236 = arith.constant dense<0.000000e+00> : vector<1x32xf32>
      %807 = vector.multi_reduction <add>, %773, %cst_236 [1] : vector<1x8x32xf32> to vector<1x32xf32>
      %808 = vector.shape_cast %807 : vector<1x32xf32> to vector<1x1x32xf32>
      %809 = vector.broadcast %806 : vector<1x1x32xf32> to vector<1x8x32xf32>
      %810 = arith.mulf %762, %809 : vector<1x8x32xf32>
      %cst_237 = arith.constant dense<0.000000e+00> : vector<1x8xf32>
      %811 = vector.multi_reduction <add>, %810, %cst_237 [2] : vector<1x8x32xf32> to vector<1x8xf32>
      %812 = vector.shape_cast %811 : vector<1x8xf32> to vector<1x8x1xf32>
      %813 = vector.broadcast %808 : vector<1x1x32xf32> to vector<1x8x32xf32>
      %814 = arith.mulf %763, %813 : vector<1x8x32xf32>
      %cst_238 = arith.constant dense<0.000000e+00> : vector<1x8xf32>
      %815 = vector.multi_reduction <add>, %814, %cst_238 [2] : vector<1x8x32xf32> to vector<1x8xf32>
      %816 = vector.shape_cast %815 : vector<1x8xf32> to vector<1x8x1xf32>
      %817 = arith.addf %812, %816 : vector<1x8x1xf32>
      %cst_239 = arith.constant 3.906250e-03 : f32
      %818 = vector.broadcast %cst_239 : f32 to vector<1x8x1xf32>
      %819 = arith.mulf %817, %818 : vector<1x8x1xf32>
      %820 = vector.shape_cast %679 : vector<1x32xf32> to vector<1x1x32xf32>
      %821 = vector.broadcast %820 : vector<1x1x32xf32> to vector<1x8x32xf32>
      %822 = vector.broadcast %819 : vector<1x8x1xf32> to vector<1x8x32xf32>
      %823 = arith.mulf %821, %822 : vector<1x8x32xf32>
      %cst_240 = arith.constant 9.99999993E-9 : f32
      %824 = vector.broadcast %cst_240 : f32 to vector<1x8x32xf32>
      %825 = arith.addf %804, %824 : vector<1x8x32xf32>
      %cst_241 = arith.constant 9.99999993E-9 : f32
      %826 = vector.broadcast %cst_241 : f32 to vector<1x8x32xf32>
      %827 = arith.addf %803, %826 : vector<1x8x32xf32>
      %828 = math.atan2 %825, %827 : vector<1x8x32xf32>
      %829 = arith.mulf %828, %823 : vector<1x8x32xf32>
      %830 = math.cos %829 : vector<1x8x32xf32>
      %831 = arith.mulf %803, %830 : vector<1x8x32xf32>
      %cst_242 = arith.constant 0.00999999977 : f32
      %832 = vector.broadcast %cst_242 : f32 to vector<1x8x32xf32>
      %833 = arith.mulf %831, %832 : vector<1x8x32xf32>
      %834 = arith.addf %671, %833 : vector<1x8x32xf32>
      %cst_243 = arith.constant dense<0.000000e+00> : vector<1x8xf32>
      %835 = vector.multi_reduction <add>, %834, %cst_243 [2] : vector<1x8x32xf32> to vector<1x8xf32>
      %836 = vector.shape_cast %835 : vector<1x8xf32> to vector<1x8x1xf32>
      %cst_244 = arith.constant 3.200000e+01 : f32
      %837 = vector.broadcast %cst_244 : f32 to vector<1x8x1xf32>
      %838 = arith.divf %836, %837 : vector<1x8x1xf32>
      %839 = vector.broadcast %838 : vector<1x8x1xf32> to vector<1x8x32xf32>
      %840 = arith.subf %834, %839 : vector<1x8x32xf32>
      %841 = arith.mulf %840, %840 : vector<1x8x32xf32>
      %cst_245 = arith.constant dense<0.000000e+00> : vector<1x8xf32>
      %842 = vector.multi_reduction <add>, %841, %cst_245 [2] : vector<1x8x32xf32> to vector<1x8xf32>
      %843 = vector.shape_cast %842 : vector<1x8xf32> to vector<1x8x1xf32>
      %cst_246 = arith.constant 3.200000e+01 : f32
      %844 = vector.broadcast %cst_246 : f32 to vector<1x8x1xf32>
      %845 = arith.divf %843, %844 : vector<1x8x1xf32>
      %846 = vector.broadcast %838 : vector<1x8x1xf32> to vector<1x8x32xf32>
      %847 = arith.subf %834, %846 : vector<1x8x32xf32>
      %cst_247 = arith.constant 9.99999993E-9 : f32
      %848 = vector.broadcast %cst_247 : f32 to vector<1x8x1xf32>
      %849 = arith.addf %845, %848 : vector<1x8x1xf32>
      %850 = math.rsqrt %849 : vector<1x8x1xf32>
      %851 = vector.broadcast %850 : vector<1x8x1xf32> to vector<1x8x32xf32>
      %852 = arith.mulf %847, %851 : vector<1x8x32xf32>
      %853 = vector.shape_cast %680 : vector<1x32xf32> to vector<1x1x32xf32>
      %854 = vector.broadcast %853 : vector<1x1x32xf32> to vector<1x8x32xf32>
      %855 = arith.mulf %852, %854 : vector<1x8x32xf32>
      %856 = vector.shape_cast %681 : vector<1x32xf32> to vector<1x1x32xf32>
      %857 = vector.broadcast %856 : vector<1x1x32xf32> to vector<1x8x32xf32>
      %858 = arith.addf %855, %857 : vector<1x8x32xf32>
      %cst_248 = arith.constant -1.000000e+00 : f32
      %cst_249 = arith.constant 1.000000e+00 : f32
      %859 = vector.broadcast %cst_248 : f32 to vector<1x8x32xf32>
      %860 = arith.maximumf %859, %858 : vector<1x8x32xf32>
      %861 = vector.broadcast %cst_249 : f32 to vector<1x8x32xf32>
      %862 = arith.minimumf %861, %860 : vector<1x8x32xf32>
      %cst_250 = arith.constant dense<0.000000e+00> : vector<1x8xf32>
      %863 = vector.multi_reduction <add>, %862, %cst_250 [2] : vector<1x8x32xf32> to vector<1x8xf32>
      %864 = vector.shape_cast %863 : vector<1x8xf32> to vector<1x8x1xf32>
      %cst_251 = arith.constant 3.200000e+01 : f32
      %865 = vector.broadcast %cst_251 : f32 to vector<1x8x1xf32>
      %866 = arith.divf %864, %865 : vector<1x8x1xf32>
      %867 = vector.broadcast %866 : vector<1x8x1xf32> to vector<1x8x32xf32>
      %868 = arith.subf %862, %867 : vector<1x8x32xf32>
      %869 = arith.mulf %868, %868 : vector<1x8x32xf32>
      %cst_252 = arith.constant dense<0.000000e+00> : vector<1x8xf32>
      %870 = vector.multi_reduction <add>, %869, %cst_252 [2] : vector<1x8x32xf32> to vector<1x8xf32>
      %871 = vector.shape_cast %870 : vector<1x8xf32> to vector<1x8x1xf32>
      %cst_253 = arith.constant 3.200000e+01 : f32
      %872 = vector.broadcast %cst_253 : f32 to vector<1x8x1xf32>
      %873 = arith.divf %871, %872 : vector<1x8x1xf32>
      %874 = vector.broadcast %866 : vector<1x8x1xf32> to vector<1x8x32xf32>
      %875 = arith.subf %862, %874 : vector<1x8x32xf32>
      %cst_254 = arith.constant 9.99999974E-6 : f32
      %876 = vector.broadcast %cst_254 : f32 to vector<1x8x1xf32>
      %877 = arith.addf %873, %876 : vector<1x8x1xf32>
      %878 = math.rsqrt %877 : vector<1x8x1xf32>
      %879 = vector.broadcast %878 : vector<1x8x1xf32> to vector<1x8x32xf32>
      %880 = arith.mulf %875, %879 : vector<1x8x32xf32>
      %881 = vector.shape_cast %880 : vector<1x8x32xf32> to vector<8x32xf32>
      %c0_255 = arith.constant 0 : index
      %c0_256 = arith.constant 0 : index
      %882 = vector.load %arg9[%c0_255, %c0_256] : memref<8x32xf32, #tpu.memory_space<vmem>>, vector<8x32xf32>
      tpu.vector_store %arg9[%c0_255, %c0_256], %881 {strides = array<i32>} : memref<8x32xf32, #tpu.memory_space<vmem>>, vector<8x32xf32>,
    } else {
    }
    %c0 = arith.constant 0 : index
    %c0_1 = arith.constant 0 : index
    %3 = vector.load %arg9[%c0, %c0_1] : memref<8x32xf32, #tpu.memory_space<vmem>>, vector<8x32xf32>
    %c0_2 = arith.constant 0 : index
    %c0_3 = arith.constant 0 : index
    %4 = vector.load %arg6[%c0_2, %c0_3] : memref<32x128xf32, #tpu.memory_space<vmem>>, vector<32x128xf32>
    %cst = arith.constant dense<0.000000e+00> : vector<8x128xf32>
    %5 = tpu.matmul %3, %4, %cst {dimension_numbers = #tpu.dot_dimension_numbers<[1], [0], [0], [1], [0, 0, 1, 1], [], []>} : vector<8x32xf32>, vector<32x128xf32>, vector<8x128xf32> -> vector<8x128xf32>
    %6 = vector.shape_cast %5 : vector<8x128xf32> to vector<1x8x128xf32>
    %c0_4 = arith.constant 0 : index
    %c0_5 = arith.constant 0 : index
    %7 = vector.load %arg7[%c0_4, %c0_5] : memref<1x128xf32, #tpu.memory_space<vmem>>, vector<1x128xf32>
    %8 = vector.shape_cast %7 : vector<1x128xf32> to vector<1x1x128xf32>
    %9 = vector.broadcast %8 : vector<1x1x128xf32> to vector<1x8x128xf32>
    %10 = arith.addf %6, %9 : vector<1x8x128xf32>
    %cst_6 = arith.constant 1.000000e-01 : f32
    %11 = vector.broadcast %cst_6 : f32 to vector<1x8x128xf32>
    %12 = arith.mulf %10, %11 : vector<1x8x128xf32>
    %cst_7 = arith.constant -1.000000e+01 : f32
    %cst_8 = arith.constant 1.000000e+01 : f32
    %13 = vector.broadcast %cst_7 : f32 to vector<1x8x128xf32>
    %14 = arith.maximumf %13, %12 : vector<1x8x128xf32>
    %15 = vector.broadcast %cst_8 : f32 to vector<1x8x128xf32>
    %16 = arith.minimumf %15, %14 : vector<1x8x128xf32>
    %c0_9 = arith.constant 0 : index
    %c0_10 = arith.constant 0 : index
    %c0_11 = arith.constant 0 : index
    %17 = vector.load %arg8[%c0_9, %c0_10, %c0_11] : memref<1x8x128xf32, #tpu.memory_space<vmem>>, vector<1x8x128xf32>
    tpu.vector_store %arg8[%c0_9, %c0_10, %c0_11], %16 {strides = array<i32>} : memref<1x8x128xf32, #tpu.memory_space<vmem>>, vector<1x8x128xf32>,
    return
  }
  func.func @transform_0(%arg0: i32, %arg1: i32) -> (i32, i32, i32) {
    %c0_i32 = arith.constant 0 : i32
    %c0_i32_0 = arith.constant 0 : i32
    %c0_i32_1 = arith.constant 0 : i32
    return %arg0, %c0_i32, %c0_i32_0 : i32, i32, i32
  }
  func.func @transform_1(%arg0: i32, %arg1: i32) -> (i32, i32, i32) {
    %c0_i32 = arith.constant 0 : i32
    %c0_i32_0 = arith.constant 0 : i32
    %c0_i32_1 = arith.constant 0 : i32
    return %arg0, %c0_i32, %c0_i32_0 : i32, i32, i32
  }
  func.func @transform_2(%arg0: i32, %arg1: i32) -> (i32, i32) {
    %c0_i32 = arith.constant 0 : i32
    %c0_i32_0 = arith.constant 0 : i32
    %c0_i32_1 = arith.constant 0 : i32
    return %c0_i32, %c0_i32_0 : i32, i32
  }
  func.func @transform_3(%arg0: i32, %arg1: i32) -> (i32, i32) {
    %c0_i32 = arith.constant 0 : i32
    %c0_i32_0 = arith.constant 0 : i32
    %c0_i32_1 = arith.constant 0 : i32
    return %c0_i32, %c0_i32_0 : i32, i32
  }
  func.func @transform_4(%arg0: i32, %arg1: i32) -> (i32, i32) {
    %c0_i32 = arith.constant 0 : i32
    %c0_i32_0 = arith.constant 0 : i32
    return %c0_i32, %arg1 : i32, i32
  }
  func.func @transform_5(%arg0: i32, %arg1: i32) -> (i32, i32) {
    %c0_i32 = arith.constant 0 : i32
    %c0_i32_0 = arith.constant 0 : i32
    return %c0_i32, %arg1 : i32, i32
  }
  func.func @transform_6(%arg0: i32, %arg1: i32) -> (i32, i32, i32) {
    %c0_i32 = arith.constant 0 : i32
    %c0_i32_0 = arith.constant 0 : i32
    return %arg0, %c0_i32, %arg1 : i32, i32, i32
  }
}

</mosaic_0001>

<llo_original>
// kernel: tpu_custom_call.1
$region0: #{tpu_custom_call.1}
  #allocation0 [shape = 'u32[]', space=smem, size = 0x4, offset = 0x4, fixed_abs, tag = 'smem constant byte address 0x4 - core index']
  #allocation1 [shape = 'u32[144,128]{1,0:T(1,128)}', space=vmem, size = 0x12000, scoped, tag = 'internal scratch']
  #allocation2 [shape = 'f32[8,32]{1,0:T(8,128)}', space=vmem, size = 0x1000, scoped, tag = 'scratch operand']
  %s0 = inlined_call_operand.hbm [shape: f32[2,8,32], index: 0, kind: input, shape index: {}]
  %s1 = inlined_call_operand.hbm [shape: f32[2,1,8], index: 1, kind: input, shape index: {}]
  %s2 = inlined_call_operand.hbm [shape: f32[16,32], index: 2, kind: input, shape index: {}]
  %s3 = inlined_call_operand.hbm [shape: f32[30,32], index: 3, kind: input, shape index: {}]
  %s4 = inlined_call_operand.hbm [shape: f32[32,128], index: 4, kind: input, shape index: {}]
  %s5 = inlined_call_operand.vmem [shape: f32[1,128], index: 5, kind: input, shape index: {}]
  %s6 = inlined_call_operand.hbm [shape: f32[2,8,128], index: 6, kind: output, shape index: {}]
  %s7 = sld [smem:[#allocation0]]
  $region81: #{tpu_custom_call.1} parent=0
    _
  %s9 = ssub.s32 1, %s7
  %s10 = scalar_select 0, %s9, %s7
  $region1: #{tpu_custom_call.1} parent=0
    #allocation3 [shape = 'u8[8192]{0}', space=vmem, size = 0x2000, scoped, tag = 'input window, operand 0']
    #allocation4 [shape = 's32[2]{0}', space=sflag, size = 0x8, scoped, tag = 'scoped memory for tpu_custom_call.1']
    #allocation5 [shape = 's32[2]{0}', space=sflag, size = 0x8, scoped, tag = 'scoped memory for tpu_custom_call.1']
    #allocation6 [shape = 'u8[1024]{0}', space=vmem, size = 0x400, scoped, tag = 'input window, operand 1']
    #allocation7 [shape = 's32[2]{0}', space=sflag, size = 0x8, scoped, tag = 'scoped memory for tpu_custom_call.1']
    #allocation8 [shape = 'u8[8192]{0}', space=vmem, size = 0x2000, scoped, tag = 'input window, operand 2, single buffered']
    #allocation9 [shape = 'u8[16384]{0}', space=vmem, size = 0x4000, scoped, tag = 'input window, operand 3, single buffered']
    #allocation10 [shape = 's32[1]{0}', space=sflag, size = 0x4, scoped, tag = 'scoped memory for tpu_custom_call.1']
    #allocation11 [shape = 'u8[16384]{0}', space=vmem, size = 0x4000, scoped, tag = 'input window, operand 4, single buffered']
    #allocation12 [shape = 'u8[8192]{0}', space=vmem, size = 0x2000, scoped, tag = 'output window, operand 0']
    %11 = vsyncpa [#allocation4], 0
    %s12 = scalar_lea.sflag [#allocation4], 1
    %13 = vsyncpa %s12, 0
    %14 = vsyncpa [#allocation7], 0
    %s15 = scalar_lea.sflag [#allocation7], 1
    %16 = vsyncpa %s15, 0
    %17 = vsyncpa [#allocation10], 0
    %18 = vsyncpa [#allocation5], 0
    %s19 = scalar_lea.sflag [#allocation5], 1
    %20 = vsyncpa %s19, 0
    loop: start=0, step=1, limit=4
    $region2: #{tpu_custom_call.1} parent=1 // loop_pre_header
      _
    $region3: #{tpu_custom_call.1} parent=1 // loop_header
      %s22 = sphi 0, %s26
      %p23 = scmp.ge.s32.totalorder %s22, 4
      %s29 = sphi 0, %s41
      %s30 = sphi 0, %s37
      %s31 = sphi 0, %s29
      %s32 = sphi 0, %s30
      %s33 = sphi 0, %s31
      %s34 = sphi 0, %s32
      %s44 = sphi 0, %s46
      %s47 = sphi 0, %s44
      %s48 = sphi 0, %s47
      %s64 = sphi 0, %s48
      %s70 = sphi 0, %s72
      %s73 = sphi 0, %s70
      %s74 = sphi 0, %s73
      %s90 = sphi 0, %s74
      %s94 = sphi 0, %s94
      %s96 = sphi 0, %s94
      %s97 = sphi 0, %s96
      %s111 = sphi 0, %s97
      %s115 = sphi 0, %s115
      %s117 = sphi 0, %s115
      %s118 = sphi 0, %s117
      %s132 = sphi 0, %s118
      %s138 = sphi 0, %s140
      %s141 = sphi 0, %s138
      %s142 = sphi 0, %s141
      %s158 = sphi 0, %s142
      %s164 = sphi 0, %s166
      %s167 = sphi 0, %s164
      %s168 = sphi 0, %s167
      %s184 = sphi 0, %s168
      %s192 = sphi 0, %s194
      %s195 = sphi 0, %s192
      %s196 = sphi 0, %s195
      %s212 = sphi 0, %s196
    $region4: #{tpu_custom_call.1} parent=1 // loop_header_branch
      %25 = sbr.rel (%p23) target = $region8
    $region5: #{tpu_custom_call.1} parent=1 // loop_body
      %s27 = ssub.s32 %s22, 1
      %s28 = ssub.s32 %s22, 2
      %s35 = sadd.s32 1, %s30
      %p36 = scmp.ge.s32.totalorder %s35, 1
      %s37 = scalar_select %p36, 0, %s35
      %s38 = sadd.s32 1, %s29
      %s39 = scalar_select %p36, %s38, %s29
      %p40 = scmp.ge.s32.totalorder %s39, 2
      %s41 = scalar_select %p40, 0, %s39
      %s42 = ssub.s32 %s29, %s41
      %p43 = scmp.eq.s32.totalorder %s42, 0
      %s45 = sadd.s32 %s44, 1
      %s46 = scalar_select %p43, %s44, %s45
      %p49 = pneg %p43
      %p50 = scmp.eq.s32.totalorder %s22, 1
      %p51 = por %p49, %p50
      %p52 = scmp.ne.s32.totalorder %s44, %s47
      %p53 = scmp.eq.s32.totalorder %s22, 0
      %p54 = por %p52, %p53
      %p55 = scmp.ne.s32.totalorder %s44, %s47
      %p56 = scmp.eq.s32.totalorder %s27, 1
      %p57 = por %p55, %p56
      %p58 = scmp.ne.s32.totalorder %s47, %s48
      %p59 = scmp.eq.s32.totalorder %s27, 0
      %p60 = por %p58, %p59
      %p61 = scmp.ne.s32.totalorder %s47, %s48
      %p62 = scmp.eq.s32.totalorder %s28, 1
      %p63 = por %p61, %p62
      %p65 = scmp.ne.s32.totalorder %s48, %s64
      %p66 = scmp.eq.s32.totalorder %s28, 0
      %p67 = por %p65, %p66
      %s68 = ssub.s32 %s29, %s41
      %p69 = scmp.eq.s32.totalorder %s68, 0
      %s71 = sadd.s32 %s70, 1
      %s72 = scalar_select %p69, %s70, %s71
      %p75 = pneg %p69
      %p76 = scmp.eq.s32.totalorder %s22, 1
      %p77 = por %p75, %p76
      %p78 = scmp.ne.s32.totalorder %s70, %s73
      %p79 = scmp.eq.s32.totalorder %s22, 0
      %p80 = por %p78, %p79
      %p81 = scmp.ne.s32.totalorder %s70, %s73
      %p82 = scmp.eq.s32.totalorder %s27, 1
      %p83 = por %p81, %p82
      %p84 = scmp.ne.s32.totalorder %s73, %s74
      %p85 = scmp.eq.s32.totalorder %s27, 0
      %p86 = por %p84, %p85
      %p87 = scmp.ne.s32.totalorder %s73, %s74
      %p88 = scmp.eq.s32.totalorder %s28, 1
      %p89 = por %p87, %p88
      %p91 = scmp.ne.s32.totalorder %s74, %s90
      %p92 = scmp.eq.s32.totalorder %s28, 0
      %p93 = por %p91, %p92
      %s95 = sadd.s32 %s94, 1
      %p98 = scmp.eq.s32.totalorder %s22, 1
      %p99 = scmp.ne.s32.totalorder %s94, %s96
      %p100 = scmp.eq.s32.totalorder %s22, 0
      %p101 = por %p99, %p100
      %p102 = scmp.ne.s32.totalorder %s94, %s96
      %p103 = scmp.eq.s32.totalorder %s27, 1
      %p104 = por %p102, %p103
      %p105 = scmp.ne.s32.totalorder %s96, %s97
      %p106 = scmp.eq.s32.totalorder %s27, 0
      %p107 = por %p105, %p106
      %p108 = scmp.ne.s32.totalorder %s96, %s97
      %p109 = scmp.eq.s32.totalorder %s28, 1
      %p110 = por %p108, %p109
      %p112 = scmp.ne.s32.totalorder %s97, %s111
      %p113 = scmp.eq.s32.totalorder %s28, 0
      %p114 = por %p112, %p113
      %s116 = sadd.s32 %s115, 1
      %p119 = scmp.eq.s32.totalorder %s22, 1
      %p120 = scmp.ne.s32.totalorder %s115, %s117
      %p121 = scmp.eq.s32.totalorder %s22, 0
      %p122 = por %p120, %p121
      %p123 = scmp.ne.s32.totalorder %s115, %s117
      %p124 = scmp.eq.s32.totalorder %s27, 1
      %p125 = por %p123, %p124
      %p126 = scmp.ne.s32.totalorder %s117, %s118
      %p127 = scmp.eq.s32.totalorder %s27, 0
      %p128 = por %p126, %p127
      %p129 = scmp.ne.s32.totalorder %s117, %s118
      %p130 = scmp.eq.s32.totalorder %s28, 1
      %p131 = por %p129, %p130
      %p133 = scmp.ne.s32.totalorder %s118, %s132
      %p134 = scmp.eq.s32.totalorder %s28, 0
      %p135 = por %p133, %p134
      %s136 = ssub.s32 %s30, %s37
      %p137 = scmp.eq.s32.totalorder %s136, 0
      %s139 = sadd.s32 %s138, 1
      %s140 = scalar_select %p137, %s138, %s139
      %p143 = pneg %p137
      %p144 = scmp.eq.s32.totalorder %s22, 1
      %p145 = por %p143, %p144
      %p146 = scmp.ne.s32.totalorder %s138, %s141
      %p147 = scmp.eq.s32.totalorder %s22, 0
      %p148 = por %p146, %p147
      %p149 = scmp.ne.s32.totalorder %s138, %s141
      %p150 = scmp.eq.s32.totalorder %s27, 1
      %p151 = por %p149, %p150
      %p152 = scmp.ne.s32.totalorder %s141, %s142
      %p153 = scmp.eq.s32.totalorder %s27, 0
      %p154 = por %p152, %p153
      %p155 = scmp.ne.s32.totalorder %s141, %s142
      %p156 = scmp.eq.s32.totalorder %s28, 1
      %p157 = por %p155, %p156
      %p159 = scmp.ne.s32.totalorder %s142, %s158
      %p160 = scmp.eq.s32.totalorder %s28, 0
      %p161 = por %p159, %p160
      %s162 = ssub.s32 %s30, %s37
      %p163 = scmp.eq.s32.totalorder %s162, 0
      %s165 = sadd.s32 %s164, 1
      %s166 = scalar_select %p163, %s164, %s165
      %p169 = pneg %p163
      %p170 = scmp.eq.s32.totalorder %s22, 1
      %p171 = por %p169, %p170
      %p172 = scmp.ne.s32.totalorder %s164, %s167
      %p173 = scmp.eq.s32.totalorder %s22, 0
      %p174 = por %p172, %p173
      %p175 = scmp.ne.s32.totalorder %s164, %s167
      %p176 = scmp.eq.s32.totalorder %s27, 1
      %p177 = por %p175, %p176
      %p178 = scmp.ne.s32.totalorder %s167, %s168
      %p179 = scmp.eq.s32.totalorder %s27, 0
      %p180 = por %p178, %p179
      %p181 = scmp.ne.s32.totalorder %s167, %s168
      %p182 = scmp.eq.s32.totalorder %s28, 1
      %p183 = por %p181, %p182
      %p185 = scmp.ne.s32.totalorder %s168, %s184
      %p186 = scmp.eq.s32.totalorder %s28, 0
      %p187 = por %p185, %p186
      %s188 = ssub.s32 %s29, %s41
      %s189 = ssub.s32 %s30, %s37
      %s190 = sor.u32 %s188, %s189
      %p191 = scmp.eq.s32.totalorder %s190, 0
      %s193 = sadd.s32 %s192, 1
      %s194 = scalar_select %p191, %s192, %s193
      %p197 = pneg %p191
      %p198 = scmp.eq.s32.totalorder %s22, 1
      %p199 = por %p197, %p198
      %p200 = scmp.ne.s32.totalorder %s192, %s195
      %p201 = scmp.eq.s32.totalorder %s22, 0
      %p202 = por %p200, %p201
      %p203 = scmp.ne.s32.totalorder %s192, %s195
      %p204 = scmp.eq.s32.totalorder %s27, 1
      %p205 = por %p203, %p204
      %p206 = scmp.ne.s32.totalorder %s195, %s196
      %p207 = scmp.eq.s32.totalorder %s27, 0
      %p208 = por %p206, %p207
      %p209 = scmp.ne.s32.totalorder %s195, %s196
      %p210 = scmp.eq.s32.totalorder %s28, 1
      %p211 = por %p209, %p210
      %p213 = scmp.ne.s32.totalorder %s196, %s212
      %p214 = scmp.eq.s32.totalorder %s28, 0
      %p215 = por %p213, %p214
      %p216 = scmp.le.s32.totalorder 1, %s22
      %p217 = scmp.lt.s32.totalorder %s22, 3
      %p218 = pnand %p216, %p217
      %p219 = pneg %p218
      // Predicated region
      $region9: #{tpu_custom_call.1} parent=5 // pred_check
        _
      $region10: #{tpu_custom_call.1} parent=5 // pred_check_branch
        %221 = sbr.rel (%p218) target = $region12
      $region11: #{tpu_custom_call.1} parent=5 // pred_region
        %s222 = ssub.s32 %s22, 1
        // Predicated region
        $region13: #{tpu_custom_call.1} parent=11 // pred_check
          %p223 = pneg %p107
        $region14: #{tpu_custom_call.1} parent=11 // pred_check_branch
          %225 = sbr.rel (%p223) target = $region16
        $region15: #{tpu_custom_call.1} parent=11 // pred_region
          %s227 = ssub.s32 256, 256
          %228 = vsyncadd [#allocation7], %s227
          %s229 = sshll.u32 [#allocation8], 4
          %s230 = int_to_ptr.vmem [resolvable:$true] %s229
          %235 = dma.hbm_to_vmem [thread:$0]  %s2, 256, %s230, [#allocation7], 128, 128, 8
        $region16: #{tpu_custom_call.1} parent=11 // pred_fallthru
          _
        // Predicated region
        $region17: #{tpu_custom_call.1} parent=11 // pred_check
          %p236 = pneg %p128
        $region18: #{tpu_custom_call.1} parent=11 // pred_check_branch
          %238 = sbr.rel (%p236) target = $region20
        $region19: #{tpu_custom_call.1} parent=11 // pred_region
          %s240 = ssub.s32 512, 512
          %241 = vsyncadd [#allocation10], %s240
          %s242 = sshll.u32 [#allocation9], 4
          %s243 = int_to_ptr.vmem [resolvable:$true] %s242
          %248 = dma.hbm_to_vmem [thread:$0]  %s3, 512, %s243, [#allocation10], 128, 128, 8
        $region20: #{tpu_custom_call.1} parent=11 // pred_fallthru
          _
        // Predicated region
        $region21: #{tpu_custom_call.1} parent=11 // pred_check
          %p249 = pneg %p154
        $region22: #{tpu_custom_call.1} parent=11 // pred_check_branch
          %251 = sbr.rel (%p249) target = $region24
        $region23: #{tpu_custom_call.1} parent=11 // pred_region
          %s253 = ssub.s32 512, 512
          %254 = vsyncadd [#allocation10], %s253
          %s255 = smul.addr %s32, 128
          %s256 = scalar_lea.hbm %s4, %s255
          %s257 = sshll.u32 [#allocation11], 4
          %s258 = int_to_ptr.vmem [resolvable:$true] %s257
          %263 = dma.hbm_to_vmem [thread:$0]  %s256, 512, %s258, [#allocation10], 128, 128, 8
        $region24: #{tpu_custom_call.1} parent=11 // pred_fallthru
          _
        // Predicated region
        $region25: #{tpu_custom_call.1} parent=11 // pred_check
          %p264 = pneg %p180
        $region26: #{tpu_custom_call.1} parent=11 // pred_check_branch
          %266 = sbr.rel (%p264) target = $region28
        $region27: #{tpu_custom_call.1} parent=11 // pred_region
          %p267 = scmp.lt.s32.totalorder %s32, 0
          %s268 = scalar_select %p267, %s32, 0
          %s269 = scalar_lea.vmem %s5, %s268
        $region28: #{tpu_custom_call.1} parent=11 // pred_fallthru
          _
      $region12: #{tpu_custom_call.1} parent=5 // pred_fallthru
        _
      %p270 = scmp.lt.s32.totalorder %s22, 2
      // Predicated region
      $region29: #{tpu_custom_call.1} parent=5 // pred_check
        %p271 = pneg %p270
      $region30: #{tpu_custom_call.1} parent=5 // pred_check_branch
        %273 = sbr.rel (%p271) target = $region32
      $region31: #{tpu_custom_call.1} parent=5 // pred_region
        // Predicated region
        $region33: #{tpu_custom_call.1} parent=31 // pred_check
          %p274 = pneg %p54
        $region34: #{tpu_custom_call.1} parent=31 // pred_check_branch
          %276 = sbr.rel (%p274) target = $region36
        $region35: #{tpu_custom_call.1} parent=31 // pred_region
          %s277 = sand.u32 %s44, 1
          %s278 = scalar_lea.sflag [#allocation4], %s277
          %s279 = sand.u32 %s44, 1
          %s280 = smul.addr %s279, 8
          %s281 = scalar_lea.vmem [#allocation3], %s280
          %s283 = ssub.s32 128, 128
          %284 = vsyncadd %s278, %s283
          %s285 = smul.addr %s29, 128
          %s286 = scalar_lea.hbm %s0, %s285
          %s288 = sshll.u32 %s281, 4
          %s289 = int_to_ptr.vmem [resolvable:$true] %s288
          %291 = dma.hbm_to_vmem [thread:$0]  %s286, 128, %s289, %s278
        $region36: #{tpu_custom_call.1} parent=31 // pred_fallthru
          _
        // Predicated region
        $region37: #{tpu_custom_call.1} parent=31 // pred_check
          %p292 = pneg %p80
        $region38: #{tpu_custom_call.1} parent=31 // pred_check_branch
          %294 = sbr.rel (%p292) target = $region40
        $region39: #{tpu_custom_call.1} parent=31 // pred_region
          %s295 = sand.u32 %s22, 1
          %s296 = scalar_lea.sflag [#allocation7], %s295
          %s297 = sand.u32 %s70, 1
          %s298 = scalar_lea.vmem [#allocation6], %s297
          %s300 = ssub.s32 16, 16
          %301 = vsyncadd %s296, %s300
          %s302 = smul.addr %s29, 16
          %s303 = scalar_lea.hbm %s1, %s302
          %s305 = sshll.u32 %s298, 4
          %s306 = int_to_ptr.vmem [resolvable:$true] %s305
          %308 = dma.hbm_to_vmem [thread:$0]  %s303, 16, %s306, %s296
        $region40: #{tpu_custom_call.1} parent=31 // pred_fallthru
          _
      $region32: #{tpu_custom_call.1} parent=5 // pred_fallthru
        _
      %p309 = scmp.le.s32.totalorder 1, %s22
      %p310 = scmp.lt.s32.totalorder %s22, 3
      %p311 = pnand %p309, %p310
      %p312 = pneg %p311
      // Predicated region
      $region41: #{tpu_custom_call.1} parent=5 // pred_check
        _
      $region42: #{tpu_custom_call.1} parent=5 // pred_check_branch
        %314 = sbr.rel (%p311) target = $region44
      $region43: #{tpu_custom_call.1} parent=5 // pred_region
        %s315 = ssub.s32 %s22, 1
        %s316 = sand.u32 %s47, 1
        %s317 = scalar_lea.sflag [#allocation4], %s316
        %s318 = sand.u32 %s47, 1
        %s319 = smul.addr %s318, 8
        %s320 = scalar_lea.vmem [#allocation3], %s319
        // Predicated region
        $region45: #{tpu_custom_call.1} parent=43 // pred_check
          %p321 = pneg %p60
        $region46: #{tpu_custom_call.1} parent=43 // pred_check_branch
          %323 = sbr.rel (%p321) target = $region48
        $region47: #{tpu_custom_call.1} parent=43 // pred_region
          %324 = dma.done %s317, 128
        $region48: #{tpu_custom_call.1} parent=43 // pred_fallthru
          _
        %s325 = sand.u32 %s27, 1
        %s326 = scalar_lea.sflag [#allocation7], %s325
        %s327 = sand.u32 %s73, 1
        %s328 = scalar_lea.vmem [#allocation6], %s327
        // Predicated region
        $region49: #{tpu_custom_call.1} parent=43 // pred_check
          %p329 = pneg %p86
        $region50: #{tpu_custom_call.1} parent=43 // pred_check_branch
          %331 = sbr.rel (%p329) target = $region52
        $region51: #{tpu_custom_call.1} parent=43 // pred_region
          %332 = dma.done %s326, 16
        $region52: #{tpu_custom_call.1} parent=43 // pred_fallthru
          _
        // Predicated region
        $region53: #{tpu_custom_call.1} parent=43 // pred_check
          %p333 = pneg %p107
        $region54: #{tpu_custom_call.1} parent=43 // pred_check_branch
          %335 = sbr.rel (%p333) target = $region56
        $region55: #{tpu_custom_call.1} parent=43 // pred_region
          %336 = dma.done [#allocation7], 256
        $region56: #{tpu_custom_call.1} parent=43 // pred_fallthru
          _
        // Predicated region
        $region57: #{tpu_custom_call.1} parent=43 // pred_check
          %p337 = pneg %p128
        $region58: #{tpu_custom_call.1} parent=43 // pred_check_branch
          %339 = sbr.rel (%p337) target = $region60
        $region59: #{tpu_custom_call.1} parent=43 // pred_region
          %340 = dma.done [#allocation10], 512
        $region60: #{tpu_custom_call.1} parent=43 // pred_fallthru
          _
        // Predicated region
        $region61: #{tpu_custom_call.1} parent=43 // pred_check
          %p341 = pneg %p154
        $region62: #{tpu_custom_call.1} parent=43 // pred_check_branch
          %343 = sbr.rel (%p341) target = $region64
        $region63: #{tpu_custom_call.1} parent=43 // pred_region
          %344 = dma.done [#allocation10], 512
        $region64: #{tpu_custom_call.1} parent=43 // pred_fallthru
          _
        %s345 = sand.u32 %s47, 1
        %s346 = scalar_lea.sflag [#allocation4], %s345
        %s347 = sand.u32 %s47, 1
        %s348 = smul.addr %s347, 8
        %s349 = scalar_lea.vmem [#allocation3], %s348
        %p350 = pneg %p60
        %p351 = pneg %p57
        %s352 = sand.u32 %s27, 1
        %s353 = scalar_lea.sflag [#allocation7], %s352
        %s354 = sand.u32 %s73, 1
        %s355 = scalar_lea.vmem [#allocation6], %s354
        %p356 = pneg %p86
        %p357 = pneg %p83
        %p358 = pneg %p107
        %p359 = pneg %p104
        %p360 = pneg %p128
        %p361 = pneg %p125
        %p362 = pneg %p154
        %p363 = pneg %p151
        %p364 = scmp.lt.s32.totalorder %s32, 0
        %s365 = scalar_select %p364, %s32, 0
        %s366 = scalar_lea.vmem %s5, %s365
        %p367 = pneg %p180
        %p368 = pneg %p177
        %p369 = pneg %p208
        %p370 = pneg %p205
        %s371 = sand.u32 %s195, 1
        %s372 = scalar_lea.sflag [#allocation5], %s371
        %s373 = sand.u32 %s195, 1
        %s374 = smul.addr %s373, 8
        %s375 = scalar_lea.vmem [#allocation12], %s374
        %p376 = scmp.lt.s32.totalorder %s32, 0
        %s377 = scalar_select %p376, %s32, 0
        %s378 = scalar_lea.vmem %s5, %s377
        %p379 = scmp.eq.s32.totalorder %s32, 0
        // Predicated region
        $region65: #{tpu_custom_call.1} parent=43 // pred_check
          %p380 = pneg %p379
        $region66: #{tpu_custom_call.1} parent=43 // pred_check_branch
          %382 = sbr.rel (%p380) target = $region68
        $region67: #{tpu_custom_call.1} parent=43 // pred_region
          %v383 = vld [vmem:[%s320] sm:$0xff]
          %v384 = vmul.f32 %v383, 0.1
          %v385 = vld [vmem:[%s328] sm:$0x1]
          %v386 = vld [vmem:[#allocation8] sm:$0x1]
          %v387 = vld [vmem:[#allocation8 + $0x1] sm:$0x1]
          %v388 = vld [vmem:[#allocation8 + $0x2] sm:$0x1]
          %v389 = vld [vmem:[#allocation8 + $0x3] sm:$0x1]
          %v390 = vld [vmem:[#allocation8 + $0x4] sm:$0x1]
          %v391 = vlaneseq
          %v392 = vshrl.u32 %v391, 7
          %v393 = vsub.s32 0, %v392
          %v394 = vrot.slane %v386, %v393
          %v395 = vmul.f32 %v384, %v394
          %vm396 = vcmask 261120
          %v397 = vsel %vm396, %v395, 0.0
          %398 = vadd.xlane.f32.xlu0 %v397
          %v399 = vpop.xlane.xlu0 %398
          %v400 = vrcp.pop 32.0
          %v401 = vmul.f32 %v399, %v400
          %v402 = vsub.f32 %v395, %v401
          %v403 = vmul.f32 %v402, %v402
          %v404 = vsel %vm396, %v403, 0.0
          %405 = vadd.xlane.f32.xlu0 %v404
          %v406 = vpop.xlane.xlu0 %405
          %v407 = vmul.f32 %v406, %v400
          %v408 = vadd.f32 %v407, 1e-08
          %v409 = vrsqrt.pop %v408
          %v410 = vmul.f32 %v402, %v409
          %v411 = vlaneseq
          %v412 = vshrl.u32 %v411, 7
          %v413 = vsub.s32 0, %v412
          %v414 = vrot.slane %v388, %v413
          %v415 = vmul.f32 %v410, %v414
          %v416 = vlaneseq
          %v417 = vshrl.u32 %v416, 7
          %v418 = vsub.s32 0, %v417
          %v419 = vrot.slane %v389, %v418
          %v420 = vadd.f32 %v415, %v419
          %v421 = vlaneseq
          %v422 = vshrl.u32 %v421, 7
          %v423 = vsub.s32 0, %v422
          %v424 = vrot.slane %v390, %v423
          %v425 = vmul.f32 %v420, %v424
          %v426 = vlaneseq
          %v427 = vshrl.u32 %v426, 7
          %v428 = vsub.s32 0, %v427
          %v429 = vrot.slane %v387, %v428
          %v430 = vmul.f32 %v384, %v429
          %v431 = vsel %vm396, %v430, 0.0
          %432 = vadd.xlane.f32.xlu0 %v431
          %v433 = vpop.xlane.xlu0 %432
          %v434 = vmul.f32 %v433, %v400
          %v435 = vsub.f32 %v430, %v434
          %v436 = vmul.f32 %v435, %v435
          %v437 = vsel %vm396, %v436, 0.0
          %438 = vadd.xlane.f32.xlu0 %v437
          %v439 = vpop.xlane.xlu0 %438
          %v440 = vmul.f32 %v439, %v400
          %v441 = vadd.f32 %v440, 1e-08
          %v442 = vrsqrt.pop %v441
          %v443 = vmul.f32 %v435, %v442
          %v444 = vmul.f32 %v443, %v414
          %v445 = vadd.f32 %v444, %v419
          %v446 = vmul.f32 %v445, %v424
          %v447 = vadd.f32 %v425, 0.0
          %v448 = vmul.f32 %v446, 0.0
          %v449 = vsub.f32 %v447, %v448
          %v450 = vmul.f32 %v425, 0.0
          %v451 = vadd.f32 %v450, 0.0
          %v452 = vadd.f32 %v451, %v446
          %v453 = vld [vmem:[#allocation8 + $0x5] sm:$0x1]
          %v454 = vld [vmem:[#allocation8 + $0x6] sm:$0x1]
          %v455 = vld [vmem:[#allocation8 + $0x7] sm:$0x1]
          %v456 = vld [vmem:[#allocation8 + $0x8] sm:$0x1]
          %v457 = vld [vmem:[#allocation8 + $0x9] sm:$0x1]
          %v458 = vlaneseq
          %v459 = vshrl.u32 %v458, 7
          %v460 = vsub.s32 0, %v459
          %v461 = vrot.slane %v453, %v460
          %v462 = vmul.f32 %v384, %v461
          %v463 = vsel %vm396, %v462, 0.0
          %464 = vadd.xlane.f32.xlu0 %v463
          %v465 = vpop.xlane.xlu0 %464
          %v466 = vmul.f32 %v465, %v400
          %v467 = vsub.f32 %v462, %v466
          %v468 = vmul.f32 %v467, %v467
          %v469 = vsel %vm396, %v468, 0.0
          %470 = vadd.xlane.f32.xlu0 %v469
          %v471 = vpop.xlane.xlu0 %470
          %v472 = vmul.f32 %v471, %v400
          %v473 = vadd.f32 %v472, 1e-08
          %v474 = vrsqrt.pop %v473
          %v475 = vmul.f32 %v467, %v474
          %v476 = vlaneseq
          %v477 = vshrl.u32 %v476, 7
          %v478 = vsub.s32 0, %v477
          %v479 = vrot.slane %v455, %v478
          %v480 = vmul.f32 %v475, %v479
          %v481 = vlaneseq
          %v482 = vshrl.u32 %v481, 7
          %v483 = vsub.s32 0, %v482
          %v484 = vrot.slane %v456, %v483
          %v485 = vadd.f32 %v480, %v484
          %v486 = vlaneseq
          %v487 = vshrl.u32 %v486, 7
          %v488 = vsub.s32 0, %v487
          %v489 = vrot.slane %v457, %v488
          %v490 = vmul.f32 %v485, %v489
          %v491 = vlaneseq
          %v492 = vshrl.u32 %v491, 7
          %v493 = vsub.s32 0, %v492
          %v494 = vrot.slane %v454, %v493
          %v495 = vmul.f32 %v384, %v494
          %v496 = vsel %vm396, %v495, 0.0
          %497 = vadd.xlane.f32.xlu0 %v496
          %v498 = vpop.xlane.xlu0 %497
          %v499 = vmul.f32 %v498, %v400
          %v500 = vsub.f32 %v495, %v499
          %v501 = vmul.f32 %v500, %v500
          %v502 = vsel %vm396, %v501, 0.0
          %503 = vadd.xlane.f32.xlu0 %v502
          %v504 = vpop.xlane.xlu0 %503
          %v505 = vmul.f32 %v504, %v400
          %v506 = vadd.f32 %v505, 1e-08
          %v507 = vrsqrt.pop %v506
          %v508 = vmul.f32 %v500, %v507
          %v509 = vmul.f32 %v508, %v479
          %v510 = vadd.f32 %v509, %v484
          %v511 = vmul.f32 %v510, %v489
          %v512 = vmul.f32 %v490, -0.5
          %v513 = vadd.f32 %v449, %v512
          %v514 = vmul.f32 %v511, 0.8660254
          %v515 = vsub.f32 %v513, %v514
          %v516 = vmul.f32 %v490, 0.8660254
          %v517 = vadd.f32 %v452, %v516
          %v518 = vmul.f32 %v511, -0.5
          %v519 = vadd.f32 %v517, %v518
          %v520 = vld [vmem:[#allocation8 + $0xa] sm:$0x1]
          %v521 = vld [vmem:[#allocation8 + $0xb] sm:$0x1]
          %v522 = vld [vmem:[#allocation8 + $0xc] sm:$0x1]
          %v523 = vld [vmem:[#allocation8 + $0xd] sm:$0x1]
          %v524 = vld [vmem:[#allocation8 + $0xe] sm:$0x1]
          %v525 = vlaneseq
          %v526 = vshrl.u32 %v525, 7
          %v527 = vsub.s32 0, %v526
          %v528 = vrot.slane %v520, %v527
          %v529 = vmul.f32 %v384, %v528
          %v530 = vsel %vm396, %v529, 0.0
          %531 = vadd.xlane.f32.xlu0 %v530
          %v532 = vpop.xlane.xlu0 %531
          %v533 = vmul.f32 %v532, %v400
          %v534 = vsub.f32 %v529, %v533
          %v535 = vmul.f32 %v534, %v534
          %v536 = vsel %vm396, %v535, 0.0
          %537 = vadd.xlane.f32.xlu0 %v536
          %v538 = vpop.xlane.xlu0 %537
          %v539 = vmul.f32 %v538, %v400
          %v540 = vadd.f32 %v539, 1e-08
          %v541 = vrsqrt.pop %v540
          %v542 = vmul.f32 %v534, %v541
          %v543 = vlaneseq
          %v544 = vshrl.u32 %v543, 7
          %v545 = vsub.s32 0, %v544
          %v546 = vrot.slane %v522, %v545
          %v547 = vmul.f32 %v542, %v546
          %v548 = vlaneseq
          %v549 = vshrl.u32 %v548, 7
          %v550 = vsub.s32 0, %v549
          %v551 = vrot.slane %v523, %v550
          %v552 = vadd.f32 %v547, %v551
          %v553 = vlaneseq
          %v554 = vshrl.u32 %v553, 7
          %v555 = vsub.s32 0, %v554
          %v556 = vrot.slane %v524, %v555
          %v557 = vmul.f32 %v552, %v556
          %v558 = vlaneseq
          %v559 = vshrl.u32 %v558, 7
          %v560 = vsub.s32 0, %v559
          %v561 = vrot.slane %v521, %v560
          %v562 = vmul.f32 %v384, %v561
          %v563 = vsel %vm396, %v562, 0.0
          %564 = vadd.xlane.f32.xlu0 %v563
          %v565 = vpop.xlane.xlu0 %564
          %v566 = vmul.f32 %v565, %v400
          %v567 = vsub.f32 %v562, %v566
          %v568 = vmul.f32 %v567, %v567
          %v569 = vsel %vm396, %v568, 0.0
          %570 = vadd.xlane.f32.xlu0 %v569
          %v571 = vpop.xlane.xlu0 %570
          %v572 = vmul.f32 %v571, %v400
          %v573 = vadd.f32 %v572, 1e-08
          %v574 = vrsqrt.pop %v573
          %v575 = vmul.f32 %v567, %v574
          %v576 = vmul.f32 %v575, %v546
          %v577 = vadd.f32 %v576, %v551
          %v578 = vmul.f32 %v577, %v556
          %v579 = vmul.f32 %v557, -0.5
          %v580 = vadd.f32 %v515, %v579
          %v581 = vmul.f32 %v578, -0.8660254
          %v582 = vsub.f32 %v580, %v581
          %v583 = vmul.f32 %v557, -0.8660254
          %v584 = vadd.f32 %v519, %v583
          %v585 = vmul.f32 %v578, -0.5
          %v586 = vadd.f32 %v584, %v585
          %v587 = vmul.f32 %v582, %v582
          %v588 = vmul.f32 %v586, %v586
          %v589 = vadd.f32 %v587, %v588
          %v590 = vadd.f32 %v589, 1e-08
          %v591 = vrsqrt.pop %v590
          %v592 = vmul.f32 %v590, %v591
          %vm593 = vcmp.eq.f32.partialorder %v590, inf
          %v594 = vsel %vm593, %v590, %v592
          %vm595 = vcmp.eq.f32.partialorder %v590, 0.0
          %v596 = vand.u32 %v590, 2147483648
          %v597 = vsel %vm595, %v596, %v594
          %vm598 = vcmp.lt.f32.partialorder %v597, 0.1
          %v599 = vsel %vm598, 1, 0
          %v600 = vcvt.s32.f32 %v599
          %v601 = vld [vmem:[#allocation8 + $0xf] sm:$0x1]
          %v602 = vlaneseq
          %v603 = vshrl.u32 %v602, 7
          %v604 = vsub.s32 0, %v603
          %v605 = vrot.slane %v601, %v604
          %v606 = vmul.f32 %v600, %v605
          %v607 = vadd.f32 %v582, %v606
          %v608 = vadd.f32 %v586, %v606
          %v609 = vmul.f32 %v607, %v607
          %v610 = vmul.f32 %v608, %v608
          %v611 = vadd.f32 %v609, %v610
          %v612 = vadd.f32 %v611, 1e-08
          %v613 = vrsqrt.pop %v612
          %v614 = vmul.f32 %v607, %v613
          %v615 = vmax.f32 %v614, -1.0
          %v616 = vmin.f32 %v615, 1.0
          %v617 = vmul.f32 %v608, %v613
          %v618 = vmax.f32 %v617, -1.0
          %v619 = vmin.f32 %v618, 1.0
          %v620 = vld [vmem:[#allocation9] sm:$0x1]
          %v621 = vld [vmem:[#allocation9 + $0x1] sm:$0x1]
          %v622 = vld [vmem:[#allocation9 + $0x2] sm:$0x1]
          %v623 = vld [vmem:[#allocation9 + $0x3] sm:$0x1]
          %v624 = vld [vmem:[#allocation9 + $0x4] sm:$0x1]
          %v625 = vld [vmem:[#allocation9 + $0x5] sm:$0x1]
          %v626 = vld [vmem:[#allocation9 + $0x6] sm:$0x1]
          %v627 = vld [vmem:[#allocation9 + $0x7] sm:$0x1]
          %v628 = vld [vmem:[#allocation9 + $0x8] sm:$0x1]
          %v629 = vld [vmem:[#allocation9 + $0x9] sm:$0x1]
          %v630 = vsel %vm396, %v616, 0.0
          %631 = vadd.xlane.f32.xlu0 %v630
          %v632 = vpop.xlane.xlu0 %631
          %v633 = vmul.f32 %v632, %v400
          %v634 = vsub.f32 %v616, %v633
          %v635 = vmul.f32 %v634, %v634
          %v636 = vsel %vm396, %v635, 0.0
          %637 = vadd.xlane.f32.xlu0 %v636
          %v638 = vpop.xlane.xlu0 %637
          %v639 = vmul.f32 %v638, %v400
          %v640 = vadd.f32 %v639, 1e-05
          %v641 = vrsqrt.pop %v640
          %v642 = vmul.f32 %v634, %v641
          %v643 = vsel %vm396, %v619, 0.0
          %644 = vadd.xlane.f32.xlu0 %v643
          %v645 = vpop.xlane.xlu0 %644
          %v646 = vmul.f32 %v645, %v400
          %v647 = vsub.f32 %v619, %v646
          %v648 = vmul.f32 %v647, %v647
          %v649 = vsel %vm396, %v648, 0.0
          %650 = vadd.xlane.f32.xlu0 %v649
          %v651 = vpop.xlane.xlu0 %650
          %v652 = vmul.f32 %v651, %v400
          %v653 = vadd.f32 %v652, 1e-05
          %v654 = vrsqrt.pop %v653
          %v655 = vmul.f32 %v647, %v654
          %v656 = vlaneseq
          %v657 = vshrl.u32 %v656, 7
          %v658 = vsub.s32 0, %v657
          %v659 = vrot.slane %v620, %v658
          %v660 = vmul.f32 %v642, %v659
          %v661 = vlaneseq
          %v662 = vshrl.u32 %v661, 7
          %v663 = vsub.s32 0, %v662
          %v664 = vrot.slane %v621, %v663
          %v665 = vadd.f32 %v660, %v664
          %v666 = vmul.f32 %v655, %v659
          %v667 = vadd.f32 %v666, %v664
          %v668 = vlaneseq
          %v669 = vshrl.u32 %v668, 7
          %v670 = vsub.s32 0, %v669
          %v671 = vrot.slane %v622, %v670
          %v672 = vmul.f32 %v642, %v671
          %v673 = vlaneseq
          %v674 = vshrl.u32 %v673, 7
          %v675 = vsub.s32 0, %v674
          %v676 = vrot.slane %v623, %v675
          %v677 = vadd.f32 %v672, %v676
          %v678 = vmul.f32 %v655, %v671
          %v679 = vadd.f32 %v678, %v676
          %v680 = vlaneseq
          %v681 = vshrl.u32 %v680, 7
          %v682 = vsub.s32 0, %v681
          %v683 = vrot.slane %v624, %v682
          %v684 = vmul.f32 %v642, %v683
          %v685 = vlaneseq
          %v686 = vshrl.u32 %v685, 7
          %v687 = vsub.s32 0, %v686
          %v688 = vrot.slane %v625, %v687
          %v689 = vadd.f32 %v684, %v688
          %v690 = vmul.f32 %v655, %v683
          %v691 = vadd.f32 %v690, %v688
          %v692 = vadd.f32 %v665, 1e-08
          %v693 = vadd.f32 %v667, 1e-08
          %v694 = vmul.f32 %v692, %v692
          %v695 = vmul.f32 %v693, %v693
          %v696 = vadd.f32 %v694, %v695
          %v697 = vrsqrt.pop %v696
          %v698 = vmul.f32 %v692, %v697
          %v699 = vmul.f32 %v693, %v697
          %v700 = vadd.f32 %v677, 1e-08
          %v701 = vadd.f32 %v679, 1e-08
          %v702 = vmul.f32 %v700, %v700
          %v703 = vmul.f32 %v701, %v701
          %v704 = vadd.f32 %v702, %v703
          %v705 = vrsqrt.pop %v704
          %v706 = vmul.f32 %v700, %v705
          %v707 = vmul.f32 %v701, %v705
          %v708 = vlaneseq
          %v709 = vshrl.u32 %v708, 7
          %v710 = vsub.s32 0, %v709
          %v711 = vrot.slane %v626, %v710
          %v712 = vmul.f32 %v698, %v711
          %v713 = vmul.f32 %v699, %v711
          %v715 = vsel %vm396, %v713, 0
          %v718 = vsel %vm396, %v707, 0
          %720 = vmatprep.subr.mxu0 0.0
          %721 = vmatpush1.xpose.msra.mxu0 0.0
          %722 = vmatprep.subr.mxu0 0.0
          %723 = vmatpush1.xpose.msra.mxu0 0.0
          %724 = vmatprep.subr.mxu0 0.0
          %725 = vmatpush1.xpose.msra.mxu0 0.0
          %726 = vmatprep.subr.mxu0 0.0
          %727 = vmatpush1.xpose.msra.mxu0 0.0
          %728 = vmatprep.subr.mxu0 0.0
          %729 = vmatpush1.xpose.msra.mxu0 0.0
          %730 = vmatprep.subr.mxu0 0.0
          %731 = vmatpush1.xpose.msra.mxu0 0.0
          %732 = vmatprep.subr.mxu0 0.0
          %733 = vmatpush1.xpose.msra.mxu0 0.0
          %734 = vmatprep.subr.mxu0 0.0
          %735 = vmatpush1.xpose.msra.mxu0 0.0
          %736 = vmatprep.subr.mxu0 0.0
          %737 = vmatpush1.xpose.msra.mxu0 0.0
          %738 = vmatprep.subr.mxu0 0.0
          %739 = vmatpush1.xpose.msra.mxu0 0.0
          %740 = vmatprep.subr.mxu0 0.0
          %741 = vmatpush1.xpose.msra.mxu0 0.0
          %742 = vmatprep.subr.mxu0 0.0
          %743 = vmatpush1.xpose.msra.mxu0 0.0
          %744 = vmatprep.subr.mxu0 0.0
          %745 = vmatpush1.xpose.msra.mxu0 0.0
          %746 = vmatprep.subr.mxu0 0.0
          %747 = vmatpush1.xpose.msra.mxu0 0.0
          %748 = vmatprep.subr.mxu0 0.0
          %749 = vmatpush1.xpose.msra.mxu0 0.0
          %750 = vmatprep.subr.mxu0 0.0
          %751 = vmatpush1.xpose.msra.mxu0 %v718
          %752 = vmatprep.subr.mxu0 0.0
          %753 = vmatpush2.xpose.msra.mxu0 0.0
          %754 = vmatprep.subr.mxu0 0.0
          %755 = vmatpush2.xpose.msra.mxu0 0.0
          %756 = vmatprep.subr.mxu0 0.0
          %757 = vmatpush2.xpose.msra.mxu0 0.0
          %758 = vmatprep.subr.mxu0 0.0
          %759 = vmatpush2.xpose.msra.mxu0 0.0
          %760 = vmatprep.subr.mxu0 0.0
          %761 = vmatpush2.xpose.msra.mxu0 0.0
          %762 = vmatprep.subr.mxu0 0.0
          %763 = vmatpush2.xpose.msra.mxu0 0.0
          %764 = vmatprep.subr.mxu0 0.0
          %765 = vmatpush2.xpose.msra.mxu0 0.0
          %766 = vmatprep.subr.mxu0 0.0
          %767 = vmatpush2.xpose.msra.mxu0 0.0
          %768 = vmatprep.subr.mxu0 0.0
          %769 = vmatpush2.xpose.msra.mxu0 0.0
          %770 = vmatprep.subr.mxu0 0.0
          %771 = vmatpush2.xpose.msra.mxu0 0.0
          %772 = vmatprep.subr.mxu0 0.0
          %773 = vmatpush2.xpose.msra.mxu0 0.0
          %774 = vmatprep.subr.mxu0 0.0
          %775 = vmatpush2.xpose.msra.mxu0 0.0
          %776 = vmatprep.subr.mxu0 0.0
          %777 = vmatpush2.xpose.msra.mxu0 0.0
          %778 = vmatprep.subr.mxu0 0.0
          %779 = vmatpush2.xpose.msra.mxu0 0.0
          %780 = vmatprep.subr.mxu0 0.0
          %781 = vmatpush2.xpose.msra.mxu0 0.0
          %782 = vmatprep.subr.mxu0 0.0
          %783 = vmatpush2.xpose.msra.mxu0 0.0
          %784 = vmatprep.mubr.f32.mxu0 0.0
          %785 = vmatmul.mubr.f32.gmra.mxu0 %v715
          %v786 = vpop.f32.mrf.mxu0
          %v787 = vadd.f32 0.0, %v786
          %v788 = vpop.f32.mrf.mxu0
          %789 = vdwg.mxu0
          %v791 = vsel %vm396, %v712, 0
          %v794 = vsel %vm396, %v706, 0
          %796 = vmatprep.subr.mxu0 0.0
          %797 = vmatpush1.xpose.msra.mxu0 0.0
          %798 = vmatprep.subr.mxu0 0.0
          %799 = vmatpush1.xpose.msra.mxu0 0.0
          %800 = vmatprep.subr.mxu0 0.0
          %801 = vmatpush1.xpose.msra.mxu0 0.0
          %802 = vmatprep.subr.mxu0 0.0
          %803 = vmatpush1.xpose.msra.mxu0 0.0
          %804 = vmatprep.subr.mxu0 0.0
          %805 = vmatpush1.xpose.msra.mxu0 0.0
          %806 = vmatprep.subr.mxu0 0.0
          %807 = vmatpush1.xpose.msra.mxu0 0.0
          %808 = vmatprep.subr.mxu0 0.0
          %809 = vmatpush1.xpose.msra.mxu0 0.0
          %810 = vmatprep.subr.mxu0 0.0
          %811 = vmatpush1.xpose.msra.mxu0 0.0
          %812 = vmatprep.subr.mxu0 0.0
          %813 = vmatpush1.xpose.msra.mxu0 0.0
          %814 = vmatprep.subr.mxu0 0.0
          %815 = vmatpush1.xpose.msra.mxu0 0.0
          %816 = vmatprep.subr.mxu0 0.0
          %817 = vmatpush1.xpose.msra.mxu0 0.0
          %818 = vmatprep.subr.mxu0 0.0
          %819 = vmatpush1.xpose.msra.mxu0 0.0
          %820 = vmatprep.subr.mxu0 0.0
          %821 = vmatpush1.xpose.msra.mxu0 0.0
          %822 = vmatprep.subr.mxu0 0.0
          %823 = vmatpush1.xpose.msra.mxu0 0.0
          %824 = vmatprep.subr.mxu0 0.0
          %825 = vmatpush1.xpose.msra.mxu0 0.0
          %826 = vmatprep.subr.mxu0 0.0
          %827 = vmatpush1.xpose.msra.mxu0 %v794
          %828 = vmatprep.subr.mxu0 0.0
          %829 = vmatpush2.xpose.msra.mxu0 0.0
          %830 = vmatprep.subr.mxu0 0.0
          %831 = vmatpush2.xpose.msra.mxu0 0.0
          %832 = vmatprep.subr.mxu0 0.0
          %833 = vmatpush2.xpose.msra.mxu0 0.0
          %834 = vmatprep.subr.mxu0 0.0
          %835 = vmatpush2.xpose.msra.mxu0 0.0
          %836 = vmatprep.subr.mxu0 0.0
          %837 = vmatpush2.xpose.msra.mxu0 0.0
          %838 = vmatprep.subr.mxu0 0.0
          %839 = vmatpush2.xpose.msra.mxu0 0.0
          %840 = vmatprep.subr.mxu0 0.0
          %841 = vmatpush2.xpose.msra.mxu0 0.0
          %842 = vmatprep.subr.mxu0 0.0
          %843 = vmatpush2.xpose.msra.mxu0 0.0
          %844 = vmatprep.subr.mxu0 0.0
          %845 = vmatpush2.xpose.msra.mxu0 0.0
          %846 = vmatprep.subr.mxu0 0.0
          %847 = vmatpush2.xpose.msra.mxu0 0.0
          %848 = vmatprep.subr.mxu0 0.0
          %849 = vmatpush2.xpose.msra.mxu0 0.0
          %850 = vmatprep.subr.mxu0 0.0
          %851 = vmatpush2.xpose.msra.mxu0 0.0
          %852 = vmatprep.subr.mxu0 0.0
          %853 = vmatpush2.xpose.msra.mxu0 0.0
          %854 = vmatprep.subr.mxu0 0.0
          %855 = vmatpush2.xpose.msra.mxu0 0.0
          %856 = vmatprep.subr.mxu0 0.0
          %857 = vmatpush2.xpose.msra.mxu0 0.0
          %858 = vmatprep.subr.mxu0 0.0
          %859 = vmatpush2.xpose.msra.mxu0 0.0
          %860 = vmatprep.mubr.f32.mxu0 0.0
          %861 = vmatmul.mubr.f32.gmra.mxu0 %v791
          %v862 = vpop.f32.mrf.mxu0
          %v863 = vadd.f32 %v787, %v862
          %v864 = vpop.f32.mrf.mxu0
          %865 = vdwg.mxu0
          %vm866 = vcmp.gt.f32.partialorder %v385, 0.5
          %v867 = vsel %vm866, 1, 0
          %v868 = vlaneseq
          %v869 = vshrl.u32 %v868, 7
          %v870 = vsub.s32 0, %v869
          %v871 = vrot.slane %v867, %v870
          %vm872 = vcmp.eq.s32.totalorder %v871, 1
          %v873 = vsel %vm872, -1e+30, %v863
          %vm874 = vcmask 64512
          %v875 = vsel %vm874, %v873, -inf
          %876 = vmax.xlane.f32.xlu0 %v875
          %v877 = vpop.xlane.xlu0 %876
          %v878 = vsub.f32 %v873, %v877
          %v879 = vmul.f32 %v878, 1.442695
          %v880 = vpow.pop %v879
          %v881 = vsel %vm874, %v880, 0.0
          %882 = vadd.xlane.f32.xlu0 %v881
          %v883 = vpop.xlane.xlu0 %882
          %v884 = vrcp.pop %v883
          %v885 = vmul.f32 %v880, %v884
          %v886 = vmax.f32 %v885, 1e-06
          %v887 = vmin.f32 %v886, 1.0
          %v889 = vsel %vm874, %v887, 0
          %891 = vmatprep.subr.mxu0 0.0
          %892 = vmatpush1.msra.mxu0 0.0
          %893 = vmatprep.subr.mxu0 0.0
          %894 = vmatpush1.msra.mxu0 0.0
          %895 = vmatprep.subr.mxu0 0.0
          %896 = vmatpush1.msra.mxu0 0.0
          %897 = vmatprep.subr.mxu0 0.0
          %898 = vmatpush1.msra.mxu0 0.0
          %899 = vmatprep.subr.mxu0 0.0
          %900 = vmatpush1.msra.mxu0 0.0
          %901 = vmatprep.subr.mxu0 0.0
          %902 = vmatpush1.msra.mxu0 0.0
          %903 = vmatprep.subr.mxu0 0.0
          %904 = vmatpush1.msra.mxu0 0.0
          %905 = vmatprep.subr.mxu0 0.0
          %906 = vmatpush1.msra.mxu0 0.0
          %907 = vmatprep.subr.mxu0 0.0
          %908 = vmatpush1.msra.mxu0 0.0
          %909 = vmatprep.subr.mxu0 0.0
          %910 = vmatpush1.msra.mxu0 0.0
          %911 = vmatprep.subr.mxu0 0.0
          %912 = vmatpush1.msra.mxu0 0.0
          %913 = vmatprep.subr.mxu0 0.0
          %914 = vmatpush1.msra.mxu0 0.0
          %915 = vmatprep.subr.mxu0 0.0
          %916 = vmatpush1.msra.mxu0 0.0
          %917 = vmatprep.subr.mxu0 0.0
          %918 = vmatpush1.msra.mxu0 0.0
          %919 = vmatprep.subr.mxu0 0.0
          %920 = vmatpush1.msra.mxu0 0.0
          %921 = vmatprep.subr.mxu0 0.0
          %922 = vmatpush1.msra.mxu0 %v689
          %923 = vmatprep.subr.mxu0 0.0
          %924 = vmatpush2.msra.mxu0 0.0
          %925 = vmatprep.subr.mxu0 0.0
          %926 = vmatpush2.msra.mxu0 0.0
          %927 = vmatprep.subr.mxu0 0.0
          %928 = vmatpush2.msra.mxu0 0.0
          %929 = vmatprep.subr.mxu0 0.0
          %930 = vmatpush2.msra.mxu0 0.0
          %931 = vmatprep.subr.mxu0 0.0
          %932 = vmatpush2.msra.mxu0 0.0
          %933 = vmatprep.subr.mxu0 0.0
          %934 = vmatpush2.msra.mxu0 0.0
          %935 = vmatprep.subr.mxu0 0.0
          %936 = vmatpush2.msra.mxu0 0.0
          %937 = vmatprep.subr.mxu0 0.0
          %938 = vmatpush2.msra.mxu0 0.0
          %939 = vmatprep.subr.mxu0 0.0
          %940 = vmatpush2.msra.mxu0 0.0
          %941 = vmatprep.subr.mxu0 0.0
          %942 = vmatpush2.msra.mxu0 0.0
          %943 = vmatprep.subr.mxu0 0.0
          %944 = vmatpush2.msra.mxu0 0.0
          %945 = vmatprep.subr.mxu0 0.0
          %946 = vmatpush2.msra.mxu0 0.0
          %947 = vmatprep.subr.mxu0 0.0
          %948 = vmatpush2.msra.mxu0 0.0
          %949 = vmatprep.subr.mxu0 0.0
          %950 = vmatpush2.msra.mxu0 0.0
          %951 = vmatprep.subr.mxu0 0.0
          %952 = vmatpush2.msra.mxu0 0.0
          %953 = vmatprep.subr.mxu0 0.0
          %954 = vmatpush2.msra.mxu0 0.0
          %955 = vmatprep.mubr.f32.mxu0 0.0
          %956 = vmatmul.mubr.f32.gmra.mxu0 %v889
          %v957 = vpop.f32.mrf.mxu0
          %v958 = vadd.f32 0.0, %v957
          %v959 = vpop.f32.mrf.mxu0
          %960 = vdwg.mxu0
          %v961 = vsel %vm396, %v706, 0.0
          %v962 = vrot.slane %v961, 4
          %v963 = vadd.f32 %v961, %v962
          %v964 = vrot.slane %v963, 2
          %v965 = vadd.f32 %v963, %v964
          %v966 = vrot.slane %v965, 1
          %v967 = vadd.f32 %v965, %v966
          %v968 = vsel %vm396, %v707, 0.0
          %v969 = vrot.slane %v968, 4
          %v970 = vadd.f32 %v968, %v969
          %v971 = vrot.slane %v970, 2
          %v972 = vadd.f32 %v970, %v971
          %v973 = vrot.slane %v972, 1
          %v974 = vadd.f32 %v972, %v973
          %v975 = vmul.f32 %v698, %v967
          %v976 = vsel %vm396, %v975, 0.0
          %977 = vadd.xlane.f32.xlu0 %v976
          %v978 = vpop.xlane.xlu0 %977
          %v979 = vmul.f32 %v699, %v974
          %v980 = vsel %vm396, %v979, 0.0
          %981 = vadd.xlane.f32.xlu0 %v980
          %v982 = vpop.xlane.xlu0 %981
          %v983 = vadd.f32 %v978, %v982
          %v984 = vmul.f32 %v983, 0.00390625
          %v985 = vlaneseq
          %v986 = vshrl.u32 %v985, 7
          %v987 = vsub.s32 0, %v986
          %v988 = vrot.slane %v627, %v987
          %v989 = vmul.f32 %v988, %v984
          %990 = vmatprep.subr.mxu0 0.0
          %991 = vmatpush1.msra.mxu0 0.0
          %992 = vmatprep.subr.mxu0 0.0
          %993 = vmatpush1.msra.mxu0 0.0
          %994 = vmatprep.subr.mxu0 0.0
          %995 = vmatpush1.msra.mxu0 0.0
          %996 = vmatprep.subr.mxu0 0.0
          %997 = vmatpush1.msra.mxu0 0.0
          %998 = vmatprep.subr.mxu0 0.0
          %999 = vmatpush1.msra.mxu0 0.0
          %1000 = vmatprep.subr.mxu0 0.0
          %1001 = vmatpush1.msra.mxu0 0.0
          %1002 = vmatprep.subr.mxu0 0.0
          %1003 = vmatpush1.msra.mxu0 0.0
          %1004 = vmatprep.subr.mxu0 0.0
          %1005 = vmatpush1.msra.mxu0 0.0
          %1006 = vmatprep.subr.mxu0 0.0
          %1007 = vmatpush1.msra.mxu0 0.0
          %1008 = vmatprep.subr.mxu0 0.0
          %1009 = vmatpush1.msra.mxu0 0.0
          %1010 = vmatprep.subr.mxu0 0.0
          %1011 = vmatpush1.msra.mxu0 0.0
          %1012 = vmatprep.subr.mxu0 0.0
          %1013 = vmatpush1.msra.mxu0 0.0
          %1014 = vmatprep.subr.mxu0 0.0
          %1015 = vmatpush1.msra.mxu0 0.0
          %1016 = vmatprep.subr.mxu0 0.0
          %1017 = vmatpush1.msra.mxu0 0.0
          %1018 = vmatprep.subr.mxu0 0.0
          %1019 = vmatpush1.msra.mxu0 0.0
          %1020 = vmatprep.subr.mxu0 0.0
          %1021 = vmatpush1.msra.mxu0 %v691
          %1022 = vmatprep.subr.mxu0 0.0
          %1023 = vmatpush2.msra.mxu0 0.0
          %1024 = vmatprep.subr.mxu0 0.0
          %1025 = vmatpush2.msra.mxu0 0.0
          %1026 = vmatprep.subr.mxu0 0.0
          %1027 = vmatpush2.msra.mxu0 0.0
          %1028 = vmatprep.subr.mxu0 0.0
          %1029 = vmatpush2.msra.mxu0 0.0
          %1030 = vmatprep.subr.mxu0 0.0
          %1031 = vmatpush2.msra.mxu0 0.0
          %1032 = vmatprep.subr.mxu0 0.0
          %1033 = vmatpush2.msra.mxu0 0.0
          %1034 = vmatprep.subr.mxu0 0.0
          %1035 = vmatpush2.msra.mxu0 0.0
          %1036 = vmatprep.subr.mxu0 0.0
          %1037 = vmatpush2.msra.mxu0 0.0
          %1038 = vmatprep.subr.mxu0 0.0
          %1039 = vmatpush2.msra.mxu0 0.0
          %1040 = vmatprep.subr.mxu0 0.0
          %1041 = vmatpush2.msra.mxu0 0.0
          %1042 = vmatprep.subr.mxu0 0.0
          %1043 = vmatpush2.msra.mxu0 0.0
          %1044 = vmatprep.subr.mxu0 0.0
          %1045 = vmatpush2.msra.mxu0 0.0
          %1046 = vmatprep.subr.mxu0 0.0
          %1047 = vmatpush2.msra.mxu0 0.0
          %1048 = vmatprep.subr.mxu0 0.0
          %1049 = vmatpush2.msra.mxu0 0.0
          %1050 = vmatprep.subr.mxu0 0.0
          %1051 = vmatpush2.msra.mxu0 0.0
          %1052 = vmatprep.subr.mxu0 0.0
          %1053 = vmatpush2.msra.mxu0 0.0
          %1054 = vmatprep.mubr.f32.mxu0 0.0
          %1055 = vmatmul.mubr.f32.gmra.mxu0 %v889
          %v1056 = vpop.f32.mrf.mxu0
          %v1057 = vadd.f32 1e-08, %v1056
          %v1058 = vpop.f32.mrf.mxu0
          %1059 = vdwg.mxu0
          %v1060 = vadd.f32 %v958, 1e-08
          %v1061 = vand.u32 2147483647, %v1060
          %v1062 = vand.u32 2147483647, %v1057
          %v1063 = vmin.f32 %v1061, %v1062
          %v1064 = vmax.f32 %v1061, %v1062
          %v1065 = vrcp.pop %v1064
          %v1066 = vmul.f32 %v1063, %v1065
          %v1067 = vmul.f32 %v1066, %v1066
          %v1068 = vmul.f32 0.002785687, %v1067
          %v1069 = vadd.f32 %v1068, -0.015866
          %v1070 = vmul.f32 %v1069, %v1067
          %v1071 = vadd.f32 %v1070, 0.04247222
          %v1072 = vmul.f32 %v1071, %v1067
          %v1073 = vadd.f32 %v1072, -0.074975304
          %v1074 = vmul.f32 %v1073, %v1067
          %v1075 = vadd.f32 %v1074, 0.1064488
          %v1076 = vmul.f32 %v1075, %v1067
          %v1077 = vadd.f32 %v1076, -0.14207031
          %v1078 = vmul.f32 %v1077, %v1067
          %v1079 = vadd.f32 %v1078, 0.19993454
          %v1080 = vmul.f32 %v1079, %v1067
          %v1081 = vadd.f32 %v1080, -0.33333147
          %v1082 = vmul.f32 %v1081, %v1067
          %v1083 = vmul.f32 %v1082, %v1066
          %v1084 = vadd.f32 %v1083, %v1066
          %vm1085 = vcmp.gt.f32.partialorder %v1062, %v1061
          %v1086 = vsub.f32 1.5707964, %v1084
          %v1087 = vsel %vm1085, %v1086, %v1084
          %vm1088 = vcmp.lt.f32.partialorder %v1060, 0.0
          %v1089 = vsub.f32 3.1415927, %v1087
          %v1090 = vsel %vm1088, %v1089, %v1087
          %vm1091 = vcmp.lt.s32.totalorder %v1060, 0
          %v1092 = vsel %vm1091, 3.1415927, 0.0
          %vm1093 = vcmp.eq.f32.partialorder %v1057, 0.0
          %v1094 = vsel %vm1093, %v1092, %v1090
          %vm1095 = vcmp.ne.f32.partialorder %v1060, %v1060
          %vm1096 = vcmp.ne.f32.partialorder %v1057, %v1057
          %vm1097 = vmor %vm1095, %vm1096
          %v1098 = vsel %vm1097, nan, %v1094
          %vm1099 = vcmp.lt.f32.partialorder %v1060, 0.0
          %v1100 = vsel %vm1099, 2.3561945, 0.7853982
          %vm1101 = vcmp.eq.s32.totalorder %v1061, inf
          %vm1102 = vcmp.eq.s32.totalorder %v1062, inf
          %vm1103 = vmand %vm1101, %vm1102
          %v1104 = vsel %vm1103, %v1100, %v1098
          %v1105 = vand.u32 2147483647, %v1104
          %v1106 = vand.u32 %v1057, 2147483648
          %v1107 = vor.u32 %v1105, %v1106
          %v1108 = vmul.f32 %v1107, %v989
          %v1109 = vand.u32 2147483647, %v1108
          %vm1110 = vcmp.le.f32.partialorder %v1109, 0.7853982
          %vm1111 = vcmp.lt.s32.totalorder %v1108, 0
          %v1112 = vand.u32 %v1108, 2139095040
          %v1113 = vshrl.u32 %v1112, 23
          %v1114 = vsub.s32 %v1113, 127
          %v1115 = vand.u32 2147483647, %v1108
          %v1116 = vand.u32 %v1115, 8388607
          %v1117 = vor.u32 %v1116, 8388608
          %v1118 = vsub.s32 0, %v1117
          %v1119 = vadd.s32 %v1114, 1
          %vm1120 = vcmp.gt.s32.totalorder %v1119, 0
          %v1121 = vsel %vm1120, %v1119, 0
          %v1122 = vshrl.u32 %v1121, 5
          %v1123 = vand.u32 %v1121, 31
          %v1124 = vsub.s32 32, %v1123
          %v1125 = vshrl.u32 683565275, %v1124
          %v1126 = vshll.u32 683565275, %v1123
          %v1127 = vshrl.u32 2475754826, %v1124
          %v1128 = vor.u32 %v1126, %v1127
          %v1129 = vshll.u32 2475754826, %v1123
          %v1130 = vshrl.u32 2131351028, %v1124
          %v1131 = vor.u32 %v1129, %v1130
          %v1132 = vshll.u32 2131351028, %v1123
          %v1133 = vshrl.u32 2102212464, %v1124
          %v1134 = vor.u32 %v1132, %v1133
          %v1135 = vshll.u32 2102212464, %v1123
          %v1136 = vshrl.u32 920167782, %v1124
          %v1137 = vor.u32 %v1135, %v1136
          %v1138 = vshll.u32 920167782, %v1123
          %v1139 = vshrl.u32 1326507024, %v1124
          %v1140 = vor.u32 %v1138, %v1139
          %vm1141 = vcmp.lt.s32.totalorder %v1122, 1
          %vm1142 = vcmp.lt.s32.totalorder %v1122, 2
          %vm1143 = vcmp.lt.s32.totalorder %v1122, 3
          %vm1144 = vcmp.lt.s32.totalorder %v1122, 4
          %v1145 = vsel %vm1141, %v1125, %v1128
          %v1146 = vsel %vm1144, %v1134, 2102212464
          %v1147 = vsel %vm1143, %v1131, %v1146
          %v1148 = vsel %vm1142, %v1145, %v1147
          %v1149 = vsel %vm1141, %v1128, %v1131
          %v1150 = vsel %vm1144, %v1137, 920167782
          %v1151 = vsel %vm1143, %v1134, %v1150
          %v1152 = vsel %vm1142, %v1149, %v1151
          %v1153 = vsel %vm1141, %v1131, %v1134
          %v1154 = vsel %vm1144, %v1140, 1326507024
          %v1155 = vsel %vm1143, %v1137, %v1154
          %v1156 = vsel %vm1142, %v1153, %v1155
          %v1157 = vshll.u32 %v1117, 8
          %v1158 = vmul.u32.u64.compose %v1157, %v1156
          %v1159 = vextract.low.u32 %v1158
          %v1160 = vextract.high.u32 %v1158
          %v1161 = vmul.u32.u64.compose %v1157, %v1152
          %v1162 = vextract.low.u32 %v1161
          %v1163 = vextract.high.u32 %v1161
          %v1164 = vmul.u32 %v1157, %v1148
          %v1165 = vadd.s32 %v1160, %v1162
          %vm1166 = vc.u32 %v1160, %v1162
          %v1167 = vadd.s32 %v1163, 1
          %v1168 = vsel %vm1166, %v1167, %v1163
          %v1169 = vadd.s32 %v1164, %v1168
          %v1170 = vadd.s32 %v1169, 536870912
          %v1171 = vshrl.u32 %v1170, 30
          %v1172 = vshll.u32 %v1171, 30
          %v1173 = vsub.s32 %v1169, %v1172
          %vm1174 = vcmp.lt.s32.totalorder %v1173, 0
          %v1175 = vsub.s32 0, %v1173
          %v1176 = vsel %vm1174, %v1175, %v1173
          %v1177 = vclz %v1176
          %v1178 = vsub.s32 %v1177, 2
          %vm1179 = vcmp.gt.s32.totalorder 0, %v1178
          %v1180 = vsel %vm1179, 0, %v1178
          %v1181 = vsub.s32 32, %v1180
          %v1182 = vshll.u32 %v1173, %v1180
          %v1183 = vshrl.u32 %v1165, %v1181
          %v1184 = vor.u32 %v1182, %v1183
          %v1185 = vsub.s32 4294967266, %v1180
          %v1186 = vadd.s32 %v1185, 127
          %v1187 = vshll.u32 %v1186, 23
          %v1188 = vor.u32 4788187, %v1187
          %v1189 = vand.u32 2147483647, %v1188
          %v1191 = vcvt.s32.f32 %v1184
          %v1192 = vmul.f32 %v1191, %v1189
          %v1193 = vxor.u32 %v1192, 2147483648
          %v1194 = vsel %vm1111, %v1193, %v1192
          %v1195 = vsub.s32 4, %v1171
          %v1196 = vsel %vm1111, %v1195, %v1171
          %v1197 = vsel %vm1110, %v1108, %v1194
          %v1198 = vsel %vm1110, 0, %v1196
          %v1199 = vcosq.f32.pop %v1197
          %v1200 = vsinq.f32.pop %v1197
          %vm1201 = vweird.f32 %v1108
          %v1202 = vand.u32 %v1198, 3
          %vm1203 = vcmp.lt.s32.totalorder %v1202, 2
          %vm1204 = vcmp.eq.s32.totalorder %v1202, 0
          %v1205 = vxor.u32 %v1200, 2147483648
          %v1206 = vsel %vm1204, %v1199, %v1205
          %vm1207 = vcmp.eq.s32.totalorder %v1202, 2
          %v1208 = vxor.u32 %v1199, 2147483648
          %v1209 = vsel %vm1207, %v1208, %v1200
          %v1210 = vsel %vm1203, %v1206, %v1209
          %v1211 = vsel %vm1201, nan, %v1210
          %v1212 = vmul.f32 %v958, %v1211
          %v1213 = vmul.f32 %v1212, 0.01
          %v1214 = vadd.f32 %v616, %v1213
          %v1215 = vsel %vm396, %v1214, 0.0
          %1216 = vadd.xlane.f32.xlu0 %v1215
          %v1217 = vpop.xlane.xlu0 %1216
          %v1218 = vmul.f32 %v1217, %v400
          %v1219 = vsub.f32 %v1214, %v1218
          %v1220 = vmul.f32 %v1219, %v1219
          %v1221 = vsel %vm396, %v1220, 0.0
          %1222 = vadd.xlane.f32.xlu0 %v1221
          %v1223 = vpop.xlane.xlu0 %1222
          %v1224 = vmul.f32 %v1223, %v400
          %v1225 = vadd.f32 %v1224, 1e-08
          %v1226 = vrsqrt.pop %v1225
          %v1227 = vmul.f32 %v1219, %v1226
          %v1228 = vlaneseq
          %v1229 = vshrl.u32 %v1228, 7
          %v1230 = vsub.s32 0, %v1229
          %v1231 = vrot.slane %v628, %v1230
          %v1232 = vmul.f32 %v1227, %v1231
          %v1233 = vlaneseq
          %v1234 = vshrl.u32 %v1233, 7
          %v1235 = vsub.s32 0, %v1234
          %v1236 = vrot.slane %v629, %v1235
          %v1237 = vadd.f32 %v1232, %v1236
          %v1238 = vmax.f32 %v1237, -1.0
          %v1239 = vmin.f32 %v1238, 1.0
          %v1240 = vld [vmem:[#allocation9 + $0xa] sm:$0x1]
          %v1241 = vld [vmem:[#allocation9 + $0xb] sm:$0x1]
          %v1242 = vld [vmem:[#allocation9 + $0xc] sm:$0x1]
          %v1243 = vld [vmem:[#allocation9 + $0xd] sm:$0x1]
          %v1244 = vld [vmem:[#allocation9 + $0xe] sm:$0x1]
          %v1245 = vld [vmem:[#allocation9 + $0xf] sm:$0x1]
          %v1246 = vld [vmem:[#allocation9 + $0x10] sm:$0x1]
          %v1247 = vld [vmem:[#allocation9 + $0x11] sm:$0x1]
          %v1248 = vld [vmem:[#allocation9 + $0x12] sm:$0x1]
          %v1249 = vld [vmem:[#allocation9 + $0x13] sm:$0x1]
          %v1250 = vsel %vm396, %v1239, 0.0
          %1251 = vadd.xlane.f32.xlu0 %v1250
          %v1252 = vpop.xlane.xlu0 %1251
          %v1253 = vmul.f32 %v1252, %v400
          %v1254 = vsub.f32 %v1239, %v1253
          %v1255 = vmul.f32 %v1254, %v1254
          %v1256 = vsel %vm396, %v1255, 0.0
          %1257 = vadd.xlane.f32.xlu0 %v1256
          %v1258 = vpop.xlane.xlu0 %1257
          %v1259 = vmul.f32 %v1258, %v400
          %v1260 = vadd.f32 %v1259, 1e-05
          %v1261 = vrsqrt.pop %v1260
          %v1262 = vmul.f32 %v1254, %v1261
          %v1263 = vlaneseq
          %v1264 = vshrl.u32 %v1263, 7
          %v1265 = vsub.s32 0, %v1264
          %v1266 = vrot.slane %v1240, %v1265
          %v1267 = vmul.f32 %v1262, %v1266
          %v1268 = vlaneseq
          %v1269 = vshrl.u32 %v1268, 7
          %v1270 = vsub.s32 0, %v1269
          %v1271 = vrot.slane %v1241, %v1270
          %v1272 = vadd.f32 %v1267, %v1271
          %v1273 = vlaneseq
          %v1274 = vshrl.u32 %v1273, 7
          %v1275 = vsub.s32 0, %v1274
          %v1276 = vrot.slane %v1242, %v1275
          %v1277 = vmul.f32 %v1262, %v1276
          %v1278 = vlaneseq
          %v1279 = vshrl.u32 %v1278, 7
          %v1280 = vsub.s32 0, %v1279
          %v1281 = vrot.slane %v1243, %v1280
          %v1282 = vadd.f32 %v1277, %v1281
          %v1283 = vlaneseq
          %v1284 = vshrl.u32 %v1283, 7
          %v1285 = vsub.s32 0, %v1284
          %v1286 = vrot.slane %v1244, %v1285
          %v1287 = vmul.f32 %v1262, %v1286
          %v1288 = vlaneseq
          %v1289 = vshrl.u32 %v1288, 7
          %v1290 = vsub.s32 0, %v1289
          %v1291 = vrot.slane %v1245, %v1290
          %v1292 = vadd.f32 %v1287, %v1291
          %v1293 = vadd.f32 %v1272, 1e-08
          %v1294 = vmul.f32 %v1293, %v1293
          %v1295 = vadd.f32 %v1294, %v1294
          %v1296 = vrsqrt.pop %v1295
          %v1297 = vmul.f32 %v1293, %v1296
          %v1298 = vadd.f32 %v1282, 1e-08
          %v1299 = vmul.f32 %v1298, %v1298
          %v1300 = vadd.f32 %v1299, %v1299
          %v1301 = vrsqrt.pop %v1300
          %v1302 = vmul.f32 %v1298, %v1301
          %v1303 = vlaneseq
          %v1304 = vshrl.u32 %v1303, 7
          %v1305 = vsub.s32 0, %v1304
          %v1306 = vrot.slane %v1246, %v1305
          %v1307 = vmul.f32 %v1297, %v1306
          %v1309 = vsel %vm396, %v1307, 0
          %v1312 = vsel %vm396, %v1302, 0
          %1314 = vmatprep.subr.mxu0 0.0
          %1315 = vmatpush1.xpose.msra.mxu0 0.0
          %1316 = vmatprep.subr.mxu0 0.0
          %1317 = vmatpush1.xpose.msra.mxu0 0.0
          %1318 = vmatprep.subr.mxu0 0.0
          %1319 = vmatpush1.xpose.msra.mxu0 0.0
          %1320 = vmatprep.subr.mxu0 0.0
          %1321 = vmatpush1.xpose.msra.mxu0 0.0
          %1322 = vmatprep.subr.mxu0 0.0
          %1323 = vmatpush1.xpose.msra.mxu0 0.0
          %1324 = vmatprep.subr.mxu0 0.0
          %1325 = vmatpush1.xpose.msra.mxu0 0.0
          %1326 = vmatprep.subr.mxu0 0.0
          %1327 = vmatpush1.xpose.msra.mxu0 0.0
          %1328 = vmatprep.subr.mxu0 0.0
          %1329 = vmatpush1.xpose.msra.mxu0 0.0
          %1330 = vmatprep.subr.mxu0 0.0
          %1331 = vmatpush1.xpose.msra.mxu0 0.0
          %1332 = vmatprep.subr.mxu0 0.0
          %1333 = vmatpush1.xpose.msra.mxu0 0.0
          %1334 = vmatprep.subr.mxu0 0.0
          %1335 = vmatpush1.xpose.msra.mxu0 0.0
          %1336 = vmatprep.subr.mxu0 0.0
          %1337 = vmatpush1.xpose.msra.mxu0 0.0
          %1338 = vmatprep.subr.mxu0 0.0
          %1339 = vmatpush1.xpose.msra.mxu0 0.0
          %1340 = vmatprep.subr.mxu0 0.0
          %1341 = vmatpush1.xpose.msra.mxu0 0.0
          %1342 = vmatprep.subr.mxu0 0.0
          %1343 = vmatpush1.xpose.msra.mxu0 0.0
          %1344 = vmatprep.subr.mxu0 0.0
          %1345 = vmatpush1.xpose.msra.mxu0 %v1312
          %1346 = vmatprep.subr.mxu0 0.0
          %1347 = vmatpush2.xpose.msra.mxu0 0.0
          %1348 = vmatprep.subr.mxu0 0.0
          %1349 = vmatpush2.xpose.msra.mxu0 0.0
          %1350 = vmatprep.subr.mxu0 0.0
          %1351 = vmatpush2.xpose.msra.mxu0 0.0
          %1352 = vmatprep.subr.mxu0 0.0
          %1353 = vmatpush2.xpose.msra.mxu0 0.0
          %1354 = vmatprep.subr.mxu0 0.0
          %1355 = vmatpush2.xpose.msra.mxu0 0.0
          %1356 = vmatprep.subr.mxu0 0.0
          %1357 = vmatpush2.xpose.msra.mxu0 0.0
          %1358 = vmatprep.subr.mxu0 0.0
          %1359 = vmatpush2.xpose.msra.mxu0 0.0
          %1360 = vmatprep.subr.mxu0 0.0
          %1361 = vmatpush2.xpose.msra.mxu0 0.0
          %1362 = vmatprep.subr.mxu0 0.0
          %1363 = vmatpush2.xpose.msra.mxu0 0.0
          %1364 = vmatprep.subr.mxu0 0.0
          %1365 = vmatpush2.xpose.msra.mxu0 0.0
          %1366 = vmatprep.subr.mxu0 0.0
          %1367 = vmatpush2.xpose.msra.mxu0 0.0
          %1368 = vmatprep.subr.mxu0 0.0
          %1369 = vmatpush2.xpose.msra.mxu0 0.0
          %1370 = vmatprep.subr.mxu0 0.0
          %1371 = vmatpush2.xpose.msra.mxu0 0.0
          %1372 = vmatprep.subr.mxu0 0.0
          %1373 = vmatpush2.xpose.msra.mxu0 0.0
          %1374 = vmatprep.subr.mxu0 0.0
          %1375 = vmatpush2.xpose.msra.mxu0 0.0
          %1376 = vmatprep.subr.mxu0 0.0
          %1377 = vmatpush2.xpose.msra.mxu0 0.0
          %1378 = vmatprep.mubr.f32.mxu0 0.0
          %1379 = vmatmul.mubr.f32.gmra.mxu0 %v1309
          %v1380 = vpop.f32.mrf.mxu0
          %v1381 = vadd.f32 0.0, %v1380
          %v1382 = vpop.f32.mrf.mxu0
          %1383 = vdwg.mxu0
          %1384 = vmatprep.subr.mxu0 0.0
          %1385 = vmatpush1.xpose.msra.mxu0 0.0
          %1386 = vmatprep.subr.mxu0 0.0
          %1387 = vmatpush1.xpose.msra.mxu0 0.0
          %1388 = vmatprep.subr.mxu0 0.0
          %1389 = vmatpush1.xpose.msra.mxu0 0.0
          %1390 = vmatprep.subr.mxu0 0.0
          %1391 = vmatpush1.xpose.msra.mxu0 0.0
          %1392 = vmatprep.subr.mxu0 0.0
          %1393 = vmatpush1.xpose.msra.mxu0 0.0
          %1394 = vmatprep.subr.mxu0 0.0
          %1395 = vmatpush1.xpose.msra.mxu0 0.0
          %1396 = vmatprep.subr.mxu0 0.0
          %1397 = vmatpush1.xpose.msra.mxu0 0.0
          %1398 = vmatprep.subr.mxu0 0.0
          %1399 = vmatpush1.xpose.msra.mxu0 0.0
          %1400 = vmatprep.subr.mxu0 0.0
          %1401 = vmatpush1.xpose.msra.mxu0 0.0
          %1402 = vmatprep.subr.mxu0 0.0
          %1403 = vmatpush1.xpose.msra.mxu0 0.0
          %1404 = vmatprep.subr.mxu0 0.0
          %1405 = vmatpush1.xpose.msra.mxu0 0.0
          %1406 = vmatprep.subr.mxu0 0.0
          %1407 = vmatpush1.xpose.msra.mxu0 0.0
          %1408 = vmatprep.subr.mxu0 0.0
          %1409 = vmatpush1.xpose.msra.mxu0 0.0
          %1410 = vmatprep.subr.mxu0 0.0
          %1411 = vmatpush1.xpose.msra.mxu0 0.0
          %1412 = vmatprep.subr.mxu0 0.0
          %1413 = vmatpush1.xpose.msra.mxu0 0.0
          %1414 = vmatprep.subr.mxu0 0.0
          %1415 = vmatpush1.xpose.msra.mxu0 %v1312
          %1416 = vmatprep.subr.mxu0 0.0
          %1417 = vmatpush2.xpose.msra.mxu0 0.0
          %1418 = vmatprep.subr.mxu0 0.0
          %1419 = vmatpush2.xpose.msra.mxu0 0.0
          %1420 = vmatprep.subr.mxu0 0.0
          %1421 = vmatpush2.xpose.msra.mxu0 0.0
          %1422 = vmatprep.subr.mxu0 0.0
          %1423 = vmatpush2.xpose.msra.mxu0 0.0
          %1424 = vmatprep.subr.mxu0 0.0
          %1425 = vmatpush2.xpose.msra.mxu0 0.0
          %1426 = vmatprep.subr.mxu0 0.0
          %1427 = vmatpush2.xpose.msra.mxu0 0.0
          %1428 = vmatprep.subr.mxu0 0.0
          %1429 = vmatpush2.xpose.msra.mxu0 0.0
          %1430 = vmatprep.subr.mxu0 0.0
          %1431 = vmatpush2.xpose.msra.mxu0 0.0
          %1432 = vmatprep.subr.mxu0 0.0
          %1433 = vmatpush2.xpose.msra.mxu0 0.0
          %1434 = vmatprep.subr.mxu0 0.0
          %1435 = vmatpush2.xpose.msra.mxu0 0.0
          %1436 = vmatprep.subr.mxu0 0.0
          %1437 = vmatpush2.xpose.msra.mxu0 0.0
          %1438 = vmatprep.subr.mxu0 0.0
          %1439 = vmatpush2.xpose.msra.mxu0 0.0
          %1440 = vmatprep.subr.mxu0 0.0
          %1441 = vmatpush2.xpose.msra.mxu0 0.0
          %1442 = vmatprep.subr.mxu0 0.0
          %1443 = vmatpush2.xpose.msra.mxu0 0.0
          %1444 = vmatprep.subr.mxu0 0.0
          %1445 = vmatpush2.xpose.msra.mxu0 0.0
          %1446 = vmatprep.subr.mxu0 0.0
          %1447 = vmatpush2.xpose.msra.mxu0 0.0
          %1448 = vmatprep.mubr.f32.mxu0 0.0
          %1449 = vmatmul.mubr.f32.gmra.mxu0 %v1309
          %v1450 = vpop.f32.mrf.mxu0
          %v1451 = vadd.f32 %v1381, %v1450
          %v1452 = vpop.f32.mrf.mxu0
          %1453 = vdwg.mxu0
          %v1454 = vsel %vm872, -1e+30, %v1451
          %v1455 = vsel %vm874, %v1454, -inf
          %1456 = vmax.xlane.f32.xlu0 %v1455
          %v1457 = vpop.xlane.xlu0 %1456
          %v1458 = vsub.f32 %v1454, %v1457
          %v1459 = vmul.f32 %v1458, 1.442695
          %v1460 = vpow.pop %v1459
          %v1461 = vsel %vm874, %v1460, 0.0
          %1462 = vadd.xlane.f32.xlu0 %v1461
          %v1463 = vpop.xlane.xlu0 %1462
          %v1464 = vrcp.pop %v1463
          %v1465 = vmul.f32 %v1460, %v1464
          %v1466 = vmax.f32 %v1465, 1e-06
          %v1467 = vmin.f32 %v1466, 1.0
          %v1469 = vsel %vm874, %v1467, 0
          %1471 = vmatprep.subr.mxu0 0.0
          %1472 = vmatpush1.msra.mxu0 0.0
          %1473 = vmatprep.subr.mxu0 0.0
          %1474 = vmatpush1.msra.mxu0 0.0
          %1475 = vmatprep.subr.mxu0 0.0
          %1476 = vmatpush1.msra.mxu0 0.0
          %1477 = vmatprep.subr.mxu0 0.0
          %1478 = vmatpush1.msra.mxu0 0.0
          %1479 = vmatprep.subr.mxu0 0.0
          %1480 = vmatpush1.msra.mxu0 0.0
          %1481 = vmatprep.subr.mxu0 0.0
          %1482 = vmatpush1.msra.mxu0 0.0
          %1483 = vmatprep.subr.mxu0 0.0
          %1484 = vmatpush1.msra.mxu0 0.0
          %1485 = vmatprep.subr.mxu0 0.0
          %1486 = vmatpush1.msra.mxu0 0.0
          %1487 = vmatprep.subr.mxu0 0.0
          %1488 = vmatpush1.msra.mxu0 0.0
          %1489 = vmatprep.subr.mxu0 0.0
          %1490 = vmatpush1.msra.mxu0 0.0
          %1491 = vmatprep.subr.mxu0 0.0
          %1492 = vmatpush1.msra.mxu0 0.0
          %1493 = vmatprep.subr.mxu0 0.0
          %1494 = vmatpush1.msra.mxu0 0.0
          %1495 = vmatprep.subr.mxu0 0.0
          %1496 = vmatpush1.msra.mxu0 0.0
          %1497 = vmatprep.subr.mxu0 0.0
          %1498 = vmatpush1.msra.mxu0 0.0
          %1499 = vmatprep.subr.mxu0 0.0
          %1500 = vmatpush1.msra.mxu0 0.0
          %1501 = vmatprep.subr.mxu0 0.0
          %1502 = vmatpush1.msra.mxu0 %v1292
          %1503 = vmatprep.subr.mxu0 0.0
          %1504 = vmatpush2.msra.mxu0 0.0
          %1505 = vmatprep.subr.mxu0 0.0
          %1506 = vmatpush2.msra.mxu0 0.0
          %1507 = vmatprep.subr.mxu0 0.0
          %1508 = vmatpush2.msra.mxu0 0.0
          %1509 = vmatprep.subr.mxu0 0.0
          %1510 = vmatpush2.msra.mxu0 0.0
          %1511 = vmatprep.subr.mxu0 0.0
          %1512 = vmatpush2.msra.mxu0 0.0
          %1513 = vmatprep.subr.mxu0 0.0
          %1514 = vmatpush2.msra.mxu0 0.0
          %1515 = vmatprep.subr.mxu0 0.0
          %1516 = vmatpush2.msra.mxu0 0.0
          %1517 = vmatprep.subr.mxu0 0.0
          %1518 = vmatpush2.msra.mxu0 0.0
          %1519 = vmatprep.subr.mxu0 0.0
          %1520 = vmatpush2.msra.mxu0 0.0
          %1521 = vmatprep.subr.mxu0 0.0
          %1522 = vmatpush2.msra.mxu0 0.0
          %1523 = vmatprep.subr.mxu0 0.0
          %1524 = vmatpush2.msra.mxu0 0.0
          %1525 = vmatprep.subr.mxu0 0.0
          %1526 = vmatpush2.msra.mxu0 0.0
          %1527 = vmatprep.subr.mxu0 0.0
          %1528 = vmatpush2.msra.mxu0 0.0
          %1529 = vmatprep.subr.mxu0 0.0
          %1530 = vmatpush2.msra.mxu0 0.0
          %1531 = vmatprep.subr.mxu0 0.0
          %1532 = vmatpush2.msra.mxu0 0.0
          %1533 = vmatprep.subr.mxu0 0.0
          %1534 = vmatpush2.msra.mxu0 0.0
          %1535 = vmatprep.mubr.f32.mxu0 0.0
          %1536 = vmatmul.mubr.f32.gmra.mxu0 %v1469
          %v1537 = vpop.f32.mrf.mxu0
          %v1538 = vadd.f32 0.0, %v1537
          %v1539 = vpop.f32.mrf.mxu0
          %1540 = vdwg.mxu0
          %v1541 = vsel %vm396, %v1302, 0.0
          %v1542 = vrot.slane %v1541, 4
          %v1543 = vadd.f32 %v1541, %v1542
          %v1544 = vrot.slane %v1543, 2
          %v1545 = vadd.f32 %v1543, %v1544
          %v1546 = vrot.slane %v1545, 1
          %v1547 = vadd.f32 %v1545, %v1546
          %v1548 = vmul.f32 %v1297, %v1547
          %v1549 = vsel %vm396, %v1548, 0.0
          %1550 = vadd.xlane.f32.xlu0 %v1549
          %v1551 = vpop.xlane.xlu0 %1550
          %v1552 = vadd.f32 %v1551, %v1551
          %v1553 = vmul.f32 %v1552, 0.00390625
          %v1554 = vlaneseq
          %v1555 = vshrl.u32 %v1554, 7
          %v1556 = vsub.s32 0, %v1555
          %v1557 = vrot.slane %v1247, %v1556
          %v1558 = vmul.f32 %v1557, %v1553
          %1559 = vmatprep.subr.mxu0 0.0
          %1560 = vmatpush1.msra.mxu0 0.0
          %1561 = vmatprep.subr.mxu0 0.0
          %1562 = vmatpush1.msra.mxu0 0.0
          %1563 = vmatprep.subr.mxu0 0.0
          %1564 = vmatpush1.msra.mxu0 0.0
          %1565 = vmatprep.subr.mxu0 0.0
          %1566 = vmatpush1.msra.mxu0 0.0
          %1567 = vmatprep.subr.mxu0 0.0
          %1568 = vmatpush1.msra.mxu0 0.0
          %1569 = vmatprep.subr.mxu0 0.0
          %1570 = vmatpush1.msra.mxu0 0.0
          %1571 = vmatprep.subr.mxu0 0.0
          %1572 = vmatpush1.msra.mxu0 0.0
          %1573 = vmatprep.subr.mxu0 0.0
          %1574 = vmatpush1.msra.mxu0 0.0
          %1575 = vmatprep.subr.mxu0 0.0
          %1576 = vmatpush1.msra.mxu0 0.0
          %1577 = vmatprep.subr.mxu0 0.0
          %1578 = vmatpush1.msra.mxu0 0.0
          %1579 = vmatprep.subr.mxu0 0.0
          %1580 = vmatpush1.msra.mxu0 0.0
          %1581 = vmatprep.subr.mxu0 0.0
          %1582 = vmatpush1.msra.mxu0 0.0
          %1583 = vmatprep.subr.mxu0 0.0
          %1584 = vmatpush1.msra.mxu0 0.0
          %1585 = vmatprep.subr.mxu0 0.0
          %1586 = vmatpush1.msra.mxu0 0.0
          %1587 = vmatprep.subr.mxu0 0.0
          %1588 = vmatpush1.msra.mxu0 0.0
          %1589 = vmatprep.subr.mxu0 0.0
          %1590 = vmatpush1.msra.mxu0 %v1292
          %1591 = vmatprep.subr.mxu0 0.0
          %1592 = vmatpush2.msra.mxu0 0.0
          %1593 = vmatprep.subr.mxu0 0.0
          %1594 = vmatpush2.msra.mxu0 0.0
          %1595 = vmatprep.subr.mxu0 0.0
          %1596 = vmatpush2.msra.mxu0 0.0
          %1597 = vmatprep.subr.mxu0 0.0
          %1598 = vmatpush2.msra.mxu0 0.0
          %1599 = vmatprep.subr.mxu0 0.0
          %1600 = vmatpush2.msra.mxu0 0.0
          %1601 = vmatprep.subr.mxu0 0.0
          %1602 = vmatpush2.msra.mxu0 0.0
          %1603 = vmatprep.subr.mxu0 0.0
          %1604 = vmatpush2.msra.mxu0 0.0
          %1605 = vmatprep.subr.mxu0 0.0
          %1606 = vmatpush2.msra.mxu0 0.0
          %1607 = vmatprep.subr.mxu0 0.0
          %1608 = vmatpush2.msra.mxu0 0.0
          %1609 = vmatprep.subr.mxu0 0.0
          %1610 = vmatpush2.msra.mxu0 0.0
          %1611 = vmatprep.subr.mxu0 0.0
          %1612 = vmatpush2.msra.mxu0 0.0
          %1613 = vmatprep.subr.mxu0 0.0
          %1614 = vmatpush2.msra.mxu0 0.0
          %1615 = vmatprep.subr.mxu0 0.0
          %1616 = vmatpush2.msra.mxu0 0.0
          %1617 = vmatprep.subr.mxu0 0.0
          %1618 = vmatpush2.msra.mxu0 0.0
          %1619 = vmatprep.subr.mxu0 0.0
          %1620 = vmatpush2.msra.mxu0 0.0
          %1621 = vmatprep.subr.mxu0 0.0
          %1622 = vmatpush2.msra.mxu0 0.0
          %1623 = vmatprep.mubr.f32.mxu0 0.0
          %1624 = vmatmul.mubr.f32.gmra.mxu0 %v1469
          %v1625 = vpop.f32.mrf.mxu0
          %v1626 = vadd.f32 1e-08, %v1625
          %v1627 = vpop.f32.mrf.mxu0
          %1628 = vdwg.mxu0
          %v1629 = vadd.f32 %v1538, 1e-08
          %v1630 = vand.u32 2147483647, %v1629
          %v1631 = vand.u32 2147483647, %v1626
          %v1632 = vmin.f32 %v1630, %v1631
          %v1633 = vmax.f32 %v1630, %v1631
          %v1634 = vrcp.pop %v1633
          %v1635 = vmul.f32 %v1632, %v1634
          %v1636 = vmul.f32 %v1635, %v1635
          %v1637 = vmul.f32 0.002785687, %v1636
          %v1638 = vadd.f32 %v1637, -0.015866
          %v1639 = vmul.f32 %v1638, %v1636
          %v1640 = vadd.f32 %v1639, 0.04247222
          %v1641 = vmul.f32 %v1640, %v1636
          %v1642 = vadd.f32 %v1641, -0.074975304
          %v1643 = vmul.f32 %v1642, %v1636
          %v1644 = vadd.f32 %v1643, 0.1064488
          %v1645 = vmul.f32 %v1644, %v1636
          %v1646 = vadd.f32 %v1645, -0.14207031
          %v1647 = vmul.f32 %v1646, %v1636
          %v1648 = vadd.f32 %v1647, 0.19993454
          %v1649 = vmul.f32 %v1648, %v1636
          %v1650 = vadd.f32 %v1649, -0.33333147
          %v1651 = vmul.f32 %v1650, %v1636
          %v1652 = vmul.f32 %v1651, %v1635
          %v1653 = vadd.f32 %v1652, %v1635
          %vm1654 = vcmp.gt.f32.partialorder %v1631, %v1630
          %v1655 = vsub.f32 1.5707964, %v1653
          %v1656 = vsel %vm1654, %v1655, %v1653
          %vm1657 = vcmp.lt.f32.partialorder %v1629, 0.0
          %v1658 = vsub.f32 3.1415927, %v1656
          %v1659 = vsel %vm1657, %v1658, %v1656
          %vm1660 = vcmp.lt.s32.totalorder %v1629, 0
          %v1661 = vsel %vm1660, 3.1415927, 0.0
          %vm1662 = vcmp.eq.f32.partialorder %v1626, 0.0
          %v1663 = vsel %vm1662, %v1661, %v1659
          %vm1664 = vcmp.ne.f32.partialorder %v1629, %v1629
          %vm1665 = vcmp.ne.f32.partialorder %v1626, %v1626
          %vm1666 = vmor %vm1664, %vm1665
          %v1667 = vsel %vm1666, nan, %v1663
          %vm1668 = vcmp.lt.f32.partialorder %v1629, 0.0
          %v1669 = vsel %vm1668, 2.3561945, 0.7853982
          %vm1670 = vcmp.eq.s32.totalorder %v1630, inf
          %vm1671 = vcmp.eq.s32.totalorder %v1631, inf
          %vm1672 = vmand %vm1670, %vm1671
          %v1673 = vsel %vm1672, %v1669, %v1667
          %v1674 = vand.u32 2147483647, %v1673
          %v1675 = vand.u32 %v1626, 2147483648
          %v1676 = vor.u32 %v1674, %v1675
          %v1677 = vmul.f32 %v1676, %v1558
          %v1678 = vand.u32 2147483647, %v1677
          %vm1679 = vcmp.le.f32.partialorder %v1678, 0.7853982
          %vm1680 = vcmp.lt.s32.totalorder %v1677, 0
          %v1681 = vand.u32 %v1677, 2139095040
          %v1682 = vshrl.u32 %v1681, 23
          %v1683 = vsub.s32 %v1682, 127
          %v1684 = vand.u32 2147483647, %v1677
          %v1685 = vand.u32 %v1684, 8388607
          %v1686 = vor.u32 %v1685, 8388608
          %v1687 = vsub.s32 0, %v1686
          %v1688 = vadd.s32 %v1683, 1
          %vm1689 = vcmp.gt.s32.totalorder %v1688, 0
          %v1690 = vsel %vm1689, %v1688, 0
          %v1691 = vshrl.u32 %v1690, 5
          %v1692 = vand.u32 %v1690, 31
          %v1693 = vsub.s32 32, %v1692
          %v1694 = vshrl.u32 683565275, %v1693
          %v1695 = vshll.u32 683565275, %v1692
          %v1696 = vshrl.u32 2475754826, %v1693
          %v1697 = vor.u32 %v1695, %v1696
          %v1698 = vshll.u32 2475754826, %v1692
          %v1699 = vshrl.u32 2131351028, %v1693
          %v1700 = vor.u32 %v1698, %v1699
          %v1701 = vshll.u32 2131351028, %v1692
          %v1702 = vshrl.u32 2102212464, %v1693
          %v1703 = vor.u32 %v1701, %v1702
          %v1704 = vshll.u32 2102212464, %v1692
          %v1705 = vshrl.u32 920167782, %v1693
          %v1706 = vor.u32 %v1704, %v1705
          %v1707 = vshll.u32 920167782, %v1692
          %v1708 = vshrl.u32 1326507024, %v1693
          %v1709 = vor.u32 %v1707, %v1708
          %vm1710 = vcmp.lt.s32.totalorder %v1691, 1
          %vm1711 = vcmp.lt.s32.totalorder %v1691, 2
          %vm1712 = vcmp.lt.s32.totalorder %v1691, 3
          %vm1713 = vcmp.lt.s32.totalorder %v1691, 4
          %v1714 = vsel %vm1710, %v1694, %v1697
          %v1715 = vsel %vm1713, %v1703, 2102212464
          %v1716 = vsel %vm1712, %v1700, %v1715
          %v1717 = vsel %vm1711, %v1714, %v1716
          %v1718 = vsel %vm1710, %v1697, %v1700
          %v1719 = vsel %vm1713, %v1706, 920167782
          %v1720 = vsel %vm1712, %v1703, %v1719
          %v1721 = vsel %vm1711, %v1718, %v1720
          %v1722 = vsel %vm1710, %v1700, %v1703
          %v1723 = vsel %vm1713, %v1709, 1326507024
          %v1724 = vsel %vm1712, %v1706, %v1723
          %v1725 = vsel %vm1711, %v1722, %v1724
          %v1726 = vshll.u32 %v1686, 8
          %v1727 = vmul.u32.u64.compose %v1726, %v1725
          %v1728 = vextract.low.u32 %v1727
          %v1729 = vextract.high.u32 %v1727
          %v1730 = vmul.u32.u64.compose %v1726, %v1721
          %v1731 = vextract.low.u32 %v1730
          %v1732 = vextract.high.u32 %v1730
          %v1733 = vmul.u32 %v1726, %v1717
          %v1734 = vadd.s32 %v1729, %v1731
          %vm1735 = vc.u32 %v1729, %v1731
          %v1736 = vadd.s32 %v1732, 1
          %v1737 = vsel %vm1735, %v1736, %v1732
          %v1738 = vadd.s32 %v1733, %v1737
          %v1739 = vadd.s32 %v1738, 536870912
          %v1740 = vshrl.u32 %v1739, 30
          %v1741 = vshll.u32 %v1740, 30
          %v1742 = vsub.s32 %v1738, %v1741
          %vm1743 = vcmp.lt.s32.totalorder %v1742, 0
          %v1744 = vsub.s32 0, %v1742
          %v1745 = vsel %vm1743, %v1744, %v1742
          %v1746 = vclz %v1745
          %v1747 = vsub.s32 %v1746, 2
          %vm1748 = vcmp.gt.s32.totalorder 0, %v1747
          %v1749 = vsel %vm1748, 0, %v1747
          %v1750 = vsub.s32 32, %v1749
          %v1751 = vshll.u32 %v1742, %v1749
          %v1752 = vshrl.u32 %v1734, %v1750
          %v1753 = vor.u32 %v1751, %v1752
          %v1754 = vsub.s32 4294967266, %v1749
          %v1755 = vadd.s32 %v1754, 127
          %v1756 = vshll.u32 %v1755, 23
          %v1757 = vor.u32 4788187, %v1756
          %v1758 = vand.u32 2147483647, %v1757
          %v1760 = vcvt.s32.f32 %v1753
          %v1761 = vmul.f32 %v1760, %v1758
          %v1762 = vxor.u32 %v1761, 2147483648
          %v1763 = vsel %vm1680, %v1762, %v1761
          %v1764 = vsub.s32 4, %v1740
          %v1765 = vsel %vm1680, %v1764, %v1740
          %v1766 = vsel %vm1679, %v1677, %v1763
          %v1767 = vsel %vm1679, 0, %v1765
          %v1768 = vcosq.f32.pop %v1766
          %v1769 = vsinq.f32.pop %v1766
          %vm1770 = vweird.f32 %v1677
          %v1771 = vand.u32 %v1767, 3
          %vm1772 = vcmp.lt.s32.totalorder %v1771, 2
          %vm1773 = vcmp.eq.s32.totalorder %v1771, 0
          %v1774 = vxor.u32 %v1769, 2147483648
          %v1775 = vsel %vm1773, %v1768, %v1774
          %vm1776 = vcmp.eq.s32.totalorder %v1771, 2
          %v1777 = vxor.u32 %v1768, 2147483648
          %v1778 = vsel %vm1776, %v1777, %v1769
          %v1779 = vsel %vm1772, %v1775, %v1778
          %v1780 = vsel %vm1770, nan, %v1779
          %v1781 = vmul.f32 %v1538, %v1780
          %v1782 = vmul.f32 %v1781, 0.01
          %v1783 = vadd.f32 %v1239, %v1782
          %v1784 = vsel %vm396, %v1783, 0.0
          %1785 = vadd.xlane.f32.xlu0 %v1784
          %v1786 = vpop.xlane.xlu0 %1785
          %v1787 = vmul.f32 %v1786, %v400
          %v1788 = vsub.f32 %v1783, %v1787
          %v1789 = vmul.f32 %v1788, %v1788
          %v1790 = vsel %vm396, %v1789, 0.0
          %1791 = vadd.xlane.f32.xlu0 %v1790
          %v1792 = vpop.xlane.xlu0 %1791
          %v1793 = vmul.f32 %v1792, %v400
          %v1794 = vadd.f32 %v1793, 1e-08
          %v1795 = vrsqrt.pop %v1794
          %v1796 = vmul.f32 %v1788, %v1795
          %v1797 = vlaneseq
          %v1798 = vshrl.u32 %v1797, 7
          %v1799 = vsub.s32 0, %v1798
          %v1800 = vrot.slane %v1248, %v1799
          %v1801 = vmul.f32 %v1796, %v1800
          %v1802 = vlaneseq
          %v1803 = vshrl.u32 %v1802, 7
          %v1804 = vsub.s32 0, %v1803
          %v1805 = vrot.slane %v1249, %v1804
          %v1806 = vadd.f32 %v1801, %v1805
          %v1807 = vmax.f32 %v1806, -1.0
          %v1808 = vmin.f32 %v1807, 1.0
          %v1809 = vld [vmem:[#allocation9 + $0x14] sm:$0x1]
          %v1810 = vld [vmem:[#allocation9 + $0x15] sm:$0x1]
          %v1811 = vld [vmem:[#allocation9 + $0x16] sm:$0x1]
          %v1812 = vld [vmem:[#allocation9 + $0x17] sm:$0x1]
          %v1813 = vld [vmem:[#allocation9 + $0x18] sm:$0x1]
          %v1814 = vld [vmem:[#allocation9 + $0x19] sm:$0x1]
          %v1815 = vld [vmem:[#allocation9 + $0x1a] sm:$0x1]
          %v1816 = vld [vmem:[#allocation9 + $0x1b] sm:$0x1]
          %v1817 = vld [vmem:[#allocation9 + $0x1c] sm:$0x1]
          %v1818 = vld [vmem:[#allocation9 + $0x1d] sm:$0x1]
          %v1819 = vsel %vm396, %v1808, 0.0
          %1820 = vadd.xlane.f32.xlu0 %v1819
          %v1821 = vpop.xlane.xlu0 %1820
          %v1822 = vmul.f32 %v1821, %v400
          %v1823 = vsub.f32 %v1808, %v1822
          %v1824 = vmul.f32 %v1823, %v1823
          %v1825 = vsel %vm396, %v1824, 0.0
          %1826 = vadd.xlane.f32.xlu0 %v1825
          %v1827 = vpop.xlane.xlu0 %1826
          %v1828 = vmul.f32 %v1827, %v400
          %v1829 = vadd.f32 %v1828, 1e-05
          %v1830 = vrsqrt.pop %v1829
          %v1831 = vmul.f32 %v1823, %v1830
          %v1832 = vlaneseq
          %v1833 = vshrl.u32 %v1832, 7
          %v1834 = vsub.s32 0, %v1833
          %v1835 = vrot.slane %v1809, %v1834
          %v1836 = vmul.f32 %v1831, %v1835
          %v1837 = vlaneseq
          %v1838 = vshrl.u32 %v1837, 7
          %v1839 = vsub.s32 0, %v1838
          %v1840 = vrot.slane %v1810, %v1839
          %v1841 = vadd.f32 %v1836, %v1840
          %v1842 = vlaneseq
          %v1843 = vshrl.u32 %v1842, 7
          %v1844 = vsub.s32 0, %v1843
          %v1845 = vrot.slane %v1811, %v1844
          %v1846 = vmul.f32 %v1831, %v1845
          %v1847 = vlaneseq
          %v1848 = vshrl.u32 %v1847, 7
          %v1849 = vsub.s32 0, %v1848
          %v1850 = vrot.slane %v1812, %v1849
          %v1851 = vadd.f32 %v1846, %v1850
          %v1852 = vlaneseq
          %v1853 = vshrl.u32 %v1852, 7
          %v1854 = vsub.s32 0, %v1853
          %v1855 = vrot.slane %v1813, %v1854
          %v1856 = vmul.f32 %v1831, %v1855
          %v1857 = vlaneseq
          %v1858 = vshrl.u32 %v1857, 7
          %v1859 = vsub.s32 0, %v1858
          %v1860 = vrot.slane %v1814, %v1859
          %v1861 = vadd.f32 %v1856, %v1860
          %v1862 = vadd.f32 %v1841, 1e-08
          %v1863 = vmul.f32 %v1862, %v1862
          %v1864 = vadd.f32 %v1863, %v1863
          %v1865 = vrsqrt.pop %v1864
          %v1866 = vmul.f32 %v1862, %v1865
          %v1867 = vadd.f32 %v1851, 1e-08
          %v1868 = vmul.f32 %v1867, %v1867
          %v1869 = vadd.f32 %v1868, %v1868
          %v1870 = vrsqrt.pop %v1869
          %v1871 = vmul.f32 %v1867, %v1870
          %v1872 = vlaneseq
          %v1873 = vshrl.u32 %v1872, 7
          %v1874 = vsub.s32 0, %v1873
          %v1875 = vrot.slane %v1815, %v1874
          %v1876 = vmul.f32 %v1866, %v1875
          %v1878 = vsel %vm396, %v1876, 0
          %v1881 = vsel %vm396, %v1871, 0
          %1883 = vmatprep.subr.mxu0 0.0
          %1884 = vmatpush1.xpose.msra.mxu0 0.0
          %1885 = vmatprep.subr.mxu0 0.0
          %1886 = vmatpush1.xpose.msra.mxu0 0.0
          %1887 = vmatprep.subr.mxu0 0.0
          %1888 = vmatpush1.xpose.msra.mxu0 0.0
          %1889 = vmatprep.subr.mxu0 0.0
          %1890 = vmatpush1.xpose.msra.mxu0 0.0
          %1891 = vmatprep.subr.mxu0 0.0
          %1892 = vmatpush1.xpose.msra.mxu0 0.0
          %1893 = vmatprep.subr.mxu0 0.0
          %1894 = vmatpush1.xpose.msra.mxu0 0.0
          %1895 = vmatprep.subr.mxu0 0.0
          %1896 = vmatpush1.xpose.msra.mxu0 0.0
          %1897 = vmatprep.subr.mxu0 0.0
          %1898 = vmatpush1.xpose.msra.mxu0 0.0
          %1899 = vmatprep.subr.mxu0 0.0
          %1900 = vmatpush1.xpose.msra.mxu0 0.0
          %1901 = vmatprep.subr.mxu0 0.0
          %1902 = vmatpush1.xpose.msra.mxu0 0.0
          %1903 = vmatprep.subr.mxu0 0.0
          %1904 = vmatpush1.xpose.msra.mxu0 0.0
          %1905 = vmatprep.subr.mxu0 0.0
          %1906 = vmatpush1.xpose.msra.mxu0 0.0
          %1907 = vmatprep.subr.mxu0 0.0
          %1908 = vmatpush1.xpose.msra.mxu0 0.0
          %1909 = vmatprep.subr.mxu0 0.0
          %1910 = vmatpush1.xpose.msra.mxu0 0.0
          %1911 = vmatprep.subr.mxu0 0.0
          %1912 = vmatpush1.xpose.msra.mxu0 0.0
          %1913 = vmatprep.subr.mxu0 0.0
          %1914 = vmatpush1.xpose.msra.mxu0 %v1881
          %1915 = vmatprep.subr.mxu0 0.0
          %1916 = vmatpush2.xpose.msra.mxu0 0.0
          %1917 = vmatprep.subr.mxu0 0.0
          %1918 = vmatpush2.xpose.msra.mxu0 0.0
          %1919 = vmatprep.subr.mxu0 0.0
          %1920 = vmatpush2.xpose.msra.mxu0 0.0
          %1921 = vmatprep.subr.mxu0 0.0
          %1922 = vmatpush2.xpose.msra.mxu0 0.0
          %1923 = vmatprep.subr.mxu0 0.0
          %1924 = vmatpush2.xpose.msra.mxu0 0.0
          %1925 = vmatprep.subr.mxu0 0.0
          %1926 = vmatpush2.xpose.msra.mxu0 0.0
          %1927 = vmatprep.subr.mxu0 0.0
          %1928 = vmatpush2.xpose.msra.mxu0 0.0
          %1929 = vmatprep.subr.mxu0 0.0
          %1930 = vmatpush2.xpose.msra.mxu0 0.0
          %1931 = vmatprep.subr.mxu0 0.0
          %1932 = vmatpush2.xpose.msra.mxu0 0.0
          %1933 = vmatprep.subr.mxu0 0.0
          %1934 = vmatpush2.xpose.msra.mxu0 0.0
          %1935 = vmatprep.subr.mxu0 0.0
          %1936 = vmatpush2.xpose.msra.mxu0 0.0
          %1937 = vmatprep.subr.mxu0 0.0
          %1938 = vmatpush2.xpose.msra.mxu0 0.0
          %1939 = vmatprep.subr.mxu0 0.0
          %1940 = vmatpush2.xpose.msra.mxu0 0.0
          %1941 = vmatprep.subr.mxu0 0.0
          %1942 = vmatpush2.xpose.msra.mxu0 0.0
          %1943 = vmatprep.subr.mxu0 0.0
          %1944 = vmatpush2.xpose.msra.mxu0 0.0
          %1945 = vmatprep.subr.mxu0 0.0
          %1946 = vmatpush2.xpose.msra.mxu0 0.0
          %1947 = vmatprep.mubr.f32.mxu0 0.0
          %1948 = vmatmul.mubr.f32.gmra.mxu0 %v1878
          %v1949 = vpop.f32.mrf.mxu0
          %v1950 = vadd.f32 0.0, %v1949
          %v1951 = vpop.f32.mrf.mxu0
          %1952 = vdwg.mxu0
          %1953 = vmatprep.subr.mxu0 0.0
          %1954 = vmatpush1.xpose.msra.mxu0 0.0
          %1955 = vmatprep.subr.mxu0 0.0
          %1956 = vmatpush1.xpose.msra.mxu0 0.0
          %1957 = vmatprep.subr.mxu0 0.0
          %1958 = vmatpush1.xpose.msra.mxu0 0.0
          %1959 = vmatprep.subr.mxu0 0.0
          %1960 = vmatpush1.xpose.msra.mxu0 0.0
          %1961 = vmatprep.subr.mxu0 0.0
          %1962 = vmatpush1.xpose.msra.mxu0 0.0
          %1963 = vmatprep.subr.mxu0 0.0
          %1964 = vmatpush1.xpose.msra.mxu0 0.0
          %1965 = vmatprep.subr.mxu0 0.0
          %1966 = vmatpush1.xpose.msra.mxu0 0.0
          %1967 = vmatprep.subr.mxu0 0.0
          %1968 = vmatpush1.xpose.msra.mxu0 0.0
          %1969 = vmatprep.subr.mxu0 0.0
          %1970 = vmatpush1.xpose.msra.mxu0 0.0
          %1971 = vmatprep.subr.mxu0 0.0
          %1972 = vmatpush1.xpose.msra.mxu0 0.0
          %1973 = vmatprep.subr.mxu0 0.0
          %1974 = vmatpush1.xpose.msra.mxu0 0.0
          %1975 = vmatprep.subr.mxu0 0.0
          %1976 = vmatpush1.xpose.msra.mxu0 0.0
          %1977 = vmatprep.subr.mxu0 0.0
          %1978 = vmatpush1.xpose.msra.mxu0 0.0
          %1979 = vmatprep.subr.mxu0 0.0
          %1980 = vmatpush1.xpose.msra.mxu0 0.0
          %1981 = vmatprep.subr.mxu0 0.0
          %1982 = vmatpush1.xpose.msra.mxu0 0.0
          %1983 = vmatprep.subr.mxu0 0.0
          %1984 = vmatpush1.xpose.msra.mxu0 %v1881
          %1985 = vmatprep.subr.mxu0 0.0
          %1986 = vmatpush2.xpose.msra.mxu0 0.0
          %1987 = vmatprep.subr.mxu0 0.0
          %1988 = vmatpush2.xpose.msra.mxu0 0.0
          %1989 = vmatprep.subr.mxu0 0.0
          %1990 = vmatpush2.xpose.msra.mxu0 0.0
          %1991 = vmatprep.subr.mxu0 0.0
          %1992 = vmatpush2.xpose.msra.mxu0 0.0
          %1993 = vmatprep.subr.mxu0 0.0
          %1994 = vmatpush2.xpose.msra.mxu0 0.0
          %1995 = vmatprep.subr.mxu0 0.0
          %1996 = vmatpush2.xpose.msra.mxu0 0.0
          %1997 = vmatprep.subr.mxu0 0.0
          %1998 = vmatpush2.xpose.msra.mxu0 0.0
          %1999 = vmatprep.subr.mxu0 0.0
          %2000 = vmatpush2.xpose.msra.mxu0 0.0
          %2001 = vmatprep.subr.mxu0 0.0
          %2002 = vmatpush2.xpose.msra.mxu0 0.0
          %2003 = vmatprep.subr.mxu0 0.0
          %2004 = vmatpush2.xpose.msra.mxu0 0.0
          %2005 = vmatprep.subr.mxu0 0.0
          %2006 = vmatpush2.xpose.msra.mxu0 0.0
          %2007 = vmatprep.subr.mxu0 0.0
          %2008 = vmatpush2.xpose.msra.mxu0 0.0
          %2009 = vmatprep.subr.mxu0 0.0
          %2010 = vmatpush2.xpose.msra.mxu0 0.0
          %2011 = vmatprep.subr.mxu0 0.0
          %2012 = vmatpush2.xpose.msra.mxu0 0.0
          %2013 = vmatprep.subr.mxu0 0.0
          %2014 = vmatpush2.xpose.msra.mxu0 0.0
          %2015 = vmatprep.subr.mxu0 0.0
          %2016 = vmatpush2.xpose.msra.mxu0 0.0
          %2017 = vmatprep.mubr.f32.mxu0 0.0
          %2018 = vmatmul.mubr.f32.gmra.mxu0 %v1878
          %v2019 = vpop.f32.mrf.mxu0
          %v2020 = vadd.f32 %v1950, %v2019
          %v2021 = vpop.f32.mrf.mxu0
          %2022 = vdwg.mxu0
          %v2023 = vsel %vm872, -1e+30, %v2020
          %v2024 = vsel %vm874, %v2023, -inf
          %2025 = vmax.xlane.f32.xlu0 %v2024
          %v2026 = vpop.xlane.xlu0 %2025
          %v2027 = vsub.f32 %v2023, %v2026
          %v2028 = vmul.f32 %v2027, 1.442695
          %v2029 = vpow.pop %v2028
          %v2030 = vsel %vm874, %v2029, 0.0
          %2031 = vadd.xlane.f32.xlu0 %v2030
          %v2032 = vpop.xlane.xlu0 %2031
          %v2033 = vrcp.pop %v2032
          %v2034 = vmul.f32 %v2029, %v2033
          %v2035 = vmax.f32 %v2034, 1e-06
          %v2036 = vmin.f32 %v2035, 1.0
          %v2038 = vsel %vm874, %v2036, 0
          %2040 = vmatprep.subr.mxu0 0.0
          %2041 = vmatpush1.msra.mxu0 0.0
          %2042 = vmatprep.subr.mxu0 0.0
          %2043 = vmatpush1.msra.mxu0 0.0
          %2044 = vmatprep.subr.mxu0 0.0
          %2045 = vmatpush1.msra.mxu0 0.0
          %2046 = vmatprep.subr.mxu0 0.0
          %2047 = vmatpush1.msra.mxu0 0.0
          %2048 = vmatprep.subr.mxu0 0.0
          %2049 = vmatpush1.msra.mxu0 0.0
          %2050 = vmatprep.subr.mxu0 0.0
          %2051 = vmatpush1.msra.mxu0 0.0
          %2052 = vmatprep.subr.mxu0 0.0
          %2053 = vmatpush1.msra.mxu0 0.0
          %2054 = vmatprep.subr.mxu0 0.0
          %2055 = vmatpush1.msra.mxu0 0.0
          %2056 = vmatprep.subr.mxu0 0.0
          %2057 = vmatpush1.msra.mxu0 0.0
          %2058 = vmatprep.subr.mxu0 0.0
          %2059 = vmatpush1.msra.mxu0 0.0
          %2060 = vmatprep.subr.mxu0 0.0
          %2061 = vmatpush1.msra.mxu0 0.0
          %2062 = vmatprep.subr.mxu0 0.0
          %2063 = vmatpush1.msra.mxu0 0.0
          %2064 = vmatprep.subr.mxu0 0.0
          %2065 = vmatpush1.msra.mxu0 0.0
          %2066 = vmatprep.subr.mxu0 0.0
          %2067 = vmatpush1.msra.mxu0 0.0
          %2068 = vmatprep.subr.mxu0 0.0
          %2069 = vmatpush1.msra.mxu0 0.0
          %2070 = vmatprep.subr.mxu0 0.0
          %2071 = vmatpush1.msra.mxu0 %v1861
          %2072 = vmatprep.subr.mxu0 0.0
          %2073 = vmatpush2.msra.mxu0 0.0
          %2074 = vmatprep.subr.mxu0 0.0
          %2075 = vmatpush2.msra.mxu0 0.0
          %2076 = vmatprep.subr.mxu0 0.0
          %2077 = vmatpush2.msra.mxu0 0.0
          %2078 = vmatprep.subr.mxu0 0.0
          %2079 = vmatpush2.msra.mxu0 0.0
          %2080 = vmatprep.subr.mxu0 0.0
          %2081 = vmatpush2.msra.mxu0 0.0
          %2082 = vmatprep.subr.mxu0 0.0
          %2083 = vmatpush2.msra.mxu0 0.0
          %2084 = vmatprep.subr.mxu0 0.0
          %2085 = vmatpush2.msra.mxu0 0.0
          %2086 = vmatprep.subr.mxu0 0.0
          %2087 = vmatpush2.msra.mxu0 0.0
          %2088 = vmatprep.subr.mxu0 0.0
          %2089 = vmatpush2.msra.mxu0 0.0
          %2090 = vmatprep.subr.mxu0 0.0
          %2091 = vmatpush2.msra.mxu0 0.0
          %2092 = vmatprep.subr.mxu0 0.0
          %2093 = vmatpush2.msra.mxu0 0.0
          %2094 = vmatprep.subr.mxu0 0.0
          %2095 = vmatpush2.msra.mxu0 0.0
          %2096 = vmatprep.subr.mxu0 0.0
          %2097 = vmatpush2.msra.mxu0 0.0
          %2098 = vmatprep.subr.mxu0 0.0
          %2099 = vmatpush2.msra.mxu0 0.0
          %2100 = vmatprep.subr.mxu0 0.0
          %2101 = vmatpush2.msra.mxu0 0.0
          %2102 = vmatprep.subr.mxu0 0.0
          %2103 = vmatpush2.msra.mxu0 0.0
          %2104 = vmatprep.mubr.f32.mxu0 0.0
          %2105 = vmatmul.mubr.f32.gmra.mxu0 %v2038
          %v2106 = vpop.f32.mrf.mxu0
          %v2107 = vadd.f32 0.0, %v2106
          %v2108 = vpop.f32.mrf.mxu0
          %2109 = vdwg.mxu0
          %v2110 = vsel %vm396, %v1871, 0.0
          %v2111 = vrot.slane %v2110, 4
          %v2112 = vadd.f32 %v2110, %v2111
          %v2113 = vrot.slane %v2112, 2
          %v2114 = vadd.f32 %v2112, %v2113
          %v2115 = vrot.slane %v2114, 1
          %v2116 = vadd.f32 %v2114, %v2115
          %v2117 = vmul.f32 %v1866, %v2116
          %v2118 = vsel %vm396, %v2117, 0.0
          %2119 = vadd.xlane.f32.xlu0 %v2118
          %v2120 = vpop.xlane.xlu0 %2119
          %v2121 = vadd.f32 %v2120, %v2120
          %v2122 = vmul.f32 %v2121, 0.00390625
          %v2123 = vlaneseq
          %v2124 = vshrl.u32 %v2123, 7
          %v2125 = vsub.s32 0, %v2124
          %v2126 = vrot.slane %v1816, %v2125
          %v2127 = vmul.f32 %v2126, %v2122
          %2128 = vmatprep.subr.mxu0 0.0
          %2129 = vmatpush1.msra.mxu0 0.0
          %2130 = vmatprep.subr.mxu0 0.0
          %2131 = vmatpush1.msra.mxu0 0.0
          %2132 = vmatprep.subr.mxu0 0.0
          %2133 = vmatpush1.msra.mxu0 0.0
          %2134 = vmatprep.subr.mxu0 0.0
          %2135 = vmatpush1.msra.mxu0 0.0
          %2136 = vmatprep.subr.mxu0 0.0
          %2137 = vmatpush1.msra.mxu0 0.0
          %2138 = vmatprep.subr.mxu0 0.0
          %2139 = vmatpush1.msra.mxu0 0.0
          %2140 = vmatprep.subr.mxu0 0.0
          %2141 = vmatpush1.msra.mxu0 0.0
          %2142 = vmatprep.subr.mxu0 0.0
          %2143 = vmatpush1.msra.mxu0 0.0
          %2144 = vmatprep.subr.mxu0 0.0
          %2145 = vmatpush1.msra.mxu0 0.0
          %2146 = vmatprep.subr.mxu0 0.0
          %2147 = vmatpush1.msra.mxu0 0.0
          %2148 = vmatprep.subr.mxu0 0.0
          %2149 = vmatpush1.msra.mxu0 0.0
          %2150 = vmatprep.subr.mxu0 0.0
          %2151 = vmatpush1.msra.mxu0 0.0
          %2152 = vmatprep.subr.mxu0 0.0
          %2153 = vmatpush1.msra.mxu0 0.0
          %2154 = vmatprep.subr.mxu0 0.0
          %2155 = vmatpush1.msra.mxu0 0.0
          %2156 = vmatprep.subr.mxu0 0.0
          %2157 = vmatpush1.msra.mxu0 0.0
          %2158 = vmatprep.subr.mxu0 0.0
          %2159 = vmatpush1.msra.mxu0 %v1861
          %2160 = vmatprep.subr.mxu0 0.0
          %2161 = vmatpush2.msra.mxu0 0.0
          %2162 = vmatprep.subr.mxu0 0.0
          %2163 = vmatpush2.msra.mxu0 0.0
          %2164 = vmatprep.subr.mxu0 0.0
          %2165 = vmatpush2.msra.mxu0 0.0
          %2166 = vmatprep.subr.mxu0 0.0
          %2167 = vmatpush2.msra.mxu0 0.0
          %2168 = vmatprep.subr.mxu0 0.0
          %2169 = vmatpush2.msra.mxu0 0.0
          %2170 = vmatprep.subr.mxu0 0.0
          %2171 = vmatpush2.msra.mxu0 0.0
          %2172 = vmatprep.subr.mxu0 0.0
          %2173 = vmatpush2.msra.mxu0 0.0
          %2174 = vmatprep.subr.mxu0 0.0
          %2175 = vmatpush2.msra.mxu0 0.0
          %2176 = vmatprep.subr.mxu0 0.0
          %2177 = vmatpush2.msra.mxu0 0.0
          %2178 = vmatprep.subr.mxu0 0.0
          %2179 = vmatpush2.msra.mxu0 0.0
          %2180 = vmatprep.subr.mxu0 0.0
          %2181 = vmatpush2.msra.mxu0 0.0
          %2182 = vmatprep.subr.mxu0 0.0
          %2183 = vmatpush2.msra.mxu0 0.0
          %2184 = vmatprep.subr.mxu0 0.0
          %2185 = vmatpush2.msra.mxu0 0.0
          %2186 = vmatprep.subr.mxu0 0.0
          %2187 = vmatpush2.msra.mxu0 0.0
          %2188 = vmatprep.subr.mxu0 0.0
          %2189 = vmatpush2.msra.mxu0 0.0
          %2190 = vmatprep.subr.mxu0 0.0
          %2191 = vmatpush2.msra.mxu0 0.0
          %2192 = vmatprep.mubr.f32.mxu0 0.0
          %2193 = vmatmul.mubr.f32.gmra.mxu0 %v2038
          %v2194 = vpop.f32.mrf.mxu0
          %v2195 = vadd.f32 1e-08, %v2194
          %v2196 = vpop.f32.mrf.mxu0
          %2197 = vdwg.mxu0
          %v2198 = vadd.f32 %v2107, 1e-08
          %v2199 = vand.u32 2147483647, %v2198
          %v2200 = vand.u32 2147483647, %v2195
          %v2201 = vmin.f32 %v2199, %v2200
          %v2202 = vmax.f32 %v2199, %v2200
          %v2203 = vrcp.pop %v2202
          %v2204 = vmul.f32 %v2201, %v2203
          %v2205 = vmul.f32 %v2204, %v2204
          %v2206 = vmul.f32 0.002785687, %v2205
          %v2207 = vadd.f32 %v2206, -0.015866
          %v2208 = vmul.f32 %v2207, %v2205
          %v2209 = vadd.f32 %v2208, 0.04247222
          %v2210 = vmul.f32 %v2209, %v2205
          %v2211 = vadd.f32 %v2210, -0.074975304
          %v2212 = vmul.f32 %v2211, %v2205
          %v2213 = vadd.f32 %v2212, 0.1064488
          %v2214 = vmul.f32 %v2213, %v2205
          %v2215 = vadd.f32 %v2214, -0.14207031
          %v2216 = vmul.f32 %v2215, %v2205
          %v2217 = vadd.f32 %v2216, 0.19993454
          %v2218 = vmul.f32 %v2217, %v2205
          %v2219 = vadd.f32 %v2218, -0.33333147
          %v2220 = vmul.f32 %v2219, %v2205
          %v2221 = vmul.f32 %v2220, %v2204
          %v2222 = vadd.f32 %v2221, %v2204
          %vm2223 = vcmp.gt.f32.partialorder %v2200, %v2199
          %v2224 = vsub.f32 1.5707964, %v2222
          %v2225 = vsel %vm2223, %v2224, %v2222
          %vm2226 = vcmp.lt.f32.partialorder %v2198, 0.0
          %v2227 = vsub.f32 3.1415927, %v2225
          %v2228 = vsel %vm2226, %v2227, %v2225
          %vm2229 = vcmp.lt.s32.totalorder %v2198, 0
          %v2230 = vsel %vm2229, 3.1415927, 0.0
          %vm2231 = vcmp.eq.f32.partialorder %v2195, 0.0
          %v2232 = vsel %vm2231, %v2230, %v2228
          %vm2233 = vcmp.ne.f32.partialorder %v2198, %v2198
          %vm2234 = vcmp.ne.f32.partialorder %v2195, %v2195
          %vm2235 = vmor %vm2233, %vm2234
          %v2236 = vsel %vm2235, nan, %v2232
          %vm2237 = vcmp.lt.f32.partialorder %v2198, 0.0
          %v2238 = vsel %vm2237, 2.3561945, 0.7853982
          %vm2239 = vcmp.eq.s32.totalorder %v2199, inf
          %vm2240 = vcmp.eq.s32.totalorder %v2200, inf
          %vm2241 = vmand %vm2239, %vm2240
          %v2242 = vsel %vm2241, %v2238, %v2236
          %v2243 = vand.u32 2147483647, %v2242
          %v2244 = vand.u32 %v2195, 2147483648
          %v2245 = vor.u32 %v2243, %v2244
          %v2246 = vmul.f32 %v2245, %v2127
          %v2247 = vand.u32 2147483647, %v2246
          %vm2248 = vcmp.le.f32.partialorder %v2247, 0.7853982
          %vm2249 = vcmp.lt.s32.totalorder %v2246, 0
          %v2250 = vand.u32 %v2246, 2139095040
          %v2251 = vshrl.u32 %v2250, 23
          %v2252 = vsub.s32 %v2251, 127
          %v2253 = vand.u32 2147483647, %v2246
          %v2254 = vand.u32 %v2253, 8388607
          %v2255 = vor.u32 %v2254, 8388608
          %v2256 = vsub.s32 0, %v2255
          %v2257 = vadd.s32 %v2252, 1
          %vm2258 = vcmp.gt.s32.totalorder %v2257, 0
          %v2259 = vsel %vm2258, %v2257, 0
          %v2260 = vshrl.u32 %v2259, 5
          %v2261 = vand.u32 %v2259, 31
          %v2262 = vsub.s32 32, %v2261
          %v2263 = vshrl.u32 683565275, %v2262
          %v2264 = vshll.u32 683565275, %v2261
          %v2265 = vshrl.u32 2475754826, %v2262
          %v2266 = vor.u32 %v2264, %v2265
          %v2267 = vshll.u32 2475754826, %v2261
          %v2268 = vshrl.u32 2131351028, %v2262
          %v2269 = vor.u32 %v2267, %v2268
          %v2270 = vshll.u32 2131351028, %v2261
          %v2271 = vshrl.u32 2102212464, %v2262
          %v2272 = vor.u32 %v2270, %v2271
          %v2273 = vshll.u32 2102212464, %v2261
          %v2274 = vshrl.u32 920167782, %v2262
          %v2275 = vor.u32 %v2273, %v2274
          %v2276 = vshll.u32 920167782, %v2261
          %v2277 = vshrl.u32 1326507024, %v2262
          %v2278 = vor.u32 %v2276, %v2277
          %vm2279 = vcmp.lt.s32.totalorder %v2260, 1
          %vm2280 = vcmp.lt.s32.totalorder %v2260, 2
          %vm2281 = vcmp.lt.s32.totalorder %v2260, 3
          %vm2282 = vcmp.lt.s32.totalorder %v2260, 4
          %v2283 = vsel %vm2279, %v2263, %v2266
          %v2284 = vsel %vm2282, %v2272, 2102212464
          %v2285 = vsel %vm2281, %v2269, %v2284
          %v2286 = vsel %vm2280, %v2283, %v2285
          %v2287 = vsel %vm2279, %v2266, %v2269
          %v2288 = vsel %vm2282, %v2275, 920167782
          %v2289 = vsel %vm2281, %v2272, %v2288
          %v2290 = vsel %vm2280, %v2287, %v2289
          %v2291 = vsel %vm2279, %v2269, %v2272
          %v2292 = vsel %vm2282, %v2278, 1326507024
          %v2293 = vsel %vm2281, %v2275, %v2292
          %v2294 = vsel %vm2280, %v2291, %v2293
          %v2295 = vshll.u32 %v2255, 8
          %v2296 = vmul.u32.u64.compose %v2295, %v2294
          %v2297 = vextract.low.u32 %v2296
          %v2298 = vextract.high.u32 %v2296
          %v2299 = vmul.u32.u64.compose %v2295, %v2290
          %v2300 = vextract.low.u32 %v2299
          %v2301 = vextract.high.u32 %v2299
          %v2302 = vmul.u32 %v2295, %v2286
          %v2303 = vadd.s32 %v2298, %v2300
          %vm2304 = vc.u32 %v2298, %v2300
          %v2305 = vadd.s32 %v2301, 1
          %v2306 = vsel %vm2304, %v2305, %v2301
          %v2307 = vadd.s32 %v2302, %v2306
          %v2308 = vadd.s32 %v2307, 536870912
          %v2309 = vshrl.u32 %v2308, 30
          %v2310 = vshll.u32 %v2309, 30
          %v2311 = vsub.s32 %v2307, %v2310
          %vm2312 = vcmp.lt.s32.totalorder %v2311, 0
          %v2313 = vsub.s32 0, %v2311
          %v2314 = vsel %vm2312, %v2313, %v2311
          %v2315 = vclz %v2314
          %v2316 = vsub.s32 %v2315, 2
          %vm2317 = vcmp.gt.s32.totalorder 0, %v2316
          %v2318 = vsel %vm2317, 0, %v2316
          %v2319 = vsub.s32 32, %v2318
          %v2320 = vshll.u32 %v2311, %v2318
          %v2321 = vshrl.u32 %v2303, %v2319
          %v2322 = vor.u32 %v2320, %v2321
          %v2323 = vsub.s32 4294967266, %v2318
          %v2324 = vadd.s32 %v2323, 127
          %v2325 = vshll.u32 %v2324, 23
          %v2326 = vor.u32 4788187, %v2325
          %v2327 = vand.u32 2147483647, %v2326
          %v2329 = vcvt.s32.f32 %v2322
          %v2330 = vmul.f32 %v2329, %v2327
          %v2331 = vxor.u32 %v2330, 2147483648
          %v2332 = vsel %vm2249, %v2331, %v2330
          %v2333 = vsub.s32 4, %v2309
          %v2334 = vsel %vm2249, %v2333, %v2309
          %v2335 = vsel %vm2248, %v2246, %v2332
          %v2336 = vsel %vm2248, 0, %v2334
          %v2337 = vcosq.f32.pop %v2335
          %v2338 = vsinq.f32.pop %v2335
          %vm2339 = vweird.f32 %v2246
          %v2340 = vand.u32 %v2336, 3
          %vm2341 = vcmp.lt.s32.totalorder %v2340, 2
          %vm2342 = vcmp.eq.s32.totalorder %v2340, 0
          %v2343 = vxor.u32 %v2338, 2147483648
          %v2344 = vsel %vm2342, %v2337, %v2343
          %vm2345 = vcmp.eq.s32.totalorder %v2340, 2
          %v2346 = vxor.u32 %v2337, 2147483648
          %v2347 = vsel %vm2345, %v2346, %v2338
          %v2348 = vsel %vm2341, %v2344, %v2347
          %v2349 = vsel %vm2339, nan, %v2348
          %v2350 = vmul.f32 %v2107, %v2349
          %v2351 = vmul.f32 %v2350, 0.01
          %v2352 = vadd.f32 %v1808, %v2351
          %v2353 = vsel %vm396, %v2352, 0.0
          %2354 = vadd.xlane.f32.xlu0 %v2353
          %v2355 = vpop.xlane.xlu0 %2354
          %v2356 = vmul.f32 %v2355, %v400
          %v2357 = vsub.f32 %v2352, %v2356
          %v2358 = vmul.f32 %v2357, %v2357
          %v2359 = vsel %vm396, %v2358, 0.0
          %2360 = vadd.xlane.f32.xlu0 %v2359
          %v2361 = vpop.xlane.xlu0 %2360
          %v2362 = vmul.f32 %v2361, %v400
          %v2363 = vadd.f32 %v2362, 1e-08
          %v2364 = vrsqrt.pop %v2363
          %v2365 = vmul.f32 %v2357, %v2364
          %v2366 = vlaneseq
          %v2367 = vshrl.u32 %v2366, 7
          %v2368 = vsub.s32 0, %v2367
          %v2369 = vrot.slane %v1817, %v2368
          %v2370 = vmul.f32 %v2365, %v2369
          %v2371 = vlaneseq
          %v2372 = vshrl.u32 %v2371, 7
          %v2373 = vsub.s32 0, %v2372
          %v2374 = vrot.slane %v1818, %v2373
          %v2375 = vadd.f32 %v2370, %v2374
          %v2376 = vmax.f32 %v2375, -1.0
          %v2377 = vmin.f32 %v2376, 1.0
          %v2378 = vsel %vm396, %v2377, 0.0
          %2379 = vadd.xlane.f32.xlu0 %v2378
          %v2380 = vpop.xlane.xlu0 %2379
          %v2381 = vmul.f32 %v2380, %v400
          %v2382 = vsub.f32 %v2377, %v2381
          %v2383 = vmul.f32 %v2382, %v2382
          %v2384 = vsel %vm396, %v2383, 0.0
          %2385 = vadd.xlane.f32.xlu0 %v2384
          %v2386 = vpop.xlane.xlu0 %2385
          %v2387 = vmul.f32 %v2386, %v400
          %v2388 = vadd.f32 %v2387, 1e-05
          %v2389 = vrsqrt.pop %v2388
          %v2390 = vmul.f32 %v2382, %v2389
          %2391 = vst.msk [vmem:[#allocation2] sm:$0xff] %vm396, %v2390
        $region68: #{tpu_custom_call.1} parent=43 // pred_fallthru
          _
        %v2392 = vld [vmem:[#allocation2] sm:$0xff]
        %v2393 = vld [vmem:[#allocation11] sm:$0xff]
        %v2394 = vld [vmem:[#allocation11 + $0x8] sm:$0xff]
        %v2395 = vld [vmem:[#allocation11 + $0x10] sm:$0xff]
        %v2396 = vld [vmem:[#allocation11 + $0x18] sm:$0xff]
        %vm2397 = vcmask 261120
        %v2399 = vsel %vm2397, %v2392, 0
        %2401 = vmatprep.subr.mxu0 0.0
        %2402 = vmatpush1.msra.mxu0 0.0
        %2403 = vmatprep.subr.mxu0 0.0
        %2404 = vmatpush1.msra.mxu0 0.0
        %2405 = vmatprep.subr.mxu0 0.0
        %2406 = vmatpush1.msra.mxu0 0.0
        %2407 = vmatprep.subr.mxu0 0.0
        %2408 = vmatpush1.msra.mxu0 0.0
        %2409 = vmatprep.subr.mxu0 0.0
        %2410 = vmatpush1.msra.mxu0 0.0
        %2411 = vmatprep.subr.mxu0 0.0
        %2412 = vmatpush1.msra.mxu0 0.0
        %2413 = vmatprep.subr.mxu0 0.0
        %2414 = vmatpush1.msra.mxu0 0.0
        %2415 = vmatprep.subr.mxu0 0.0
        %2416 = vmatpush1.msra.mxu0 0.0
        %2417 = vmatprep.subr.mxu0 0.0
        %2418 = vmatpush1.msra.mxu0 0.0
        %2419 = vmatprep.subr.mxu0 0.0
        %2420 = vmatpush1.msra.mxu0 0.0
        %2421 = vmatprep.subr.mxu0 0.0
        %2422 = vmatpush1.msra.mxu0 0.0
        %2423 = vmatprep.subr.mxu0 0.0
        %2424 = vmatpush1.msra.mxu0 0.0
        %2425 = vmatprep.subr.mxu0 0.0
        %2426 = vmatpush1.msra.mxu0 %v2396
        %2427 = vmatprep.subr.mxu0 0.0
        %2428 = vmatpush1.msra.mxu0 %v2395
        %2429 = vmatprep.subr.mxu0 0.0
        %2430 = vmatpush1.msra.mxu0 %v2394
        %2431 = vmatprep.subr.mxu0 0.0
        %2432 = vmatpush1.msra.mxu0 %v2393
        %2433 = vmatprep.subr.mxu0 0.0
        %2434 = vmatpush2.msra.mxu0 0.0
        %2435 = vmatprep.subr.mxu0 0.0
        %2436 = vmatpush2.msra.mxu0 0.0
        %2437 = vmatprep.subr.mxu0 0.0
        %2438 = vmatpush2.msra.mxu0 0.0
        %2439 = vmatprep.subr.mxu0 0.0
        %2440 = vmatpush2.msra.mxu0 0.0
        %2441 = vmatprep.subr.mxu0 0.0
        %2442 = vmatpush2.msra.mxu0 0.0
        %2443 = vmatprep.subr.mxu0 0.0
        %2444 = vmatpush2.msra.mxu0 0.0
        %2445 = vmatprep.subr.mxu0 0.0
        %2446 = vmatpush2.msra.mxu0 0.0
        %2447 = vmatprep.subr.mxu0 0.0
        %2448 = vmatpush2.msra.mxu0 0.0
        %2449 = vmatprep.subr.mxu0 0.0
        %2450 = vmatpush2.msra.mxu0 0.0
        %2451 = vmatprep.subr.mxu0 0.0
        %2452 = vmatpush2.msra.mxu0 0.0
        %2453 = vmatprep.subr.mxu0 0.0
        %2454 = vmatpush2.msra.mxu0 0.0
        %2455 = vmatprep.subr.mxu0 0.0
        %2456 = vmatpush2.msra.mxu0 0.0
        %2457 = vmatprep.subr.mxu0 0.0
        %2458 = vmatpush2.msra.mxu0 0.0
        %2459 = vmatprep.subr.mxu0 0.0
        %2460 = vmatpush2.msra.mxu0 0.0
        %2461 = vmatprep.subr.mxu0 0.0
        %2462 = vmatpush2.msra.mxu0 0.0
        %2463 = vmatprep.subr.mxu0 0.0
        %2464 = vmatpush2.msra.mxu0 0.0
        %2465 = vmatprep.mubr.f32.mxu0 0.0
        %2466 = vmatmul.mubr.f32.gmra.mxu0 %v2399
        %v2467 = vpop.f32.mrf.mxu0
        %v2468 = vadd.f32 0.0, %v2467
        %v2469 = vpop.f32.mrf.mxu0
        %2470 = vdwg.mxu0
        %v2471 = vld [vmem:[%s378] sm:$0x1]
        %v2473 = vlaneseq
        %v2474 = vshrl.u32 %v2473, 7
        %v2475 = vsub.s32 0, %v2474
        %v2476 = vrot.slane %v2471, %v2475
        %v2478 = vadd.f32 %v2468, %v2476
        %v2479 = vmul.f32 %v2478, 0.1
        %v2480 = vmax.f32 %v2479, -10.0
        %v2481 = vmin.f32 %v2480, 10.0
        %2482 = vst [vmem:[%s375] sm:$0xff] %v2481
        %s2483 = sand.u32 %s195, 1
        %s2484 = scalar_lea.sflag [#allocation5], %s2483
        %s2485 = sand.u32 %s195, 1
        %s2486 = smul.addr %s2485, 8
        %s2487 = scalar_lea.vmem [#allocation12], %s2486
        // Predicated region
        $region69: #{tpu_custom_call.1} parent=43 // pred_check
          %p2488 = pneg %p205
        $region70: #{tpu_custom_call.1} parent=43 // pred_check_branch
          %2490 = sbr.rel (%p2488) target = $region72
        $region71: #{tpu_custom_call.1} parent=43 // pred_region
          %s2492 = ssub.s32 128, 128
          %2493 = vsyncadd %s2484, %s2492
          %s2494 = sadd.s32 %s32, %s31
          %s2495 = smul.addr %s2494, 128
          %s2496 = scalar_lea.hbm %s6, %s2495
          %s2498 = sshll.u32 %s2487, 4
          %s2499 = int_to_ptr.vmem [resolvable:$true] %s2498
          %2501 = dma.vmem_to_hbm [thread:$0]  %s2499, 128, %s2496, %s2484
        $region72: #{tpu_custom_call.1} parent=43 // pred_fallthru
          _
      $region44: #{tpu_custom_call.1} parent=5 // pred_fallthru
        _
      %p2502 = scmp.le.s32.totalorder 2, %s22
      // Predicated region
      $region73: #{tpu_custom_call.1} parent=5 // pred_check
        %p2503 = pneg %p2502
      $region74: #{tpu_custom_call.1} parent=5 // pred_check_branch
        %2505 = sbr.rel (%p2503) target = $region76
      $region75: #{tpu_custom_call.1} parent=5 // pred_region
        %s2506 = ssub.s32 %s22, 2
        // Predicated region
        $region77: #{tpu_custom_call.1} parent=75 // pred_check
          %p2507 = pneg %p211
        $region78: #{tpu_custom_call.1} parent=75 // pred_check_branch
          %2509 = sbr.rel (%p2507) target = $region80
        $region79: #{tpu_custom_call.1} parent=75 // pred_region
          %s2510 = sand.u32 %s196, 1
          %s2511 = scalar_lea.sflag [#allocation5], %s2510
          %s2512 = sand.u32 %s196, 1
          %s2513 = smul.addr %s2512, 8
          %s2514 = scalar_lea.vmem [#allocation12], %s2513
          %2515 = dma.done %s2511, 128
        $region80: #{tpu_custom_call.1} parent=75 // pred_fallthru
          _
      $region76: #{tpu_custom_call.1} parent=5 // pred_fallthru
        _
    $region6: #{tpu_custom_call.1} parent=1 // loop_footer
      %s26 = sadd.s32 1, %s22
    $region7: #{tpu_custom_call.1} parent=1 // loop_footer_branch
      %21 = sbr.rel target = $region3
    $region8: #{tpu_custom_call.1} parent=1 // loop_exit
      _
    %2516 = vsyncpa [#allocation4], 1
    %s2517 = scalar_lea.sflag [#allocation4], 1
    %2518 = vsyncpa %s2517, 1
    %2519 = vsyncpa [#allocation7], 1
    %s2520 = scalar_lea.sflag [#allocation7], 1
    %2521 = vsyncpa %s2520, 1
    %2522 = vsyncpa [#allocation10], 1
    %2523 = vsyncpa [#allocation5], 1
    %s2524 = scalar_lea.sflag [#allocation5], 1
    %2525 = vsyncpa %s2524, 1

</llo_original>
